<compile_context>
chip_gen: v7x
topology: tpu7x:2x2x1
jax: 0.10.0
libtpu: 0.0.40
codegen_flags: <defaults>
</compile_context>

<pallas_src>
import functools

import jax
import jax.numpy as jnp
from jax import lax
from jax.experimental import pallas as pl
from jax.experimental.pallas import tpu as pltpu


def edge_mapping_kernel(v_ref, wexp_ref, o_ref):
    """One edge tile: normalize rows, then expand via the (D, F_pad) matrix."""
    v = v_ref[...]                                            # (T, D) f32
    ss = jnp.sum(v * v, axis=-1, keepdims=True)               # (T, 1)
    inv = 1.0 / (jnp.sqrt(ss) + 1e-7)                         # one recip per row
    vn = v * inv                                              # (T, D)
    # out[e, d*C + c] = vn[e, d] * w[c]  (structural zeros elsewhere in Wexp)
    out = lax.dot_general(
        vn, wexp_ref[...],
        dimension_numbers=(((1,), (0,)), ((), ())),
        precision=lax.Precision.HIGHEST,
        preferred_element_type=jnp.float32,
    )
    o_ref[...] = out.astype(o_ref.dtype)


@functools.partial(jax.jit, static_argnames=("e_tile", "out_dtype"))
def edge_mapping(edge_vector, weight, *, e_tile=4096, out_dtype=jnp.float32):
    """edge_vector: (E, D) f32, weight: (C, 1) f32 (torch Linear(1, C).weight)."""
    E, D = edge_vector.shape
    C = weight.shape[0]
    F = D * C

    # --- host-side prep (tiny, done once per call) -------------------------
    w_row = weight.reshape(1, C).astype(jnp.float32)
    # Wexp[d, d*C + c] = w[c]; zero elsewhere. Matches flatten(start_dim=1).
    wexp = jnp.kron(jnp.eye(D, dtype=jnp.float32), w_row)      # (D, F)
    f_pad = max(128, ((F + 127) // 128) * 128)                  # lane-dense output
    if f_pad != F:
        wexp = jnp.pad(wexp, ((0, 0), (0, f_pad - F)))

    # Tile sizing: multiple of 8, never bigger than the 8-rounded row count.
    tile = min(e_tile, ((E + 7) // 8) * 8)
    tile = max(8, (tile // 8) * 8)
    grid = (pl.cdiv(E, tile),)

    v = edge_vector.astype(jnp.float32)

    out = pl.pallas_call(
        edge_mapping_kernel,
        out_shape=jax.ShapeDtypeStruct((E, f_pad), out_dtype),
        grid_spec=pltpu.PrefetchScalarGridSpec(
            num_scalar_prefetch=0,
            grid=grid,
            in_specs=[
                # edge-vector tile: rows advance with the grid (ragged last
                # block is masked by Pallas; garbage rows only feed discarded
                # output rows).
                pl.BlockSpec((tile, D), lambda i: (i, 0)),
                # expansion matrix: constant block -> resident across iterations
                pl.BlockSpec((D, f_pad), lambda i: (0, 0)),
            ],
            out_specs=pl.BlockSpec((tile, f_pad), lambda i: (i, 0)),
        ),
        compiler_params=pltpu.CompilerParams(
            dimension_semantics=("parallel",),
        ),
    )(v, wexp)

    if f_pad != F:
        # Only needed when D*C is not already lane-dense.
        out = out[:, :F]
    return out


def edge_mapping_ref(edge_vector, weight):
    """Pure-JAX reference mirroring the PyTorch forward."""
    norm = jnp.linalg.norm(edge_vector, axis=1, keepdims=True)
    vn = edge_vector / (norm + 1e-7)                            # (E, D)
    expansion = vn[..., None] * weight.reshape(-1)[None, None, :]  # (E, D, C)
    return expansion.reshape(edge_vector.shape[0], -1)          # (E, D*C)


if __name__ == "__main__":
    # Small, deterministic shapes: E edges, D-dim edge vectors, C edge channels.
    E, D, C = 512, 4, 32            # output feature dim D*C = 128 (lane-dense)

    key = jax.random.PRNGKey(0)
    kv, kw = jax.random.split(key)
    edge_vector = jax.random.normal(kv, (E, D), jnp.float32)
    # torch Linear(1, C, bias=False) init: U(-1/sqrt(1), 1/sqrt(1))
    weight = jax.random.uniform(kw, (C, 1), jnp.float32, -1.0, 1.0)

    out = edge_mapping(edge_vector, weight)
    out = jax.block_until_ready(out)

    ref = edge_mapping_ref(edge_vector, weight)
    assert out.shape == (E, D * C), out.shape
    assert jnp.allclose(out, ref, atol=1e-4, rtol=1e-4), float(
        jnp.max(jnp.abs(out - ref)))

    print("KERNEL_OK")
</pallas_src>

<mosaic_0001>
module attributes {stable_mosaic.version = 11 : i64} {
  func.func @edge_mapping_kernel(%arg0: i32, %arg1: memref<512x4xf32, #tpu.memory_space<vmem>>, %arg2: memref<4x128xf32, #tpu.memory_space<vmem>>, %arg3: memref<512x128xf32, #tpu.memory_space<vmem>>) attributes {dimension_semantics = [#tpu.dimension_semantics<parallel>], iteration_bounds = array<i64: 1>, scalar_prefetch = 0 : i64, scratch_operands = 0 : i64, tpu.core_type = #tpu.core_type<tc>, window_params = [{transform_indices = @transform_0, window_bounds = array<i64: 512, 4>}, {pipeline_mode = #tpu.pipeline_mode<synchronous>, transform_indices = @transform_1, window_bounds = array<i64: 4, 128>}, {transform_indices = @transform_2, window_bounds = array<i64: 512, 128>}]} {
    %c0 = arith.constant 0 : index
    %c0_0 = arith.constant 0 : index
    %0 = vector.load %arg1[%c0, %c0_0] : memref<512x4xf32, #tpu.memory_space<vmem>>, vector<512x4xf32>
    %1 = arith.mulf %0, %0 : vector<512x4xf32>
    %cst = arith.constant dense<0.000000e+00> : vector<512xf32>
    %2 = vector.multi_reduction <add>, %1, %cst [1] : vector<512x4xf32> to vector<512xf32>
    %3 = vector.shape_cast %2 : vector<512xf32> to vector<512x1xf32>
    %4 = math.sqrt %3 : vector<512x1xf32>
    %cst_1 = arith.constant 1.000000e-07 : f32
    %5 = vector.broadcast %cst_1 : f32 to vector<512x1xf32>
    %6 = arith.addf %4, %5 : vector<512x1xf32>
    %cst_2 = arith.constant 1.000000e+00 : f32
    %7 = vector.broadcast %cst_2 : f32 to vector<512x1xf32>
    %8 = arith.divf %7, %6 : vector<512x1xf32>
    %9 = vector.broadcast %8 : vector<512x1xf32> to vector<512x4xf32>
    %10 = arith.mulf %0, %9 : vector<512x4xf32>
    %c0_3 = arith.constant 0 : index
    %c0_4 = arith.constant 0 : index
    %11 = vector.load %arg2[%c0_3, %c0_4] : memref<4x128xf32, #tpu.memory_space<vmem>>, vector<4x128xf32>
    %cst_5 = arith.constant dense<0.000000e+00> : vector<512x128xf32>
    %12 = tpu.matmul %10, %11, %cst_5 {dimension_numbers = #tpu.dot_dimension_numbers<[1], [0], [0], [1], [0, 0, 1, 1], [], []>, precision = #tpu.contract_precision<fp32>} : vector<512x4xf32>, vector<4x128xf32>, vector<512x128xf32> -> vector<512x128xf32>
    %c0_6 = arith.constant 0 : index
    %c0_7 = arith.constant 0 : index
    %13 = vector.load %arg3[%c0_6, %c0_7] : memref<512x128xf32, #tpu.memory_space<vmem>>, vector<512x128xf32>
    tpu.vector_store %arg3[%c0_6, %c0_7], %12 {strides = array<i32>} : memref<512x128xf32, #tpu.memory_space<vmem>>, vector<512x128xf32>,
    return
  }
  func.func @transform_0(%arg0: i32) -> (i32, i32) {
    %c0_i32 = arith.constant 0 : i32
    %c0_i32_0 = arith.constant 0 : i32
    return %arg0, %c0_i32 : i32, i32
  }
  func.func @transform_1(%arg0: i32) -> (i32, i32) {
    %c0_i32 = arith.constant 0 : i32
    %c0_i32_0 = arith.constant 0 : i32
    %c0_i32_1 = arith.constant 0 : i32
    return %c0_i32, %c0_i32_0 : i32, i32
  }
  func.func @transform_2(%arg0: i32) -> (i32, i32) {
    %c0_i32 = arith.constant 0 : i32
    %c0_i32_0 = arith.constant 0 : i32
    return %arg0, %c0_i32 : i32, i32
  }
}

</mosaic_0001>

<llo_original>
// kernel: edge_mapping.1
$region0: #{edge_mapping.1}
  #allocation0 [shape = 'u32[]', space=smem, size = 0x4, offset = 0x4, fixed_abs, tag = 'smem constant byte address 0x4 - core index']
  #allocation1 [shape = 'u32[144,128]{1,0:T(1,128)}', space=vmem, size = 0x12000, scoped, tag = 'internal scratch']
  %s0 = inlined_call_operand.vmem [shape: f32[512,4], index: 0, kind: input, shape index: {}]
  %s1 = inlined_call_operand.vmem [shape: f32[4,128], index: 1, kind: input, shape index: {}]
  %s2 = inlined_call_operand.hbm [shape: f32[512,128], index: 2, kind: output, shape index: {}]
  %s3 = sld [smem:[#allocation0]]
  $region18: #{edge_mapping.1} parent=0
    _
  %s5 = ssub.s32 1, %s3
  %s6 = scalar_select 0, %s5, %s3
  $region1: #{edge_mapping.1} parent=0
    #allocation2 [shape = 'u8[262144]{0}', space=vmem, size = 0x40000, scoped, tag = 'output window, operand 0, single buffered']
    #allocation3 [shape = 's32[1]{0}', space=sflag, size = 0x4, scoped, tag = 'scoped memory for edge_mapping.1']
    %7 = vsyncpa [#allocation3], 0
    // Predicated region
    $region2: #{edge_mapping.1} parent=1 // pred_check
      _
    $region3: #{edge_mapping.1} parent=1 // pred_check_branch
      %9 = sbr.rel (0) target = $region5
    $region4: #{edge_mapping.1} parent=1 // pred_region
      _
    $region5: #{edge_mapping.1} parent=1 // pred_fallthru
      _
    // Predicated region
    $region6: #{edge_mapping.1} parent=1 // pred_check
      _
    $region7: #{edge_mapping.1} parent=1 // pred_check_branch
      %11 = sbr.rel (0) target = $region9
    $region8: #{edge_mapping.1} parent=1 // pred_region
      _
    $region9: #{edge_mapping.1} parent=1 // pred_fallthru
      _
    %v12 = vld [vmem:[%s0] sm:$0xff]
    %v13 = vld [vmem:[%s0 + $0x8] sm:$0xff]
    %v14 = vld [vmem:[%s0 + $0x10] sm:$0xff]
    %v15 = vld [vmem:[%s0 + $0x18] sm:$0xff]
    %v16 = vld [vmem:[%s0 + $0x20] sm:$0xff]
    %v17 = vld [vmem:[%s0 + $0x28] sm:$0xff]
    %v18 = vld [vmem:[%s0 + $0x30] sm:$0xff]
    %v19 = vld [vmem:[%s0 + $0x38] sm:$0xff]
    %v20 = vld [vmem:[%s0 + $0x40] sm:$0xff]
    %v21 = vld [vmem:[%s0 + $0x48] sm:$0xff]
    %v22 = vld [vmem:[%s0 + $0x50] sm:$0xff]
    %v23 = vld [vmem:[%s0 + $0x58] sm:$0xff]
    %v24 = vld [vmem:[%s0 + $0x60] sm:$0xff]
    %v25 = vld [vmem:[%s0 + $0x68] sm:$0xff]
    %v26 = vld [vmem:[%s0 + $0x70] sm:$0xff]
    %v27 = vld [vmem:[%s0 + $0x78] sm:$0xff]
    %v28 = vld [vmem:[%s0 + $0x80] sm:$0xff]
    %v29 = vld [vmem:[%s0 + $0x88] sm:$0xff]
    %v30 = vld [vmem:[%s0 + $0x90] sm:$0xff]
    %v31 = vld [vmem:[%s0 + $0x98] sm:$0xff]
    %v32 = vld [vmem:[%s0 + $0xa0] sm:$0xff]
    %v33 = vld [vmem:[%s0 + $0xa8] sm:$0xff]
    %v34 = vld [vmem:[%s0 + $0xb0] sm:$0xff]
    %v35 = vld [vmem:[%s0 + $0xb8] sm:$0xff]
    %v36 = vld [vmem:[%s0 + $0xc0] sm:$0xff]
    %v37 = vld [vmem:[%s0 + $0xc8] sm:$0xff]
    %v38 = vld [vmem:[%s0 + $0xd0] sm:$0xff]
    %v39 = vld [vmem:[%s0 + $0xd8] sm:$0xff]
    %v40 = vld [vmem:[%s0 + $0xe0] sm:$0xff]
    %v41 = vld [vmem:[%s0 + $0xe8] sm:$0xff]
    %v42 = vld [vmem:[%s0 + $0xf0] sm:$0xff]
    %v43 = vld [vmem:[%s0 + $0xf8] sm:$0xff]
    %v44 = vld [vmem:[%s0 + $0x100] sm:$0xff]
    %v45 = vld [vmem:[%s0 + $0x108] sm:$0xff]
    %v46 = vld [vmem:[%s0 + $0x110] sm:$0xff]
    %v47 = vld [vmem:[%s0 + $0x118] sm:$0xff]
    %v48 = vld [vmem:[%s0 + $0x120] sm:$0xff]
    %v49 = vld [vmem:[%s0 + $0x128] sm:$0xff]
    %v50 = vld [vmem:[%s0 + $0x130] sm:$0xff]
    %v51 = vld [vmem:[%s0 + $0x138] sm:$0xff]
    %v52 = vld [vmem:[%s0 + $0x140] sm:$0xff]
    %v53 = vld [vmem:[%s0 + $0x148] sm:$0xff]
    %v54 = vld [vmem:[%s0 + $0x150] sm:$0xff]
    %v55 = vld [vmem:[%s0 + $0x158] sm:$0xff]
    %v56 = vld [vmem:[%s0 + $0x160] sm:$0xff]
    %v57 = vld [vmem:[%s0 + $0x168] sm:$0xff]
    %v58 = vld [vmem:[%s0 + $0x170] sm:$0xff]
    %v59 = vld [vmem:[%s0 + $0x178] sm:$0xff]
    %v60 = vld [vmem:[%s0 + $0x180] sm:$0xff]
    %v61 = vld [vmem:[%s0 + $0x188] sm:$0xff]
    %v62 = vld [vmem:[%s0 + $0x190] sm:$0xff]
    %v63 = vld [vmem:[%s0 + $0x198] sm:$0xff]
    %v64 = vld [vmem:[%s0 + $0x1a0] sm:$0xff]
    %v65 = vld [vmem:[%s0 + $0x1a8] sm:$0xff]
    %v66 = vld [vmem:[%s0 + $0x1b0] sm:$0xff]
    %v67 = vld [vmem:[%s0 + $0x1b8] sm:$0xff]
    %v68 = vld [vmem:[%s0 + $0x1c0] sm:$0xff]
    %v69 = vld [vmem:[%s0 + $0x1c8] sm:$0xff]
    %v70 = vld [vmem:[%s0 + $0x1d0] sm:$0xff]
    %v71 = vld [vmem:[%s0 + $0x1d8] sm:$0xff]
    %v72 = vld [vmem:[%s0 + $0x1e0] sm:$0xff]
    %v73 = vld [vmem:[%s0 + $0x1e8] sm:$0xff]
    %v74 = vld [vmem:[%s0 + $0x1f0] sm:$0xff]
    %v75 = vld [vmem:[%s0 + $0x1f8] sm:$0xff]
    %v76 = vmul.f32 %v12, %v12
    %v77 = vmul.f32 %v13, %v13
    %v78 = vmul.f32 %v14, %v14
    %v79 = vmul.f32 %v15, %v15
    %v80 = vmul.f32 %v16, %v16
    %v81 = vmul.f32 %v17, %v17
    %v82 = vmul.f32 %v18, %v18
    %v83 = vmul.f32 %v19, %v19
    %v84 = vmul.f32 %v20, %v20
    %v85 = vmul.f32 %v21, %v21
    %v86 = vmul.f32 %v22, %v22
    %v87 = vmul.f32 %v23, %v23
    %v88 = vmul.f32 %v24, %v24
    %v89 = vmul.f32 %v25, %v25
    %v90 = vmul.f32 %v26, %v26
    %v91 = vmul.f32 %v27, %v27
    %v92 = vmul.f32 %v28, %v28
    %v93 = vmul.f32 %v29, %v29
    %v94 = vmul.f32 %v30, %v30
    %v95 = vmul.f32 %v31, %v31
    %v96 = vmul.f32 %v32, %v32
    %v97 = vmul.f32 %v33, %v33
    %v98 = vmul.f32 %v34, %v34
    %v99 = vmul.f32 %v35, %v35
    %v100 = vmul.f32 %v36, %v36
    %v101 = vmul.f32 %v37, %v37
    %v102 = vmul.f32 %v38, %v38
    %v103 = vmul.f32 %v39, %v39
    %v104 = vmul.f32 %v40, %v40
    %v105 = vmul.f32 %v41, %v41
    %v106 = vmul.f32 %v42, %v42
    %v107 = vmul.f32 %v43, %v43
    %v108 = vmul.f32 %v44, %v44
    %v109 = vmul.f32 %v45, %v45
    %v110 = vmul.f32 %v46, %v46
    %v111 = vmul.f32 %v47, %v47
    %v112 = vmul.f32 %v48, %v48
    %v113 = vmul.f32 %v49, %v49
    %v114 = vmul.f32 %v50, %v50
    %v115 = vmul.f32 %v51, %v51
    %v116 = vmul.f32 %v52, %v52
    %v117 = vmul.f32 %v53, %v53
    %v118 = vmul.f32 %v54, %v54
    %v119 = vmul.f32 %v55, %v55
    %v120 = vmul.f32 %v56, %v56
    %v121 = vmul.f32 %v57, %v57
    %v122 = vmul.f32 %v58, %v58
    %v123 = vmul.f32 %v59, %v59
    %v124 = vmul.f32 %v60, %v60
    %v125 = vmul.f32 %v61, %v61
    %v126 = vmul.f32 %v62, %v62
    %v127 = vmul.f32 %v63, %v63
    %v128 = vmul.f32 %v64, %v64
    %v129 = vmul.f32 %v65, %v65
    %v130 = vmul.f32 %v66, %v66
    %v131 = vmul.f32 %v67, %v67
    %v132 = vmul.f32 %v68, %v68
    %v133 = vmul.f32 %v69, %v69
    %v134 = vmul.f32 %v70, %v70
    %v135 = vmul.f32 %v71, %v71
    %v136 = vmul.f32 %v72, %v72
    %v137 = vmul.f32 %v73, %v73
    %v138 = vmul.f32 %v74, %v74
    %v139 = vmul.f32 %v75, %v75
    %vm140 = vcmask 31744
    %v141 = vsel %vm140, %v76, 0.0
    %142 = vadd.xlane.f32.xlu0 %v141
    %v143 = vpop.xlane.xlu0 %142
    %v144 = vsel %vm140, %v77, 0.0
    %145 = vadd.xlane.f32.xlu0 %v144
    %v146 = vpop.xlane.xlu0 %145
    %v147 = vsel %vm140, %v78, 0.0
    %148 = vadd.xlane.f32.xlu0 %v147
    %v149 = vpop.xlane.xlu0 %148
    %v150 = vsel %vm140, %v79, 0.0
    %151 = vadd.xlane.f32.xlu0 %v150
    %v152 = vpop.xlane.xlu0 %151
    %v153 = vsel %vm140, %v80, 0.0
    %154 = vadd.xlane.f32.xlu0 %v153
    %v155 = vpop.xlane.xlu0 %154
    %v156 = vsel %vm140, %v81, 0.0
    %157 = vadd.xlane.f32.xlu0 %v156
    %v158 = vpop.xlane.xlu0 %157
    %v159 = vsel %vm140, %v82, 0.0
    %160 = vadd.xlane.f32.xlu0 %v159
    %v161 = vpop.xlane.xlu0 %160
    %v162 = vsel %vm140, %v83, 0.0
    %163 = vadd.xlane.f32.xlu0 %v162
    %v164 = vpop.xlane.xlu0 %163
    %v165 = vsel %vm140, %v84, 0.0
    %166 = vadd.xlane.f32.xlu0 %v165
    %v167 = vpop.xlane.xlu0 %166
    %v168 = vsel %vm140, %v85, 0.0
    %169 = vadd.xlane.f32.xlu0 %v168
    %v170 = vpop.xlane.xlu0 %169
    %v171 = vsel %vm140, %v86, 0.0
    %172 = vadd.xlane.f32.xlu0 %v171
    %v173 = vpop.xlane.xlu0 %172
    %v174 = vsel %vm140, %v87, 0.0
    %175 = vadd.xlane.f32.xlu0 %v174
    %v176 = vpop.xlane.xlu0 %175
    %v177 = vsel %vm140, %v88, 0.0
    %178 = vadd.xlane.f32.xlu0 %v177
    %v179 = vpop.xlane.xlu0 %178
    %v180 = vsel %vm140, %v89, 0.0
    %181 = vadd.xlane.f32.xlu0 %v180
    %v182 = vpop.xlane.xlu0 %181
    %v183 = vsel %vm140, %v90, 0.0
    %184 = vadd.xlane.f32.xlu0 %v183
    %v185 = vpop.xlane.xlu0 %184
    %v186 = vsel %vm140, %v91, 0.0
    %187 = vadd.xlane.f32.xlu0 %v186
    %v188 = vpop.xlane.xlu0 %187
    %v189 = vsel %vm140, %v92, 0.0
    %190 = vadd.xlane.f32.xlu0 %v189
    %v191 = vpop.xlane.xlu0 %190
    %v192 = vsel %vm140, %v93, 0.0
    %193 = vadd.xlane.f32.xlu0 %v192
    %v194 = vpop.xlane.xlu0 %193
    %v195 = vsel %vm140, %v94, 0.0
    %196 = vadd.xlane.f32.xlu0 %v195
    %v197 = vpop.xlane.xlu0 %196
    %v198 = vsel %vm140, %v95, 0.0
    %199 = vadd.xlane.f32.xlu0 %v198
    %v200 = vpop.xlane.xlu0 %199
    %v201 = vsel %vm140, %v96, 0.0
    %202 = vadd.xlane.f32.xlu0 %v201
    %v203 = vpop.xlane.xlu0 %202
    %v204 = vsel %vm140, %v97, 0.0
    %205 = vadd.xlane.f32.xlu0 %v204
    %v206 = vpop.xlane.xlu0 %205
    %v207 = vsel %vm140, %v98, 0.0
    %208 = vadd.xlane.f32.xlu0 %v207
    %v209 = vpop.xlane.xlu0 %208
    %v210 = vsel %vm140, %v99, 0.0
    %211 = vadd.xlane.f32.xlu0 %v210
    %v212 = vpop.xlane.xlu0 %211
    %v213 = vsel %vm140, %v100, 0.0
    %214 = vadd.xlane.f32.xlu0 %v213
    %v215 = vpop.xlane.xlu0 %214
    %v216 = vsel %vm140, %v101, 0.0
    %217 = vadd.xlane.f32.xlu0 %v216
    %v218 = vpop.xlane.xlu0 %217
    %v219 = vsel %vm140, %v102, 0.0
    %220 = vadd.xlane.f32.xlu0 %v219
    %v221 = vpop.xlane.xlu0 %220
    %v222 = vsel %vm140, %v103, 0.0
    %223 = vadd.xlane.f32.xlu0 %v222
    %v224 = vpop.xlane.xlu0 %223
    %v225 = vsel %vm140, %v104, 0.0
    %226 = vadd.xlane.f32.xlu0 %v225
    %v227 = vpop.xlane.xlu0 %226
    %v228 = vsel %vm140, %v105, 0.0
    %229 = vadd.xlane.f32.xlu0 %v228
    %v230 = vpop.xlane.xlu0 %229
    %v231 = vsel %vm140, %v106, 0.0
    %232 = vadd.xlane.f32.xlu0 %v231
    %v233 = vpop.xlane.xlu0 %232
    %v234 = vsel %vm140, %v107, 0.0
    %235 = vadd.xlane.f32.xlu0 %v234
    %v236 = vpop.xlane.xlu0 %235
    %v237 = vsel %vm140, %v108, 0.0
    %238 = vadd.xlane.f32.xlu0 %v237
    %v239 = vpop.xlane.xlu0 %238
    %v240 = vsel %vm140, %v109, 0.0
    %241 = vadd.xlane.f32.xlu0 %v240
    %v242 = vpop.xlane.xlu0 %241
    %v243 = vsel %vm140, %v110, 0.0
    %244 = vadd.xlane.f32.xlu0 %v243
    %v245 = vpop.xlane.xlu0 %244
    %v246 = vsel %vm140, %v111, 0.0
    %247 = vadd.xlane.f32.xlu0 %v246
    %v248 = vpop.xlane.xlu0 %247
    %v249 = vsel %vm140, %v112, 0.0
    %250 = vadd.xlane.f32.xlu0 %v249
    %v251 = vpop.xlane.xlu0 %250
    %v252 = vsel %vm140, %v113, 0.0
    %253 = vadd.xlane.f32.xlu0 %v252
    %v254 = vpop.xlane.xlu0 %253
    %v255 = vsel %vm140, %v114, 0.0
    %256 = vadd.xlane.f32.xlu0 %v255
    %v257 = vpop.xlane.xlu0 %256
    %v258 = vsel %vm140, %v115, 0.0
    %259 = vadd.xlane.f32.xlu0 %v258
    %v260 = vpop.xlane.xlu0 %259
    %v261 = vsel %vm140, %v116, 0.0
    %262 = vadd.xlane.f32.xlu0 %v261
    %v263 = vpop.xlane.xlu0 %262
    %v264 = vsel %vm140, %v117, 0.0
    %265 = vadd.xlane.f32.xlu0 %v264
    %v266 = vpop.xlane.xlu0 %265
    %v267 = vsel %vm140, %v118, 0.0
    %268 = vadd.xlane.f32.xlu0 %v267
    %v269 = vpop.xlane.xlu0 %268
    %v270 = vsel %vm140, %v119, 0.0
    %271 = vadd.xlane.f32.xlu0 %v270
    %v272 = vpop.xlane.xlu0 %271
    %v273 = vsel %vm140, %v120, 0.0
    %274 = vadd.xlane.f32.xlu0 %v273
    %v275 = vpop.xlane.xlu0 %274
    %v276 = vsel %vm140, %v121, 0.0
    %277 = vadd.xlane.f32.xlu0 %v276
    %v278 = vpop.xlane.xlu0 %277
    %v279 = vsel %vm140, %v122, 0.0
    %280 = vadd.xlane.f32.xlu0 %v279
    %v281 = vpop.xlane.xlu0 %280
    %v282 = vsel %vm140, %v123, 0.0
    %283 = vadd.xlane.f32.xlu0 %v282
    %v284 = vpop.xlane.xlu0 %283
    %v285 = vsel %vm140, %v124, 0.0
    %286 = vadd.xlane.f32.xlu0 %v285
    %v287 = vpop.xlane.xlu0 %286
    %v288 = vsel %vm140, %v125, 0.0
    %289 = vadd.xlane.f32.xlu0 %v288
    %v290 = vpop.xlane.xlu0 %289
    %v291 = vsel %vm140, %v126, 0.0
    %292 = vadd.xlane.f32.xlu0 %v291
    %v293 = vpop.xlane.xlu0 %292
    %v294 = vsel %vm140, %v127, 0.0
    %295 = vadd.xlane.f32.xlu0 %v294
    %v296 = vpop.xlane.xlu0 %295
    %v297 = vsel %vm140, %v128, 0.0
    %298 = vadd.xlane.f32.xlu0 %v297
    %v299 = vpop.xlane.xlu0 %298
    %v300 = vsel %vm140, %v129, 0.0
    %301 = vadd.xlane.f32.xlu0 %v300
    %v302 = vpop.xlane.xlu0 %301
    %v303 = vsel %vm140, %v130, 0.0
    %304 = vadd.xlane.f32.xlu0 %v303
    %v305 = vpop.xlane.xlu0 %304
    %v306 = vsel %vm140, %v131, 0.0
    %307 = vadd.xlane.f32.xlu0 %v306
    %v308 = vpop.xlane.xlu0 %307
    %v309 = vsel %vm140, %v132, 0.0
    %310 = vadd.xlane.f32.xlu0 %v309
    %v311 = vpop.xlane.xlu0 %310
    %v312 = vsel %vm140, %v133, 0.0
    %313 = vadd.xlane.f32.xlu0 %v312
    %v314 = vpop.xlane.xlu0 %313
    %v315 = vsel %vm140, %v134, 0.0
    %316 = vadd.xlane.f32.xlu0 %v315
    %v317 = vpop.xlane.xlu0 %316
    %v318 = vsel %vm140, %v135, 0.0
    %319 = vadd.xlane.f32.xlu0 %v318
    %v320 = vpop.xlane.xlu0 %319
    %v321 = vsel %vm140, %v136, 0.0
    %322 = vadd.xlane.f32.xlu0 %v321
    %v323 = vpop.xlane.xlu0 %322
    %v324 = vsel %vm140, %v137, 0.0
    %325 = vadd.xlane.f32.xlu0 %v324
    %v326 = vpop.xlane.xlu0 %325
    %v327 = vsel %vm140, %v138, 0.0
    %328 = vadd.xlane.f32.xlu0 %v327
    %v329 = vpop.xlane.xlu0 %328
    %v330 = vsel %vm140, %v139, 0.0
    %331 = vadd.xlane.f32.xlu0 %v330
    %v332 = vpop.xlane.xlu0 %331
    %v333 = vrsqrt.pop %v143
    %v334 = vmul.f32 %v143, %v333
    %vm335 = vcmp.eq.f32.partialorder %v143, inf
    %v336 = vsel %vm335, %v143, %v334
    %vm337 = vcmp.eq.f32.partialorder %v143, 0.0
    %v338 = vand.u32 %v143, 2147483648
    %v339 = vsel %vm337, %v338, %v336
    %v340 = vrsqrt.pop %v146
    %v341 = vmul.f32 %v146, %v340
    %vm342 = vcmp.eq.f32.partialorder %v146, inf
    %v343 = vsel %vm342, %v146, %v341
    %vm344 = vcmp.eq.f32.partialorder %v146, 0.0
    %v345 = vand.u32 %v146, 2147483648
    %v346 = vsel %vm344, %v345, %v343
    %v347 = vrsqrt.pop %v149
    %v348 = vmul.f32 %v149, %v347
    %vm349 = vcmp.eq.f32.partialorder %v149, inf
    %v350 = vsel %vm349, %v149, %v348
    %vm351 = vcmp.eq.f32.partialorder %v149, 0.0
    %v352 = vand.u32 %v149, 2147483648
    %v353 = vsel %vm351, %v352, %v350
    %v354 = vrsqrt.pop %v152
    %v355 = vmul.f32 %v152, %v354
    %vm356 = vcmp.eq.f32.partialorder %v152, inf
    %v357 = vsel %vm356, %v152, %v355
    %vm358 = vcmp.eq.f32.partialorder %v152, 0.0
    %v359 = vand.u32 %v152, 2147483648
    %v360 = vsel %vm358, %v359, %v357
    %v361 = vrsqrt.pop %v155
    %v362 = vmul.f32 %v155, %v361
    %vm363 = vcmp.eq.f32.partialorder %v155, inf
    %v364 = vsel %vm363, %v155, %v362
    %vm365 = vcmp.eq.f32.partialorder %v155, 0.0
    %v366 = vand.u32 %v155, 2147483648
    %v367 = vsel %vm365, %v366, %v364
    %v368 = vrsqrt.pop %v158
    %v369 = vmul.f32 %v158, %v368
    %vm370 = vcmp.eq.f32.partialorder %v158, inf
    %v371 = vsel %vm370, %v158, %v369
    %vm372 = vcmp.eq.f32.partialorder %v158, 0.0
    %v373 = vand.u32 %v158, 2147483648
    %v374 = vsel %vm372, %v373, %v371
    %v375 = vrsqrt.pop %v161
    %v376 = vmul.f32 %v161, %v375
    %vm377 = vcmp.eq.f32.partialorder %v161, inf
    %v378 = vsel %vm377, %v161, %v376
    %vm379 = vcmp.eq.f32.partialorder %v161, 0.0
    %v380 = vand.u32 %v161, 2147483648
    %v381 = vsel %vm379, %v380, %v378
    %v382 = vrsqrt.pop %v164
    %v383 = vmul.f32 %v164, %v382
    %vm384 = vcmp.eq.f32.partialorder %v164, inf
    %v385 = vsel %vm384, %v164, %v383
    %vm386 = vcmp.eq.f32.partialorder %v164, 0.0
    %v387 = vand.u32 %v164, 2147483648
    %v388 = vsel %vm386, %v387, %v385
    %v389 = vrsqrt.pop %v167
    %v390 = vmul.f32 %v167, %v389
    %vm391 = vcmp.eq.f32.partialorder %v167, inf
    %v392 = vsel %vm391, %v167, %v390
    %vm393 = vcmp.eq.f32.partialorder %v167, 0.0
    %v394 = vand.u32 %v167, 2147483648
    %v395 = vsel %vm393, %v394, %v392
    %v396 = vrsqrt.pop %v170
    %v397 = vmul.f32 %v170, %v396
    %vm398 = vcmp.eq.f32.partialorder %v170, inf
    %v399 = vsel %vm398, %v170, %v397
    %vm400 = vcmp.eq.f32.partialorder %v170, 0.0
    %v401 = vand.u32 %v170, 2147483648
    %v402 = vsel %vm400, %v401, %v399
    %v403 = vrsqrt.pop %v173
    %v404 = vmul.f32 %v173, %v403
    %vm405 = vcmp.eq.f32.partialorder %v173, inf
    %v406 = vsel %vm405, %v173, %v404
    %vm407 = vcmp.eq.f32.partialorder %v173, 0.0
    %v408 = vand.u32 %v173, 2147483648
    %v409 = vsel %vm407, %v408, %v406
    %v410 = vrsqrt.pop %v176
    %v411 = vmul.f32 %v176, %v410
    %vm412 = vcmp.eq.f32.partialorder %v176, inf
    %v413 = vsel %vm412, %v176, %v411
    %vm414 = vcmp.eq.f32.partialorder %v176, 0.0
    %v415 = vand.u32 %v176, 2147483648
    %v416 = vsel %vm414, %v415, %v413
    %v417 = vrsqrt.pop %v179
    %v418 = vmul.f32 %v179, %v417
    %vm419 = vcmp.eq.f32.partialorder %v179, inf
    %v420 = vsel %vm419, %v179, %v418
    %vm421 = vcmp.eq.f32.partialorder %v179, 0.0
    %v422 = vand.u32 %v179, 2147483648
    %v423 = vsel %vm421, %v422, %v420
    %v424 = vrsqrt.pop %v182
    %v425 = vmul.f32 %v182, %v424
    %vm426 = vcmp.eq.f32.partialorder %v182, inf
    %v427 = vsel %vm426, %v182, %v425
    %vm428 = vcmp.eq.f32.partialorder %v182, 0.0
    %v429 = vand.u32 %v182, 2147483648
    %v430 = vsel %vm428, %v429, %v427
    %v431 = vrsqrt.pop %v185
    %v432 = vmul.f32 %v185, %v431
    %vm433 = vcmp.eq.f32.partialorder %v185, inf
    %v434 = vsel %vm433, %v185, %v432
    %vm435 = vcmp.eq.f32.partialorder %v185, 0.0
    %v436 = vand.u32 %v185, 2147483648
    %v437 = vsel %vm435, %v436, %v434
    %v438 = vrsqrt.pop %v188
    %v439 = vmul.f32 %v188, %v438
    %vm440 = vcmp.eq.f32.partialorder %v188, inf
    %v441 = vsel %vm440, %v188, %v439
    %vm442 = vcmp.eq.f32.partialorder %v188, 0.0
    %v443 = vand.u32 %v188, 2147483648
    %v444 = vsel %vm442, %v443, %v441
    %v445 = vrsqrt.pop %v191
    %v446 = vmul.f32 %v191, %v445
    %vm447 = vcmp.eq.f32.partialorder %v191, inf
    %v448 = vsel %vm447, %v191, %v446
    %vm449 = vcmp.eq.f32.partialorder %v191, 0.0
    %v450 = vand.u32 %v191, 2147483648
    %v451 = vsel %vm449, %v450, %v448
    %v452 = vrsqrt.pop %v194
    %v453 = vmul.f32 %v194, %v452
    %vm454 = vcmp.eq.f32.partialorder %v194, inf
    %v455 = vsel %vm454, %v194, %v453
    %vm456 = vcmp.eq.f32.partialorder %v194, 0.0
    %v457 = vand.u32 %v194, 2147483648
    %v458 = vsel %vm456, %v457, %v455
    %v459 = vrsqrt.pop %v197
    %v460 = vmul.f32 %v197, %v459
    %vm461 = vcmp.eq.f32.partialorder %v197, inf
    %v462 = vsel %vm461, %v197, %v460
    %vm463 = vcmp.eq.f32.partialorder %v197, 0.0
    %v464 = vand.u32 %v197, 2147483648
    %v465 = vsel %vm463, %v464, %v462
    %v466 = vrsqrt.pop %v200
    %v467 = vmul.f32 %v200, %v466
    %vm468 = vcmp.eq.f32.partialorder %v200, inf
    %v469 = vsel %vm468, %v200, %v467
    %vm470 = vcmp.eq.f32.partialorder %v200, 0.0
    %v471 = vand.u32 %v200, 2147483648
    %v472 = vsel %vm470, %v471, %v469
    %v473 = vrsqrt.pop %v203
    %v474 = vmul.f32 %v203, %v473
    %vm475 = vcmp.eq.f32.partialorder %v203, inf
    %v476 = vsel %vm475, %v203, %v474
    %vm477 = vcmp.eq.f32.partialorder %v203, 0.0
    %v478 = vand.u32 %v203, 2147483648
    %v479 = vsel %vm477, %v478, %v476
    %v480 = vrsqrt.pop %v206
    %v481 = vmul.f32 %v206, %v480
    %vm482 = vcmp.eq.f32.partialorder %v206, inf
    %v483 = vsel %vm482, %v206, %v481
    %vm484 = vcmp.eq.f32.partialorder %v206, 0.0
    %v485 = vand.u32 %v206, 2147483648
    %v486 = vsel %vm484, %v485, %v483
    %v487 = vrsqrt.pop %v209
    %v488 = vmul.f32 %v209, %v487
    %vm489 = vcmp.eq.f32.partialorder %v209, inf
    %v490 = vsel %vm489, %v209, %v488
    %vm491 = vcmp.eq.f32.partialorder %v209, 0.0
    %v492 = vand.u32 %v209, 2147483648
    %v493 = vsel %vm491, %v492, %v490
    %v494 = vrsqrt.pop %v212
    %v495 = vmul.f32 %v212, %v494
    %vm496 = vcmp.eq.f32.partialorder %v212, inf
    %v497 = vsel %vm496, %v212, %v495
    %vm498 = vcmp.eq.f32.partialorder %v212, 0.0
    %v499 = vand.u32 %v212, 2147483648
    %v500 = vsel %vm498, %v499, %v497
    %v501 = vrsqrt.pop %v215
    %v502 = vmul.f32 %v215, %v501
    %vm503 = vcmp.eq.f32.partialorder %v215, inf
    %v504 = vsel %vm503, %v215, %v502
    %vm505 = vcmp.eq.f32.partialorder %v215, 0.0
    %v506 = vand.u32 %v215, 2147483648
    %v507 = vsel %vm505, %v506, %v504
    %v508 = vrsqrt.pop %v218
    %v509 = vmul.f32 %v218, %v508
    %vm510 = vcmp.eq.f32.partialorder %v218, inf
    %v511 = vsel %vm510, %v218, %v509
    %vm512 = vcmp.eq.f32.partialorder %v218, 0.0
    %v513 = vand.u32 %v218, 2147483648
    %v514 = vsel %vm512, %v513, %v511
    %v515 = vrsqrt.pop %v221
    %v516 = vmul.f32 %v221, %v515
    %vm517 = vcmp.eq.f32.partialorder %v221, inf
    %v518 = vsel %vm517, %v221, %v516
    %vm519 = vcmp.eq.f32.partialorder %v221, 0.0
    %v520 = vand.u32 %v221, 2147483648
    %v521 = vsel %vm519, %v520, %v518
    %v522 = vrsqrt.pop %v224
    %v523 = vmul.f32 %v224, %v522
    %vm524 = vcmp.eq.f32.partialorder %v224, inf
    %v525 = vsel %vm524, %v224, %v523
    %vm526 = vcmp.eq.f32.partialorder %v224, 0.0
    %v527 = vand.u32 %v224, 2147483648
    %v528 = vsel %vm526, %v527, %v525
    %v529 = vrsqrt.pop %v227
    %v530 = vmul.f32 %v227, %v529
    %vm531 = vcmp.eq.f32.partialorder %v227, inf
    %v532 = vsel %vm531, %v227, %v530
    %vm533 = vcmp.eq.f32.partialorder %v227, 0.0
    %v534 = vand.u32 %v227, 2147483648
    %v535 = vsel %vm533, %v534, %v532
    %v536 = vrsqrt.pop %v230
    %v537 = vmul.f32 %v230, %v536
    %vm538 = vcmp.eq.f32.partialorder %v230, inf
    %v539 = vsel %vm538, %v230, %v537
    %vm540 = vcmp.eq.f32.partialorder %v230, 0.0
    %v541 = vand.u32 %v230, 2147483648
    %v542 = vsel %vm540, %v541, %v539
    %v543 = vrsqrt.pop %v233
    %v544 = vmul.f32 %v233, %v543
    %vm545 = vcmp.eq.f32.partialorder %v233, inf
    %v546 = vsel %vm545, %v233, %v544
    %vm547 = vcmp.eq.f32.partialorder %v233, 0.0
    %v548 = vand.u32 %v233, 2147483648
    %v549 = vsel %vm547, %v548, %v546
    %v550 = vrsqrt.pop %v236
    %v551 = vmul.f32 %v236, %v550
    %vm552 = vcmp.eq.f32.partialorder %v236, inf
    %v553 = vsel %vm552, %v236, %v551
    %vm554 = vcmp.eq.f32.partialorder %v236, 0.0
    %v555 = vand.u32 %v236, 2147483648
    %v556 = vsel %vm554, %v555, %v553
    %v557 = vrsqrt.pop %v239
    %v558 = vmul.f32 %v239, %v557
    %vm559 = vcmp.eq.f32.partialorder %v239, inf
    %v560 = vsel %vm559, %v239, %v558
    %vm561 = vcmp.eq.f32.partialorder %v239, 0.0
    %v562 = vand.u32 %v239, 2147483648
    %v563 = vsel %vm561, %v562, %v560
    %v564 = vrsqrt.pop %v242
    %v565 = vmul.f32 %v242, %v564
    %vm566 = vcmp.eq.f32.partialorder %v242, inf
    %v567 = vsel %vm566, %v242, %v565
    %vm568 = vcmp.eq.f32.partialorder %v242, 0.0
    %v569 = vand.u32 %v242, 2147483648
    %v570 = vsel %vm568, %v569, %v567
    %v571 = vrsqrt.pop %v245
    %v572 = vmul.f32 %v245, %v571
    %vm573 = vcmp.eq.f32.partialorder %v245, inf
    %v574 = vsel %vm573, %v245, %v572
    %vm575 = vcmp.eq.f32.partialorder %v245, 0.0
    %v576 = vand.u32 %v245, 2147483648
    %v577 = vsel %vm575, %v576, %v574
    %v578 = vrsqrt.pop %v248
    %v579 = vmul.f32 %v248, %v578
    %vm580 = vcmp.eq.f32.partialorder %v248, inf
    %v581 = vsel %vm580, %v248, %v579
    %vm582 = vcmp.eq.f32.partialorder %v248, 0.0
    %v583 = vand.u32 %v248, 2147483648
    %v584 = vsel %vm582, %v583, %v581
    %v585 = vrsqrt.pop %v251
    %v586 = vmul.f32 %v251, %v585
    %vm587 = vcmp.eq.f32.partialorder %v251, inf
    %v588 = vsel %vm587, %v251, %v586
    %vm589 = vcmp.eq.f32.partialorder %v251, 0.0
    %v590 = vand.u32 %v251, 2147483648
    %v591 = vsel %vm589, %v590, %v588
    %v592 = vrsqrt.pop %v254
    %v593 = vmul.f32 %v254, %v592
    %vm594 = vcmp.eq.f32.partialorder %v254, inf
    %v595 = vsel %vm594, %v254, %v593
    %vm596 = vcmp.eq.f32.partialorder %v254, 0.0
    %v597 = vand.u32 %v254, 2147483648
    %v598 = vsel %vm596, %v597, %v595
    %v599 = vrsqrt.pop %v257
    %v600 = vmul.f32 %v257, %v599
    %vm601 = vcmp.eq.f32.partialorder %v257, inf
    %v602 = vsel %vm601, %v257, %v600
    %vm603 = vcmp.eq.f32.partialorder %v257, 0.0
    %v604 = vand.u32 %v257, 2147483648
    %v605 = vsel %vm603, %v604, %v602
    %v606 = vrsqrt.pop %v260
    %v607 = vmul.f32 %v260, %v606
    %vm608 = vcmp.eq.f32.partialorder %v260, inf
    %v609 = vsel %vm608, %v260, %v607
    %vm610 = vcmp.eq.f32.partialorder %v260, 0.0
    %v611 = vand.u32 %v260, 2147483648
    %v612 = vsel %vm610, %v611, %v609
    %v613 = vrsqrt.pop %v263
    %v614 = vmul.f32 %v263, %v613
    %vm615 = vcmp.eq.f32.partialorder %v263, inf
    %v616 = vsel %vm615, %v263, %v614
    %vm617 = vcmp.eq.f32.partialorder %v263, 0.0
    %v618 = vand.u32 %v263, 2147483648
    %v619 = vsel %vm617, %v618, %v616
    %v620 = vrsqrt.pop %v266
    %v621 = vmul.f32 %v266, %v620
    %vm622 = vcmp.eq.f32.partialorder %v266, inf
    %v623 = vsel %vm622, %v266, %v621
    %vm624 = vcmp.eq.f32.partialorder %v266, 0.0
    %v625 = vand.u32 %v266, 2147483648
    %v626 = vsel %vm624, %v625, %v623
    %v627 = vrsqrt.pop %v269
    %v628 = vmul.f32 %v269, %v627
    %vm629 = vcmp.eq.f32.partialorder %v269, inf
    %v630 = vsel %vm629, %v269, %v628
    %vm631 = vcmp.eq.f32.partialorder %v269, 0.0
    %v632 = vand.u32 %v269, 2147483648
    %v633 = vsel %vm631, %v632, %v630
    %v634 = vrsqrt.pop %v272
    %v635 = vmul.f32 %v272, %v634
    %vm636 = vcmp.eq.f32.partialorder %v272, inf
    %v637 = vsel %vm636, %v272, %v635
    %vm638 = vcmp.eq.f32.partialorder %v272, 0.0
    %v639 = vand.u32 %v272, 2147483648
    %v640 = vsel %vm638, %v639, %v637
    %v641 = vrsqrt.pop %v275
    %v642 = vmul.f32 %v275, %v641
    %vm643 = vcmp.eq.f32.partialorder %v275, inf
    %v644 = vsel %vm643, %v275, %v642
    %vm645 = vcmp.eq.f32.partialorder %v275, 0.0
    %v646 = vand.u32 %v275, 2147483648
    %v647 = vsel %vm645, %v646, %v644
    %v648 = vrsqrt.pop %v278
    %v649 = vmul.f32 %v278, %v648
    %vm650 = vcmp.eq.f32.partialorder %v278, inf
    %v651 = vsel %vm650, %v278, %v649
    %vm652 = vcmp.eq.f32.partialorder %v278, 0.0
    %v653 = vand.u32 %v278, 2147483648
    %v654 = vsel %vm652, %v653, %v651
    %v655 = vrsqrt.pop %v281
    %v656 = vmul.f32 %v281, %v655
    %vm657 = vcmp.eq.f32.partialorder %v281, inf
    %v658 = vsel %vm657, %v281, %v656
    %vm659 = vcmp.eq.f32.partialorder %v281, 0.0
    %v660 = vand.u32 %v281, 2147483648
    %v661 = vsel %vm659, %v660, %v658
    %v662 = vrsqrt.pop %v284
    %v663 = vmul.f32 %v284, %v662
    %vm664 = vcmp.eq.f32.partialorder %v284, inf
    %v665 = vsel %vm664, %v284, %v663
    %vm666 = vcmp.eq.f32.partialorder %v284, 0.0
    %v667 = vand.u32 %v284, 2147483648
    %v668 = vsel %vm666, %v667, %v665
    %v669 = vrsqrt.pop %v287
    %v670 = vmul.f32 %v287, %v669
    %vm671 = vcmp.eq.f32.partialorder %v287, inf
    %v672 = vsel %vm671, %v287, %v670
    %vm673 = vcmp.eq.f32.partialorder %v287, 0.0
    %v674 = vand.u32 %v287, 2147483648
    %v675 = vsel %vm673, %v674, %v672
    %v676 = vrsqrt.pop %v290
    %v677 = vmul.f32 %v290, %v676
    %vm678 = vcmp.eq.f32.partialorder %v290, inf
    %v679 = vsel %vm678, %v290, %v677
    %vm680 = vcmp.eq.f32.partialorder %v290, 0.0
    %v681 = vand.u32 %v290, 2147483648
    %v682 = vsel %vm680, %v681, %v679
    %v683 = vrsqrt.pop %v293
    %v684 = vmul.f32 %v293, %v683
    %vm685 = vcmp.eq.f32.partialorder %v293, inf
    %v686 = vsel %vm685, %v293, %v684
    %vm687 = vcmp.eq.f32.partialorder %v293, 0.0
    %v688 = vand.u32 %v293, 2147483648
    %v689 = vsel %vm687, %v688, %v686
    %v690 = vrsqrt.pop %v296
    %v691 = vmul.f32 %v296, %v690
    %vm692 = vcmp.eq.f32.partialorder %v296, inf
    %v693 = vsel %vm692, %v296, %v691
    %vm694 = vcmp.eq.f32.partialorder %v296, 0.0
    %v695 = vand.u32 %v296, 2147483648
    %v696 = vsel %vm694, %v695, %v693
    %v697 = vrsqrt.pop %v299
    %v698 = vmul.f32 %v299, %v697
    %vm699 = vcmp.eq.f32.partialorder %v299, inf
    %v700 = vsel %vm699, %v299, %v698
    %vm701 = vcmp.eq.f32.partialorder %v299, 0.0
    %v702 = vand.u32 %v299, 2147483648
    %v703 = vsel %vm701, %v702, %v700
    %v704 = vrsqrt.pop %v302
    %v705 = vmul.f32 %v302, %v704
    %vm706 = vcmp.eq.f32.partialorder %v302, inf
    %v707 = vsel %vm706, %v302, %v705
    %vm708 = vcmp.eq.f32.partialorder %v302, 0.0
    %v709 = vand.u32 %v302, 2147483648
    %v710 = vsel %vm708, %v709, %v707
    %v711 = vrsqrt.pop %v305
    %v712 = vmul.f32 %v305, %v711
    %vm713 = vcmp.eq.f32.partialorder %v305, inf
    %v714 = vsel %vm713, %v305, %v712
    %vm715 = vcmp.eq.f32.partialorder %v305, 0.0
    %v716 = vand.u32 %v305, 2147483648
    %v717 = vsel %vm715, %v716, %v714
    %v718 = vrsqrt.pop %v308
    %v719 = vmul.f32 %v308, %v718
    %vm720 = vcmp.eq.f32.partialorder %v308, inf
    %v721 = vsel %vm720, %v308, %v719
    %vm722 = vcmp.eq.f32.partialorder %v308, 0.0
    %v723 = vand.u32 %v308, 2147483648
    %v724 = vsel %vm722, %v723, %v721
    %v725 = vrsqrt.pop %v311
    %v726 = vmul.f32 %v311, %v725
    %vm727 = vcmp.eq.f32.partialorder %v311, inf
    %v728 = vsel %vm727, %v311, %v726
    %vm729 = vcmp.eq.f32.partialorder %v311, 0.0
    %v730 = vand.u32 %v311, 2147483648
    %v731 = vsel %vm729, %v730, %v728
    %v732 = vrsqrt.pop %v314
    %v733 = vmul.f32 %v314, %v732
    %vm734 = vcmp.eq.f32.partialorder %v314, inf
    %v735 = vsel %vm734, %v314, %v733
    %vm736 = vcmp.eq.f32.partialorder %v314, 0.0
    %v737 = vand.u32 %v314, 2147483648
    %v738 = vsel %vm736, %v737, %v735
    %v739 = vrsqrt.pop %v317
    %v740 = vmul.f32 %v317, %v739
    %vm741 = vcmp.eq.f32.partialorder %v317, inf
    %v742 = vsel %vm741, %v317, %v740
    %vm743 = vcmp.eq.f32.partialorder %v317, 0.0
    %v744 = vand.u32 %v317, 2147483648
    %v745 = vsel %vm743, %v744, %v742
    %v746 = vrsqrt.pop %v320
    %v747 = vmul.f32 %v320, %v746
    %vm748 = vcmp.eq.f32.partialorder %v320, inf
    %v749 = vsel %vm748, %v320, %v747
    %vm750 = vcmp.eq.f32.partialorder %v320, 0.0
    %v751 = vand.u32 %v320, 2147483648
    %v752 = vsel %vm750, %v751, %v749
    %v753 = vrsqrt.pop %v323
    %v754 = vmul.f32 %v323, %v753
    %vm755 = vcmp.eq.f32.partialorder %v323, inf
    %v756 = vsel %vm755, %v323, %v754
    %vm757 = vcmp.eq.f32.partialorder %v323, 0.0
    %v758 = vand.u32 %v323, 2147483648
    %v759 = vsel %vm757, %v758, %v756
    %v760 = vrsqrt.pop %v326
    %v761 = vmul.f32 %v326, %v760
    %vm762 = vcmp.eq.f32.partialorder %v326, inf
    %v763 = vsel %vm762, %v326, %v761
    %vm764 = vcmp.eq.f32.partialorder %v326, 0.0
    %v765 = vand.u32 %v326, 2147483648
    %v766 = vsel %vm764, %v765, %v763
    %v767 = vrsqrt.pop %v329
    %v768 = vmul.f32 %v329, %v767
    %vm769 = vcmp.eq.f32.partialorder %v329, inf
    %v770 = vsel %vm769, %v329, %v768
    %vm771 = vcmp.eq.f32.partialorder %v329, 0.0
    %v772 = vand.u32 %v329, 2147483648
    %v773 = vsel %vm771, %v772, %v770
    %v774 = vrsqrt.pop %v332
    %v775 = vmul.f32 %v332, %v774
    %vm776 = vcmp.eq.f32.partialorder %v332, inf
    %v777 = vsel %vm776, %v332, %v775
    %vm778 = vcmp.eq.f32.partialorder %v332, 0.0
    %v779 = vand.u32 %v332, 2147483648
    %v780 = vsel %vm778, %v779, %v777
    %v781 = vadd.f32 %v339, 1e-07
    %v782 = vadd.f32 %v346, 1e-07
    %v783 = vadd.f32 %v353, 1e-07
    %v784 = vadd.f32 %v360, 1e-07
    %v785 = vadd.f32 %v367, 1e-07
    %v786 = vadd.f32 %v374, 1e-07
    %v787 = vadd.f32 %v381, 1e-07
    %v788 = vadd.f32 %v388, 1e-07
    %v789 = vadd.f32 %v395, 1e-07
    %v790 = vadd.f32 %v402, 1e-07
    %v791 = vadd.f32 %v409, 1e-07
    %v792 = vadd.f32 %v416, 1e-07
    %v793 = vadd.f32 %v423, 1e-07
    %v794 = vadd.f32 %v430, 1e-07
    %v795 = vadd.f32 %v437, 1e-07
    %v796 = vadd.f32 %v444, 1e-07
    %v797 = vadd.f32 %v451, 1e-07
    %v798 = vadd.f32 %v458, 1e-07
    %v799 = vadd.f32 %v465, 1e-07
    %v800 = vadd.f32 %v472, 1e-07
    %v801 = vadd.f32 %v479, 1e-07
    %v802 = vadd.f32 %v486, 1e-07
    %v803 = vadd.f32 %v493, 1e-07
    %v804 = vadd.f32 %v500, 1e-07
    %v805 = vadd.f32 %v507, 1e-07
    %v806 = vadd.f32 %v514, 1e-07
    %v807 = vadd.f32 %v521, 1e-07
    %v808 = vadd.f32 %v528, 1e-07
    %v809 = vadd.f32 %v535, 1e-07
    %v810 = vadd.f32 %v542, 1e-07
    %v811 = vadd.f32 %v549, 1e-07
    %v812 = vadd.f32 %v556, 1e-07
    %v813 = vadd.f32 %v563, 1e-07
    %v814 = vadd.f32 %v570, 1e-07
    %v815 = vadd.f32 %v577, 1e-07
    %v816 = vadd.f32 %v584, 1e-07
    %v817 = vadd.f32 %v591, 1e-07
    %v818 = vadd.f32 %v598, 1e-07
    %v819 = vadd.f32 %v605, 1e-07
    %v820 = vadd.f32 %v612, 1e-07
    %v821 = vadd.f32 %v619, 1e-07
    %v822 = vadd.f32 %v626, 1e-07
    %v823 = vadd.f32 %v633, 1e-07
    %v824 = vadd.f32 %v640, 1e-07
    %v825 = vadd.f32 %v647, 1e-07
    %v826 = vadd.f32 %v654, 1e-07
    %v827 = vadd.f32 %v661, 1e-07
    %v828 = vadd.f32 %v668, 1e-07
    %v829 = vadd.f32 %v675, 1e-07
    %v830 = vadd.f32 %v682, 1e-07
    %v831 = vadd.f32 %v689, 1e-07
    %v832 = vadd.f32 %v696, 1e-07
    %v833 = vadd.f32 %v703, 1e-07
    %v834 = vadd.f32 %v710, 1e-07
    %v835 = vadd.f32 %v717, 1e-07
    %v836 = vadd.f32 %v724, 1e-07
    %v837 = vadd.f32 %v731, 1e-07
    %v838 = vadd.f32 %v738, 1e-07
    %v839 = vadd.f32 %v745, 1e-07
    %v840 = vadd.f32 %v752, 1e-07
    %v841 = vadd.f32 %v759, 1e-07
    %v842 = vadd.f32 %v766, 1e-07
    %v843 = vadd.f32 %v773, 1e-07
    %v844 = vadd.f32 %v780, 1e-07
    %v845 = vrcp.pop %v781
    %v846 = vmul.f32 1.0, %v845
    %v847 = vrcp.pop %v782
    %v848 = vmul.f32 1.0, %v847
    %v849 = vrcp.pop %v783
    %v850 = vmul.f32 1.0, %v849
    %v851 = vrcp.pop %v784
    %v852 = vmul.f32 1.0, %v851
    %v853 = vrcp.pop %v785
    %v854 = vmul.f32 1.0, %v853
    %v855 = vrcp.pop %v786
    %v856 = vmul.f32 1.0, %v855
    %v857 = vrcp.pop %v787
    %v858 = vmul.f32 1.0, %v857
    %v859 = vrcp.pop %v788
    %v860 = vmul.f32 1.0, %v859
    %v861 = vrcp.pop %v789
    %v862 = vmul.f32 1.0, %v861
    %v863 = vrcp.pop %v790
    %v864 = vmul.f32 1.0, %v863
    %v865 = vrcp.pop %v791
    %v866 = vmul.f32 1.0, %v865
    %v867 = vrcp.pop %v792
    %v868 = vmul.f32 1.0, %v867
    %v869 = vrcp.pop %v793
    %v870 = vmul.f32 1.0, %v869
    %v871 = vrcp.pop %v794
    %v872 = vmul.f32 1.0, %v871
    %v873 = vrcp.pop %v795
    %v874 = vmul.f32 1.0, %v873
    %v875 = vrcp.pop %v796
    %v876 = vmul.f32 1.0, %v875
    %v877 = vrcp.pop %v797
    %v878 = vmul.f32 1.0, %v877
    %v879 = vrcp.pop %v798
    %v880 = vmul.f32 1.0, %v879
    %v881 = vrcp.pop %v799
    %v882 = vmul.f32 1.0, %v881
    %v883 = vrcp.pop %v800
    %v884 = vmul.f32 1.0, %v883
    %v885 = vrcp.pop %v801
    %v886 = vmul.f32 1.0, %v885
    %v887 = vrcp.pop %v802
    %v888 = vmul.f32 1.0, %v887
    %v889 = vrcp.pop %v803
    %v890 = vmul.f32 1.0, %v889
    %v891 = vrcp.pop %v804
    %v892 = vmul.f32 1.0, %v891
    %v893 = vrcp.pop %v805
    %v894 = vmul.f32 1.0, %v893
    %v895 = vrcp.pop %v806
    %v896 = vmul.f32 1.0, %v895
    %v897 = vrcp.pop %v807
    %v898 = vmul.f32 1.0, %v897
    %v899 = vrcp.pop %v808
    %v900 = vmul.f32 1.0, %v899
    %v901 = vrcp.pop %v809
    %v902 = vmul.f32 1.0, %v901
    %v903 = vrcp.pop %v810
    %v904 = vmul.f32 1.0, %v903
    %v905 = vrcp.pop %v811
    %v906 = vmul.f32 1.0, %v905
    %v907 = vrcp.pop %v812
    %v908 = vmul.f32 1.0, %v907
    %v909 = vrcp.pop %v813
    %v910 = vmul.f32 1.0, %v909
    %v911 = vrcp.pop %v814
    %v912 = vmul.f32 1.0, %v911
    %v913 = vrcp.pop %v815
    %v914 = vmul.f32 1.0, %v913
    %v915 = vrcp.pop %v816
    %v916 = vmul.f32 1.0, %v915
    %v917 = vrcp.pop %v817
    %v918 = vmul.f32 1.0, %v917
    %v919 = vrcp.pop %v818
    %v920 = vmul.f32 1.0, %v919
    %v921 = vrcp.pop %v819
    %v922 = vmul.f32 1.0, %v921
    %v923 = vrcp.pop %v820
    %v924 = vmul.f32 1.0, %v923
    %v925 = vrcp.pop %v821
    %v926 = vmul.f32 1.0, %v925
    %v927 = vrcp.pop %v822
    %v928 = vmul.f32 1.0, %v927
    %v929 = vrcp.pop %v823
    %v930 = vmul.f32 1.0, %v929
    %v931 = vrcp.pop %v824
    %v932 = vmul.f32 1.0, %v931
    %v933 = vrcp.pop %v825
    %v934 = vmul.f32 1.0, %v933
    %v935 = vrcp.pop %v826
    %v936 = vmul.f32 1.0, %v935
    %v937 = vrcp.pop %v827
    %v938 = vmul.f32 1.0, %v937
    %v939 = vrcp.pop %v828
    %v940 = vmul.f32 1.0, %v939
    %v941 = vrcp.pop %v829
    %v942 = vmul.f32 1.0, %v941
    %v943 = vrcp.pop %v830
    %v944 = vmul.f32 1.0, %v943
    %v945 = vrcp.pop %v831
    %v946 = vmul.f32 1.0, %v945
    %v947 = vrcp.pop %v832
    %v948 = vmul.f32 1.0, %v947
    %v949 = vrcp.pop %v833
    %v950 = vmul.f32 1.0, %v949
    %v951 = vrcp.pop %v834
    %v952 = vmul.f32 1.0, %v951
    %v953 = vrcp.pop %v835
    %v954 = vmul.f32 1.0, %v953
    %v955 = vrcp.pop %v836
    %v956 = vmul.f32 1.0, %v955
    %v957 = vrcp.pop %v837
    %v958 = vmul.f32 1.0, %v957
    %v959 = vrcp.pop %v838
    %v960 = vmul.f32 1.0, %v959
    %v961 = vrcp.pop %v839
    %v962 = vmul.f32 1.0, %v961
    %v963 = vrcp.pop %v840
    %v964 = vmul.f32 1.0, %v963
    %v965 = vrcp.pop %v841
    %v966 = vmul.f32 1.0, %v965
    %v967 = vrcp.pop %v842
    %v968 = vmul.f32 1.0, %v967
    %v969 = vrcp.pop %v843
    %v970 = vmul.f32 1.0, %v969
    %v971 = vrcp.pop %v844
    %v972 = vmul.f32 1.0, %v971
    %v973 = vmul.f32 %v12, %v846
    %v974 = vmul.f32 %v13, %v848
    %v975 = vmul.f32 %v14, %v850
    %v976 = vmul.f32 %v15, %v852
    %v977 = vmul.f32 %v16, %v854
    %v978 = vmul.f32 %v17, %v856
    %v979 = vmul.f32 %v18, %v858
    %v980 = vmul.f32 %v19, %v860
    %v981 = vmul.f32 %v20, %v862
    %v982 = vmul.f32 %v21, %v864
    %v983 = vmul.f32 %v22, %v866
    %v984 = vmul.f32 %v23, %v868
    %v985 = vmul.f32 %v24, %v870
    %v986 = vmul.f32 %v25, %v872
    %v987 = vmul.f32 %v26, %v874
    %v988 = vmul.f32 %v27, %v876
    %v989 = vmul.f32 %v28, %v878
    %v990 = vmul.f32 %v29, %v880
    %v991 = vmul.f32 %v30, %v882
    %v992 = vmul.f32 %v31, %v884
    %v993 = vmul.f32 %v32, %v886
    %v994 = vmul.f32 %v33, %v888
    %v995 = vmul.f32 %v34, %v890
    %v996 = vmul.f32 %v35, %v892
    %v997 = vmul.f32 %v36, %v894
    %v998 = vmul.f32 %v37, %v896
    %v999 = vmul.f32 %v38, %v898
    %v1000 = vmul.f32 %v39, %v900
    %v1001 = vmul.f32 %v40, %v902
    %v1002 = vmul.f32 %v41, %v904
    %v1003 = vmul.f32 %v42, %v906
    %v1004 = vmul.f32 %v43, %v908
    %v1005 = vmul.f32 %v44, %v910
    %v1006 = vmul.f32 %v45, %v912
    %v1007 = vmul.f32 %v46, %v914
    %v1008 = vmul.f32 %v47, %v916
    %v1009 = vmul.f32 %v48, %v918
    %v1010 = vmul.f32 %v49, %v920
    %v1011 = vmul.f32 %v50, %v922
    %v1012 = vmul.f32 %v51, %v924
    %v1013 = vmul.f32 %v52, %v926
    %v1014 = vmul.f32 %v53, %v928
    %v1015 = vmul.f32 %v54, %v930
    %v1016 = vmul.f32 %v55, %v932
    %v1017 = vmul.f32 %v56, %v934
    %v1018 = vmul.f32 %v57, %v936
    %v1019 = vmul.f32 %v58, %v938
    %v1020 = vmul.f32 %v59, %v940
    %v1021 = vmul.f32 %v60, %v942
    %v1022 = vmul.f32 %v61, %v944
    %v1023 = vmul.f32 %v62, %v946
    %v1024 = vmul.f32 %v63, %v948
    %v1025 = vmul.f32 %v64, %v950
    %v1026 = vmul.f32 %v65, %v952
    %v1027 = vmul.f32 %v66, %v954
    %v1028 = vmul.f32 %v67, %v956
    %v1029 = vmul.f32 %v68, %v958
    %v1030 = vmul.f32 %v69, %v960
    %v1031 = vmul.f32 %v70, %v962
    %v1032 = vmul.f32 %v71, %v964
    %v1033 = vmul.f32 %v72, %v966
    %v1034 = vmul.f32 %v73, %v968
    %v1035 = vmul.f32 %v74, %v970
    %v1036 = vmul.f32 %v75, %v972
    %v1037 = vld [vmem:[%s1] sm:$0xf]
    %v1039 = vsel %vm140, %v973, 0
    %v1042 = vsel %vm140, %v974, 0
    %v1045 = vsel %vm140, %v975, 0
    %v1048 = vsel %vm140, %v976, 0
    %v1051 = vsel %vm140, %v977, 0
    %v1054 = vsel %vm140, %v978, 0
    %v1057 = vsel %vm140, %v979, 0
    %v1060 = vsel %vm140, %v980, 0
    %v1063 = vsel %vm140, %v981, 0
    %v1066 = vsel %vm140, %v982, 0
    %v1069 = vsel %vm140, %v983, 0
    %v1072 = vsel %vm140, %v984, 0
    %v1075 = vsel %vm140, %v985, 0
    %v1078 = vsel %vm140, %v986, 0
    %v1081 = vsel %vm140, %v987, 0
    %v1084 = vsel %vm140, %v988, 0
    %v1087 = vsel %vm140, %v989, 0
    %v1090 = vsel %vm140, %v990, 0
    %v1093 = vsel %vm140, %v991, 0
    %v1096 = vsel %vm140, %v992, 0
    %v1099 = vsel %vm140, %v993, 0
    %v1102 = vsel %vm140, %v994, 0
    %v1105 = vsel %vm140, %v995, 0
    %v1108 = vsel %vm140, %v996, 0
    %v1111 = vsel %vm140, %v997, 0
    %v1114 = vsel %vm140, %v998, 0
    %v1117 = vsel %vm140, %v999, 0
    %v1120 = vsel %vm140, %v1000, 0
    %v1123 = vsel %vm140, %v1001, 0
    %v1126 = vsel %vm140, %v1002, 0
    %v1129 = vsel %vm140, %v1003, 0
    %v1132 = vsel %vm140, %v1004, 0
    %v1135 = vsel %vm140, %v1005, 0
    %v1138 = vsel %vm140, %v1006, 0
    %v1141 = vsel %vm140, %v1007, 0
    %v1144 = vsel %vm140, %v1008, 0
    %v1147 = vsel %vm140, %v1009, 0
    %v1150 = vsel %vm140, %v1010, 0
    %v1153 = vsel %vm140, %v1011, 0
    %v1156 = vsel %vm140, %v1012, 0
    %v1159 = vsel %vm140, %v1013, 0
    %v1162 = vsel %vm140, %v1014, 0
    %v1165 = vsel %vm140, %v1015, 0
    %v1168 = vsel %vm140, %v1016, 0
    %v1171 = vsel %vm140, %v1017, 0
    %v1174 = vsel %vm140, %v1018, 0
    %v1177 = vsel %vm140, %v1019, 0
    %v1180 = vsel %vm140, %v1020, 0
    %v1183 = vsel %vm140, %v1021, 0
    %v1186 = vsel %vm140, %v1022, 0
    %v1189 = vsel %vm140, %v1023, 0
    %v1192 = vsel %vm140, %v1024, 0
    %v1195 = vsel %vm140, %v1025, 0
    %v1198 = vsel %vm140, %v1026, 0
    %v1201 = vsel %vm140, %v1027, 0
    %v1204 = vsel %vm140, %v1028, 0
    %v1207 = vsel %vm140, %v1029, 0
    %v1210 = vsel %vm140, %v1030, 0
    %v1213 = vsel %vm140, %v1031, 0
    %v1216 = vsel %vm140, %v1032, 0
    %v1219 = vsel %vm140, %v1033, 0
    %v1222 = vsel %vm140, %v1034, 0
    %v1225 = vsel %vm140, %v1035, 0
    %v1228 = vsel %vm140, %v1036, 0
    %vm1230 = vcmask 1043456
    %v1232 = vsel %vm1230, %v1037, 0
    %1234 = vmatprep.subr.mxu0 0.0
    %v1235 = vand.u32 %v1232, 4294901760
    %1236 = vmatpush1.msra.mxu0 %v1235
    %1237 = vmatprep.subr.mxu0 0.0
    %1238 = vmatpush1.msra.mxu0 0.0
    %1239 = vmatprep.subr.mxu0 0.0
    %1240 = vmatpush1.msra.mxu0 0.0
    %1241 = vmatprep.subr.mxu0 0.0
    %1242 = vmatpush1.msra.mxu0 0.0
    %1243 = vmatprep.subr.mxu0 0.0
    %1244 = vmatpush1.msra.mxu0 0.0
    %1245 = vmatprep.subr.mxu0 0.0
    %1246 = vmatpush1.msra.mxu0 0.0
    %1247 = vmatprep.subr.mxu0 0.0
    %1248 = vmatpush1.msra.mxu0 0.0
    %1249 = vmatprep.subr.mxu0 0.0
    %1250 = vmatpush1.msra.mxu0 0.0
    %1251 = vmatprep.subr.mxu0 0.0
    %1252 = vmatpush1.msra.mxu0 0.0
    %1253 = vmatprep.subr.mxu0 0.0
    %1254 = vmatpush1.msra.mxu0 0.0
    %1255 = vmatprep.subr.mxu0 0.0
    %1256 = vmatpush1.msra.mxu0 0.0
    %1257 = vmatprep.subr.mxu0 0.0
    %1258 = vmatpush1.msra.mxu0 0.0
    %1259 = vmatprep.subr.mxu0 0.0
    %1260 = vmatpush1.msra.mxu0 0.0
    %1261 = vmatprep.subr.mxu0 0.0
    %1262 = vmatpush1.msra.mxu0 0.0
    %1263 = vmatprep.subr.mxu0 0.0
    %1264 = vmatpush1.msra.mxu0 0.0
    %1265 = vmatprep.subr.mxu0 0.0
    %1266 = vmatpush1.msra.mxu0 0.0
    %1267 = vmatprep.subr.mxu0 0.0
    %1268 = vmatpush1.msra.mxu0 0.0
    %1269 = vmatprep.subr.mxu0 0.0
    %1270 = vmatpush1.msra.mxu0 0.0
    %1271 = vmatprep.subr.mxu0 0.0
    %1272 = vmatpush1.msra.mxu0 0.0
    %1273 = vmatprep.subr.mxu0 0.0
    %1274 = vmatpush1.msra.mxu0 0.0
    %1275 = vmatprep.subr.mxu0 0.0
    %1276 = vmatpush1.msra.mxu0 0.0
    %1277 = vmatprep.subr.mxu0 0.0
    %1278 = vmatpush1.msra.mxu0 0.0
    %1279 = vmatprep.subr.mxu0 0.0
    %1280 = vmatpush1.msra.mxu0 0.0
    %1281 = vmatprep.subr.mxu0 0.0
    %1282 = vmatpush1.msra.mxu0 0.0
    %1283 = vmatprep.subr.mxu0 0.0
    %1284 = vmatpush1.msra.mxu0 0.0
    %1285 = vmatprep.subr.mxu0 0.0
    %1286 = vmatpush1.msra.mxu0 0.0
    %1287 = vmatprep.subr.mxu0 0.0
    %1288 = vmatpush1.msra.mxu0 0.0
    %1289 = vmatprep.subr.mxu0 0.0
    %1290 = vmatpush1.msra.mxu0 0.0
    %1291 = vmatprep.subr.mxu0 0.0
    %1292 = vmatpush1.msra.mxu0 0.0
    %1293 = vmatprep.subr.mxu0 0.0
    %1294 = vmatpush1.msra.mxu0 0.0
    %1295 = vmatprep.subr.mxu0 0.0
    %1296 = vmatpush1.msra.mxu0 0.0
    %1297 = vmatprep.subr.mxu0 0.0
    %1298 = vmatpush1.msra.mxu0 0.0
    %1299 = vmatprep.mubr.f32.mxu0 0.0
    %v1300 = vand.u32 %v1039, 4294901760
    %v1301 = vsub.f32 %v1039, %v1300
    %v1302 = vand.u32 %v1301, 4294901760
    %v1303 = vsub.f32 %v1301, %v1302
    %v1304 = vand.u32 %v1303, 4294901760
    %1305 = vmatmul.mubr.f32.gmra.mrb[0].mxu0 %v1304
    %v1306 = vpop.f32.mrb[0].mxu0
    %v1307 = vadd.f32 0.0, %v1306
    %v1308 = vpop.f32.mrb[0].mxu0
    %1309 = vmatprep.mubr.f32.mxu0 0.0
    %v1310 = vand.u32 %v1042, 4294901760
    %v1311 = vsub.f32 %v1042, %v1310
    %v1312 = vand.u32 %v1311, 4294901760
    %v1313 = vsub.f32 %v1311, %v1312
    %v1314 = vand.u32 %v1313, 4294901760
    %1315 = vmatmul.mubr.f32.gmra.mrb[0].mxu0 %v1314
    %v1316 = vpop.f32.mrb[0].mxu0
    %v1317 = vadd.f32 0.0, %v1316
    %v1318 = vpop.f32.mrb[0].mxu0
    %1319 = vmatprep.mubr.f32.mxu0 0.0
    %v1320 = vand.u32 %v1045, 4294901760
    %v1321 = vsub.f32 %v1045, %v1320
    %v1322 = vand.u32 %v1321, 4294901760
    %v1323 = vsub.f32 %v1321, %v1322
    %v1324 = vand.u32 %v1323, 4294901760
    %1325 = vmatmul.mubr.f32.gmra.mrb[0].mxu0 %v1324
    %v1326 = vpop.f32.mrb[0].mxu0
    %v1327 = vadd.f32 0.0, %v1326
    %v1328 = vpop.f32.mrb[0].mxu0
    %1329 = vmatprep.mubr.f32.mxu0 0.0
    %v1330 = vand.u32 %v1048, 4294901760
    %v1331 = vsub.f32 %v1048, %v1330
    %v1332 = vand.u32 %v1331, 4294901760
    %v1333 = vsub.f32 %v1331, %v1332
    %v1334 = vand.u32 %v1333, 4294901760
    %1335 = vmatmul.mubr.f32.gmra.mrb[0].mxu0 %v1334
    %v1336 = vpop.f32.mrb[0].mxu0
    %v1337 = vadd.f32 0.0, %v1336
    %v1338 = vpop.f32.mrb[0].mxu0
    %1339 = vmatprep.mubr.f32.mxu0 0.0
    %v1340 = vand.u32 %v1051, 4294901760
    %v1341 = vsub.f32 %v1051, %v1340
    %v1342 = vand.u32 %v1341, 4294901760
    %v1343 = vsub.f32 %v1341, %v1342
    %v1344 = vand.u32 %v1343, 4294901760
    %1345 = vmatmul.mubr.f32.gmra.mrb[0].mxu0 %v1344
    %v1346 = vpop.f32.mrb[0].mxu0
    %v1347 = vadd.f32 0.0, %v1346
    %v1348 = vpop.f32.mrb[0].mxu0
    %1349 = vmatprep.mubr.f32.mxu0 0.0
    %v1350 = vand.u32 %v1054, 4294901760
    %v1351 = vsub.f32 %v1054, %v1350
    %v1352 = vand.u32 %v1351, 4294901760
    %v1353 = vsub.f32 %v1351, %v1352
    %v1354 = vand.u32 %v1353, 4294901760
    %1355 = vmatmul.mubr.f32.gmra.mrb[0].mxu0 %v1354
    %v1356 = vpop.f32.mrb[0].mxu0
    %v1357 = vadd.f32 0.0, %v1356
    %v1358 = vpop.f32.mrb[0].mxu0
    %1359 = vmatprep.mubr.f32.mxu0 0.0
    %v1360 = vand.u32 %v1057, 4294901760
    %v1361 = vsub.f32 %v1057, %v1360
    %v1362 = vand.u32 %v1361, 4294901760
    %v1363 = vsub.f32 %v1361, %v1362
    %v1364 = vand.u32 %v1363, 4294901760
    %1365 = vmatmul.mubr.f32.gmra.mrb[0].mxu0 %v1364
    %v1366 = vpop.f32.mrb[0].mxu0
    %v1367 = vadd.f32 0.0, %v1366
    %v1368 = vpop.f32.mrb[0].mxu0
    %1369 = vmatprep.mubr.f32.mxu0 0.0
    %v1370 = vand.u32 %v1060, 4294901760
    %v1371 = vsub.f32 %v1060, %v1370
    %v1372 = vand.u32 %v1371, 4294901760
    %v1373 = vsub.f32 %v1371, %v1372
    %v1374 = vand.u32 %v1373, 4294901760
    %1375 = vmatmul.mubr.f32.gmra.mrb[0].mxu0 %v1374
    %v1376 = vpop.f32.mrb[0].mxu0
    %v1377 = vadd.f32 0.0, %v1376
    %v1378 = vpop.f32.mrb[0].mxu0
    %1379 = vmatprep.mubr.f32.mxu0 0.0
    %v1380 = vand.u32 %v1063, 4294901760
    %v1381 = vsub.f32 %v1063, %v1380
    %v1382 = vand.u32 %v1381, 4294901760
    %v1383 = vsub.f32 %v1381, %v1382
    %v1384 = vand.u32 %v1383, 4294901760
    %1385 = vmatmul.mubr.f32.gmra.mrb[0].mxu0 %v1384
    %v1386 = vpop.f32.mrb[0].mxu0
    %v1387 = vadd.f32 0.0, %v1386
    %v1388 = vpop.f32.mrb[0].mxu0
    %1389 = vmatprep.mubr.f32.mxu0 0.0
    %v1390 = vand.u32 %v1066, 4294901760
    %v1391 = vsub.f32 %v1066, %v1390
    %v1392 = vand.u32 %v1391, 4294901760
    %v1393 = vsub.f32 %v1391, %v1392
    %v1394 = vand.u32 %v1393, 4294901760
    %1395 = vmatmul.mubr.f32.gmra.mrb[0].mxu0 %v1394
    %v1396 = vpop.f32.mrb[0].mxu0
    %v1397 = vadd.f32 0.0, %v1396
    %v1398 = vpop.f32.mrb[0].mxu0
    %1399 = vmatprep.mubr.f32.mxu0 0.0
    %v1400 = vand.u32 %v1069, 4294901760
    %v1401 = vsub.f32 %v1069, %v1400
    %v1402 = vand.u32 %v1401, 4294901760
    %v1403 = vsub.f32 %v1401, %v1402
    %v1404 = vand.u32 %v1403, 4294901760
    %1405 = vmatmul.mubr.f32.gmra.mrb[0].mxu0 %v1404
    %v1406 = vpop.f32.mrb[0].mxu0
    %v1407 = vadd.f32 0.0, %v1406
    %v1408 = vpop.f32.mrb[0].mxu0
    %1409 = vmatprep.mubr.f32.mxu0 0.0
    %v1410 = vand.u32 %v1072, 4294901760
    %v1411 = vsub.f32 %v1072, %v1410
    %v1412 = vand.u32 %v1411, 4294901760
    %v1413 = vsub.f32 %v1411, %v1412
    %v1414 = vand.u32 %v1413, 4294901760
    %1415 = vmatmul.mubr.f32.gmra.mrb[0].mxu0 %v1414
    %v1416 = vpop.f32.mrb[0].mxu0
    %v1417 = vadd.f32 0.0, %v1416
    %v1418 = vpop.f32.mrb[0].mxu0
    %1419 = vmatprep.mubr.f32.mxu0 0.0
    %v1420 = vand.u32 %v1075, 4294901760
    %v1421 = vsub.f32 %v1075, %v1420
    %v1422 = vand.u32 %v1421, 4294901760
    %v1423 = vsub.f32 %v1421, %v1422
    %v1424 = vand.u32 %v1423, 4294901760
    %1425 = vmatmul.mubr.f32.gmra.mrb[0].mxu0 %v1424
    %v1426 = vpop.f32.mrb[0].mxu0
    %v1427 = vadd.f32 0.0, %v1426
    %v1428 = vpop.f32.mrb[0].mxu0
    %1429 = vmatprep.mubr.f32.mxu0 0.0
    %v1430 = vand.u32 %v1078, 4294901760
    %v1431 = vsub.f32 %v1078, %v1430
    %v1432 = vand.u32 %v1431, 4294901760
    %v1433 = vsub.f32 %v1431, %v1432
    %v1434 = vand.u32 %v1433, 4294901760
    %1435 = vmatmul.mubr.f32.gmra.mrb[0].mxu0 %v1434
    %v1436 = vpop.f32.mrb[0].mxu0
    %v1437 = vadd.f32 0.0, %v1436
    %v1438 = vpop.f32.mrb[0].mxu0
    %1439 = vmatprep.mubr.f32.mxu0 0.0
    %v1440 = vand.u32 %v1081, 4294901760
    %v1441 = vsub.f32 %v1081, %v1440
    %v1442 = vand.u32 %v1441, 4294901760
    %v1443 = vsub.f32 %v1441, %v1442
    %v1444 = vand.u32 %v1443, 4294901760
    %1445 = vmatmul.mubr.f32.gmra.mrb[0].mxu0 %v1444
    %v1446 = vpop.f32.mrb[0].mxu0
    %v1447 = vadd.f32 0.0, %v1446
    %v1448 = vpop.f32.mrb[0].mxu0
    %1449 = vmatprep.mubr.f32.mxu0 0.0
    %v1450 = vand.u32 %v1084, 4294901760
    %v1451 = vsub.f32 %v1084, %v1450
    %v1452 = vand.u32 %v1451, 4294901760
    %v1453 = vsub.f32 %v1451, %v1452
    %v1454 = vand.u32 %v1453, 4294901760
    %1455 = vmatmul.mubr.f32.gmra.mrb[0].mxu0 %v1454
    %v1456 = vpop.f32.mrb[0].mxu0
    %v1457 = vadd.f32 0.0, %v1456
    %v1458 = vpop.f32.mrb[0].mxu0
    %1459 = vmatprep.mubr.f32.mxu0 0.0
    %v1460 = vand.u32 %v1087, 4294901760
    %v1461 = vsub.f32 %v1087, %v1460
    %v1462 = vand.u32 %v1461, 4294901760
    %v1463 = vsub.f32 %v1461, %v1462
    %v1464 = vand.u32 %v1463, 4294901760
    %1465 = vmatmul.mubr.f32.gmra.mrb[0].mxu0 %v1464
    %v1466 = vpop.f32.mrb[0].mxu0
    %v1467 = vadd.f32 0.0, %v1466
    %v1468 = vpop.f32.mrb[0].mxu0
    %1469 = vmatprep.mubr.f32.mxu0 0.0
    %v1470 = vand.u32 %v1090, 4294901760
    %v1471 = vsub.f32 %v1090, %v1470
    %v1472 = vand.u32 %v1471, 4294901760
    %v1473 = vsub.f32 %v1471, %v1472
    %v1474 = vand.u32 %v1473, 4294901760
    %1475 = vmatmul.mubr.f32.gmra.mrb[0].mxu0 %v1474
    %v1476 = vpop.f32.mrb[0].mxu0
    %v1477 = vadd.f32 0.0, %v1476
    %v1478 = vpop.f32.mrb[0].mxu0
    %1479 = vmatprep.mubr.f32.mxu0 0.0
    %v1480 = vand.u32 %v1093, 4294901760
    %v1481 = vsub.f32 %v1093, %v1480
    %v1482 = vand.u32 %v1481, 4294901760
    %v1483 = vsub.f32 %v1481, %v1482
    %v1484 = vand.u32 %v1483, 4294901760
    %1485 = vmatmul.mubr.f32.gmra.mrb[0].mxu0 %v1484
    %v1486 = vpop.f32.mrb[0].mxu0
    %v1487 = vadd.f32 0.0, %v1486
    %v1488 = vpop.f32.mrb[0].mxu0
    %1489 = vmatprep.mubr.f32.mxu0 0.0
    %v1490 = vand.u32 %v1096, 4294901760
    %v1491 = vsub.f32 %v1096, %v1490
    %v1492 = vand.u32 %v1491, 4294901760
    %v1493 = vsub.f32 %v1491, %v1492
    %v1494 = vand.u32 %v1493, 4294901760
    %1495 = vmatmul.mubr.f32.gmra.mrb[0].mxu0 %v1494
    %v1496 = vpop.f32.mrb[0].mxu0
    %v1497 = vadd.f32 0.0, %v1496
    %v1498 = vpop.f32.mrb[0].mxu0
    %1499 = vmatprep.mubr.f32.mxu0 0.0
    %v1500 = vand.u32 %v1099, 4294901760
    %v1501 = vsub.f32 %v1099, %v1500
    %v1502 = vand.u32 %v1501, 4294901760
    %v1503 = vsub.f32 %v1501, %v1502
    %v1504 = vand.u32 %v1503, 4294901760
    %1505 = vmatmul.mubr.f32.gmra.mrb[0].mxu0 %v1504
    %v1506 = vpop.f32.mrb[0].mxu0
    %v1507 = vadd.f32 0.0, %v1506
    %v1508 = vpop.f32.mrb[0].mxu0
    %1509 = vmatprep.mubr.f32.mxu0 0.0
    %v1510 = vand.u32 %v1102, 4294901760
    %v1511 = vsub.f32 %v1102, %v1510
    %v1512 = vand.u32 %v1511, 4294901760
    %v1513 = vsub.f32 %v1511, %v1512
    %v1514 = vand.u32 %v1513, 4294901760
    %1515 = vmatmul.mubr.f32.gmra.mrb[0].mxu0 %v1514
    %v1516 = vpop.f32.mrb[0].mxu0
    %v1517 = vadd.f32 0.0, %v1516
    %v1518 = vpop.f32.mrb[0].mxu0
    %1519 = vmatprep.mubr.f32.mxu0 0.0
    %v1520 = vand.u32 %v1105, 4294901760
    %v1521 = vsub.f32 %v1105, %v1520
    %v1522 = vand.u32 %v1521, 4294901760
    %v1523 = vsub.f32 %v1521, %v1522
    %v1524 = vand.u32 %v1523, 4294901760
    %1525 = vmatmul.mubr.f32.gmra.mrb[0].mxu0 %v1524
    %v1526 = vpop.f32.mrb[0].mxu0
    %v1527 = vadd.f32 0.0, %v1526
    %v1528 = vpop.f32.mrb[0].mxu0
    %1529 = vmatprep.mubr.f32.mxu0 0.0
    %v1530 = vand.u32 %v1108, 4294901760
    %v1531 = vsub.f32 %v1108, %v1530
    %v1532 = vand.u32 %v1531, 4294901760
    %v1533 = vsub.f32 %v1531, %v1532
    %v1534 = vand.u32 %v1533, 4294901760
    %1535 = vmatmul.mubr.f32.gmra.mrb[0].mxu0 %v1534
    %v1536 = vpop.f32.mrb[0].mxu0
    %v1537 = vadd.f32 0.0, %v1536
    %v1538 = vpop.f32.mrb[0].mxu0
    %1539 = vmatprep.mubr.f32.mxu0 0.0
    %v1540 = vand.u32 %v1111, 4294901760
    %v1541 = vsub.f32 %v1111, %v1540
    %v1542 = vand.u32 %v1541, 4294901760
    %v1543 = vsub.f32 %v1541, %v1542
    %v1544 = vand.u32 %v1543, 4294901760
    %1545 = vmatmul.mubr.f32.gmra.mrb[0].mxu0 %v1544
    %v1546 = vpop.f32.mrb[0].mxu0
    %v1547 = vadd.f32 0.0, %v1546
    %v1548 = vpop.f32.mrb[0].mxu0
    %1549 = vmatprep.mubr.f32.mxu0 0.0
    %v1550 = vand.u32 %v1114, 4294901760
    %v1551 = vsub.f32 %v1114, %v1550
    %v1552 = vand.u32 %v1551, 4294901760
    %v1553 = vsub.f32 %v1551, %v1552
    %v1554 = vand.u32 %v1553, 4294901760
    %1555 = vmatmul.mubr.f32.gmra.mrb[0].mxu0 %v1554
    %v1556 = vpop.f32.mrb[0].mxu0
    %v1557 = vadd.f32 0.0, %v1556
    %v1558 = vpop.f32.mrb[0].mxu0
    %1559 = vmatprep.mubr.f32.mxu0 0.0
    %v1560 = vand.u32 %v1117, 4294901760
    %v1561 = vsub.f32 %v1117, %v1560
    %v1562 = vand.u32 %v1561, 4294901760
    %v1563 = vsub.f32 %v1561, %v1562
    %v1564 = vand.u32 %v1563, 4294901760
    %1565 = vmatmul.mubr.f32.gmra.mrb[0].mxu0 %v1564
    %v1566 = vpop.f32.mrb[0].mxu0
    %v1567 = vadd.f32 0.0, %v1566
    %v1568 = vpop.f32.mrb[0].mxu0
    %1569 = vmatprep.mubr.f32.mxu0 0.0
    %v1570 = vand.u32 %v1120, 4294901760
    %v1571 = vsub.f32 %v1120, %v1570
    %v1572 = vand.u32 %v1571, 4294901760
    %v1573 = vsub.f32 %v1571, %v1572
    %v1574 = vand.u32 %v1573, 4294901760
    %1575 = vmatmul.mubr.f32.gmra.mrb[0].mxu0 %v1574
    %v1576 = vpop.f32.mrb[0].mxu0
    %v1577 = vadd.f32 0.0, %v1576
    %v1578 = vpop.f32.mrb[0].mxu0
    %1579 = vmatprep.mubr.f32.mxu0 0.0
    %v1580 = vand.u32 %v1123, 4294901760
    %v1581 = vsub.f32 %v1123, %v1580
    %v1582 = vand.u32 %v1581, 4294901760
    %v1583 = vsub.f32 %v1581, %v1582
    %v1584 = vand.u32 %v1583, 4294901760
    %1585 = vmatmul.mubr.f32.gmra.mrb[0].mxu0 %v1584
    %v1586 = vpop.f32.mrb[0].mxu0
    %v1587 = vadd.f32 0.0, %v1586
    %v1588 = vpop.f32.mrb[0].mxu0
    %1589 = vmatprep.mubr.f32.mxu0 0.0
    %v1590 = vand.u32 %v1126, 4294901760
    %v1591 = vsub.f32 %v1126, %v1590
    %v1592 = vand.u32 %v1591, 4294901760
    %v1593 = vsub.f32 %v1591, %v1592
    %v1594 = vand.u32 %v1593, 4294901760
    %1595 = vmatmul.mubr.f32.gmra.mrb[0].mxu0 %v1594
    %v1596 = vpop.f32.mrb[0].mxu0
    %v1597 = vadd.f32 0.0, %v1596
    %v1598 = vpop.f32.mrb[0].mxu0
    %1599 = vmatprep.mubr.f32.mxu0 0.0
    %v1600 = vand.u32 %v1129, 4294901760
    %v1601 = vsub.f32 %v1129, %v1600
    %v1602 = vand.u32 %v1601, 4294901760
    %v1603 = vsub.f32 %v1601, %v1602
    %v1604 = vand.u32 %v1603, 4294901760
    %1605 = vmatmul.mubr.f32.gmra.mrb[0].mxu0 %v1604
    %v1606 = vpop.f32.mrb[0].mxu0
    %v1607 = vadd.f32 0.0, %v1606
    %v1608 = vpop.f32.mrb[0].mxu0
    %1609 = vmatprep.mubr.f32.mxu0 0.0
    %v1610 = vand.u32 %v1132, 4294901760
    %v1611 = vsub.f32 %v1132, %v1610
    %v1612 = vand.u32 %v1611, 4294901760
    %v1613 = vsub.f32 %v1611, %v1612
    %v1614 = vand.u32 %v1613, 4294901760
    %1615 = vmatmul.mubr.f32.gmra.mrb[0].mxu0 %v1614
    %v1616 = vpop.f32.mrb[0].mxu0
    %v1617 = vadd.f32 0.0, %v1616
    %v1618 = vpop.f32.mrb[0].mxu0
    %1619 = vmatprep.mubr.f32.mxu0 0.0
    %v1620 = vand.u32 %v1135, 4294901760
    %v1621 = vsub.f32 %v1135, %v1620
    %v1622 = vand.u32 %v1621, 4294901760
    %v1623 = vsub.f32 %v1621, %v1622
    %v1624 = vand.u32 %v1623, 4294901760
    %1625 = vmatmul.mubr.f32.gmra.mrb[0].mxu0 %v1624
    %v1626 = vpop.f32.mrb[0].mxu0
    %v1627 = vadd.f32 0.0, %v1626
    %v1628 = vpop.f32.mrb[0].mxu0
    %1629 = vmatprep.mubr.f32.mxu0 0.0
    %v1630 = vand.u32 %v1138, 4294901760
    %v1631 = vsub.f32 %v1138, %v1630
    %v1632 = vand.u32 %v1631, 4294901760
    %v1633 = vsub.f32 %v1631, %v1632
    %v1634 = vand.u32 %v1633, 4294901760
    %1635 = vmatmul.mubr.f32.gmra.mrb[0].mxu0 %v1634
    %v1636 = vpop.f32.mrb[0].mxu0
    %v1637 = vadd.f32 0.0, %v1636
    %v1638 = vpop.f32.mrb[0].mxu0
    %1639 = vmatprep.mubr.f32.mxu0 0.0
    %v1640 = vand.u32 %v1141, 4294901760
    %v1641 = vsub.f32 %v1141, %v1640
    %v1642 = vand.u32 %v1641, 4294901760
    %v1643 = vsub.f32 %v1641, %v1642
    %v1644 = vand.u32 %v1643, 4294901760
    %1645 = vmatmul.mubr.f32.gmra.mrb[0].mxu0 %v1644
    %v1646 = vpop.f32.mrb[0].mxu0
    %v1647 = vadd.f32 0.0, %v1646
    %v1648 = vpop.f32.mrb[0].mxu0
    %1649 = vmatprep.mubr.f32.mxu0 0.0
    %v1650 = vand.u32 %v1144, 4294901760
    %v1651 = vsub.f32 %v1144, %v1650
    %v1652 = vand.u32 %v1651, 4294901760
    %v1653 = vsub.f32 %v1651, %v1652
    %v1654 = vand.u32 %v1653, 4294901760
    %1655 = vmatmul.mubr.f32.gmra.mrb[0].mxu0 %v1654
    %v1656 = vpop.f32.mrb[0].mxu0
    %v1657 = vadd.f32 0.0, %v1656
    %v1658 = vpop.f32.mrb[0].mxu0
    %1659 = vmatprep.mubr.f32.mxu0 0.0
    %v1660 = vand.u32 %v1147, 4294901760
    %v1661 = vsub.f32 %v1147, %v1660
    %v1662 = vand.u32 %v1661, 4294901760
    %v1663 = vsub.f32 %v1661, %v1662
    %v1664 = vand.u32 %v1663, 4294901760
    %1665 = vmatmul.mubr.f32.gmra.mrb[0].mxu0 %v1664
    %v1666 = vpop.f32.mrb[0].mxu0
    %v1667 = vadd.f32 0.0, %v1666
    %v1668 = vpop.f32.mrb[0].mxu0
    %1669 = vmatprep.mubr.f32.mxu0 0.0
    %v1670 = vand.u32 %v1150, 4294901760
    %v1671 = vsub.f32 %v1150, %v1670
    %v1672 = vand.u32 %v1671, 4294901760
    %v1673 = vsub.f32 %v1671, %v1672
    %v1674 = vand.u32 %v1673, 4294901760
    %1675 = vmatmul.mubr.f32.gmra.mrb[0].mxu0 %v1674
    %v1676 = vpop.f32.mrb[0].mxu0
    %v1677 = vadd.f32 0.0, %v1676
    %v1678 = vpop.f32.mrb[0].mxu0
    %1679 = vmatprep.mubr.f32.mxu0 0.0
    %v1680 = vand.u32 %v1153, 4294901760
    %v1681 = vsub.f32 %v1153, %v1680
    %v1682 = vand.u32 %v1681, 4294901760
    %v1683 = vsub.f32 %v1681, %v1682
    %v1684 = vand.u32 %v1683, 4294901760
    %1685 = vmatmul.mubr.f32.gmra.mrb[0].mxu0 %v1684
    %v1686 = vpop.f32.mrb[0].mxu0
    %v1687 = vadd.f32 0.0, %v1686
    %v1688 = vpop.f32.mrb[0].mxu0
    %1689 = vmatprep.mubr.f32.mxu0 0.0
    %v1690 = vand.u32 %v1156, 4294901760
    %v1691 = vsub.f32 %v1156, %v1690
    %v1692 = vand.u32 %v1691, 4294901760
    %v1693 = vsub.f32 %v1691, %v1692
    %v1694 = vand.u32 %v1693, 4294901760
    %1695 = vmatmul.mubr.f32.gmra.mrb[0].mxu0 %v1694
    %v1696 = vpop.f32.mrb[0].mxu0
    %v1697 = vadd.f32 0.0, %v1696
    %v1698 = vpop.f32.mrb[0].mxu0
    %1699 = vmatprep.mubr.f32.mxu0 0.0
    %v1700 = vand.u32 %v1159, 4294901760
    %v1701 = vsub.f32 %v1159, %v1700
    %v1702 = vand.u32 %v1701, 4294901760
    %v1703 = vsub.f32 %v1701, %v1702
    %v1704 = vand.u32 %v1703, 4294901760
    %1705 = vmatmul.mubr.f32.gmra.mrb[0].mxu0 %v1704
    %v1706 = vpop.f32.mrb[0].mxu0
    %v1707 = vadd.f32 0.0, %v1706
    %v1708 = vpop.f32.mrb[0].mxu0
    %1709 = vmatprep.mubr.f32.mxu0 0.0
    %v1710 = vand.u32 %v1162, 4294901760
    %v1711 = vsub.f32 %v1162, %v1710
    %v1712 = vand.u32 %v1711, 4294901760
    %v1713 = vsub.f32 %v1711, %v1712
    %v1714 = vand.u32 %v1713, 4294901760
    %1715 = vmatmul.mubr.f32.gmra.mrb[0].mxu0 %v1714
    %v1716 = vpop.f32.mrb[0].mxu0
    %v1717 = vadd.f32 0.0, %v1716
    %v1718 = vpop.f32.mrb[0].mxu0
    %1719 = vmatprep.mubr.f32.mxu0 0.0
    %v1720 = vand.u32 %v1165, 4294901760
    %v1721 = vsub.f32 %v1165, %v1720
    %v1722 = vand.u32 %v1721, 4294901760
    %v1723 = vsub.f32 %v1721, %v1722
    %v1724 = vand.u32 %v1723, 4294901760
    %1725 = vmatmul.mubr.f32.gmra.mrb[0].mxu0 %v1724
    %v1726 = vpop.f32.mrb[0].mxu0
    %v1727 = vadd.f32 0.0, %v1726
    %v1728 = vpop.f32.mrb[0].mxu0
    %1729 = vmatprep.mubr.f32.mxu0 0.0
    %v1730 = vand.u32 %v1168, 4294901760
    %v1731 = vsub.f32 %v1168, %v1730
    %v1732 = vand.u32 %v1731, 4294901760
    %v1733 = vsub.f32 %v1731, %v1732
    %v1734 = vand.u32 %v1733, 4294901760
    %1735 = vmatmul.mubr.f32.gmra.mrb[0].mxu0 %v1734
    %v1736 = vpop.f32.mrb[0].mxu0
    %v1737 = vadd.f32 0.0, %v1736
    %v1738 = vpop.f32.mrb[0].mxu0
    %1739 = vmatprep.mubr.f32.mxu0 0.0
    %v1740 = vand.u32 %v1171, 4294901760
    %v1741 = vsub.f32 %v1171, %v1740
    %v1742 = vand.u32 %v1741, 4294901760
    %v1743 = vsub.f32 %v1741, %v1742
    %v1744 = vand.u32 %v1743, 4294901760
    %1745 = vmatmul.mubr.f32.gmra.mrb[0].mxu0 %v1744
    %v1746 = vpop.f32.mrb[0].mxu0
    %v1747 = vadd.f32 0.0, %v1746
    %v1748 = vpop.f32.mrb[0].mxu0
    %1749 = vmatprep.mubr.f32.mxu0 0.0
    %v1750 = vand.u32 %v1174, 4294901760
    %v1751 = vsub.f32 %v1174, %v1750
    %v1752 = vand.u32 %v1751, 4294901760
    %v1753 = vsub.f32 %v1751, %v1752
    %v1754 = vand.u32 %v1753, 4294901760
    %1755 = vmatmul.mubr.f32.gmra.mrb[0].mxu0 %v1754
    %v1756 = vpop.f32.mrb[0].mxu0
    %v1757 = vadd.f32 0.0, %v1756
    %v1758 = vpop.f32.mrb[0].mxu0
    %1759 = vmatprep.mubr.f32.mxu0 0.0
    %v1760 = vand.u32 %v1177, 4294901760
    %v1761 = vsub.f32 %v1177, %v1760
    %v1762 = vand.u32 %v1761, 4294901760
    %v1763 = vsub.f32 %v1761, %v1762
    %v1764 = vand.u32 %v1763, 4294901760
    %1765 = vmatmul.mubr.f32.gmra.mrb[0].mxu0 %v1764
    %v1766 = vpop.f32.mrb[0].mxu0
    %v1767 = vadd.f32 0.0, %v1766
    %v1768 = vpop.f32.mrb[0].mxu0
    %1769 = vmatprep.mubr.f32.mxu0 0.0
    %v1770 = vand.u32 %v1180, 4294901760
    %v1771 = vsub.f32 %v1180, %v1770
    %v1772 = vand.u32 %v1771, 4294901760
    %v1773 = vsub.f32 %v1771, %v1772
    %v1774 = vand.u32 %v1773, 4294901760
    %1775 = vmatmul.mubr.f32.gmra.mrb[0].mxu0 %v1774
    %v1776 = vpop.f32.mrb[0].mxu0
    %v1777 = vadd.f32 0.0, %v1776
    %v1778 = vpop.f32.mrb[0].mxu0
    %1779 = vmatprep.mubr.f32.mxu0 0.0
    %v1780 = vand.u32 %v1183, 4294901760
    %v1781 = vsub.f32 %v1183, %v1780
    %v1782 = vand.u32 %v1781, 4294901760
    %v1783 = vsub.f32 %v1781, %v1782
    %v1784 = vand.u32 %v1783, 4294901760
    %1785 = vmatmul.mubr.f32.gmra.mrb[0].mxu0 %v1784
    %v1786 = vpop.f32.mrb[0].mxu0
    %v1787 = vadd.f32 0.0, %v1786
    %v1788 = vpop.f32.mrb[0].mxu0
    %1789 = vmatprep.mubr.f32.mxu0 0.0
    %v1790 = vand.u32 %v1186, 4294901760
    %v1791 = vsub.f32 %v1186, %v1790
    %v1792 = vand.u32 %v1791, 4294901760
    %v1793 = vsub.f32 %v1791, %v1792
    %v1794 = vand.u32 %v1793, 4294901760
    %1795 = vmatmul.mubr.f32.gmra.mrb[0].mxu0 %v1794
    %v1796 = vpop.f32.mrb[0].mxu0
    %v1797 = vadd.f32 0.0, %v1796
    %v1798 = vpop.f32.mrb[0].mxu0
    %1799 = vmatprep.mubr.f32.mxu0 0.0
    %v1800 = vand.u32 %v1189, 4294901760
    %v1801 = vsub.f32 %v1189, %v1800
    %v1802 = vand.u32 %v1801, 4294901760
    %v1803 = vsub.f32 %v1801, %v1802
    %v1804 = vand.u32 %v1803, 4294901760
    %1805 = vmatmul.mubr.f32.gmra.mrb[0].mxu0 %v1804
    %v1806 = vpop.f32.mrb[0].mxu0
    %v1807 = vadd.f32 0.0, %v1806
    %v1808 = vpop.f32.mrb[0].mxu0
    %1809 = vmatprep.mubr.f32.mxu0 0.0
    %v1810 = vand.u32 %v1192, 4294901760
    %v1811 = vsub.f32 %v1192, %v1810
    %v1812 = vand.u32 %v1811, 4294901760
    %v1813 = vsub.f32 %v1811, %v1812
    %v1814 = vand.u32 %v1813, 4294901760
    %1815 = vmatmul.mubr.f32.gmra.mrb[0].mxu0 %v1814
    %v1816 = vpop.f32.mrb[0].mxu0
    %v1817 = vadd.f32 0.0, %v1816
    %v1818 = vpop.f32.mrb[0].mxu0
    %1819 = vmatprep.mubr.f32.mxu0 0.0
    %v1820 = vand.u32 %v1195, 4294901760
    %v1821 = vsub.f32 %v1195, %v1820
    %v1822 = vand.u32 %v1821, 4294901760
    %v1823 = vsub.f32 %v1821, %v1822
    %v1824 = vand.u32 %v1823, 4294901760
    %1825 = vmatmul.mubr.f32.gmra.mrb[0].mxu0 %v1824
    %v1826 = vpop.f32.mrb[0].mxu0
    %v1827 = vadd.f32 0.0, %v1826
    %v1828 = vpop.f32.mrb[0].mxu0
    %1829 = vmatprep.mubr.f32.mxu0 0.0
    %v1830 = vand.u32 %v1198, 4294901760
    %v1831 = vsub.f32 %v1198, %v1830
    %v1832 = vand.u32 %v1831, 4294901760
    %v1833 = vsub.f32 %v1831, %v1832
    %v1834 = vand.u32 %v1833, 4294901760
    %1835 = vmatmul.mubr.f32.gmra.mrb[0].mxu0 %v1834
    %v1836 = vpop.f32.mrb[0].mxu0
    %v1837 = vadd.f32 0.0, %v1836
    %v1838 = vpop.f32.mrb[0].mxu0
    %1839 = vmatprep.mubr.f32.mxu0 0.0
    %v1840 = vand.u32 %v1201, 4294901760
    %v1841 = vsub.f32 %v1201, %v1840
    %v1842 = vand.u32 %v1841, 4294901760
    %v1843 = vsub.f32 %v1841, %v1842
    %v1844 = vand.u32 %v1843, 4294901760
    %1845 = vmatmul.mubr.f32.gmra.mrb[0].mxu0 %v1844
    %v1846 = vpop.f32.mrb[0].mxu0
    %v1847 = vadd.f32 0.0, %v1846
    %v1848 = vpop.f32.mrb[0].mxu0
    %1849 = vmatprep.mubr.f32.mxu0 0.0
    %v1850 = vand.u32 %v1204, 4294901760
    %v1851 = vsub.f32 %v1204, %v1850
    %v1852 = vand.u32 %v1851, 4294901760
    %v1853 = vsub.f32 %v1851, %v1852
    %v1854 = vand.u32 %v1853, 4294901760
    %1855 = vmatmul.mubr.f32.gmra.mrb[0].mxu0 %v1854
    %v1856 = vpop.f32.mrb[0].mxu0
    %v1857 = vadd.f32 0.0, %v1856
    %v1858 = vpop.f32.mrb[0].mxu0
    %1859 = vmatprep.mubr.f32.mxu0 0.0
    %v1860 = vand.u32 %v1207, 4294901760
    %v1861 = vsub.f32 %v1207, %v1860
    %v1862 = vand.u32 %v1861, 4294901760
    %v1863 = vsub.f32 %v1861, %v1862
    %v1864 = vand.u32 %v1863, 4294901760
    %1865 = vmatmul.mubr.f32.gmra.mrb[0].mxu0 %v1864
    %v1866 = vpop.f32.mrb[0].mxu0
    %v1867 = vadd.f32 0.0, %v1866
    %v1868 = vpop.f32.mrb[0].mxu0
    %1869 = vmatprep.mubr.f32.mxu0 0.0
    %v1870 = vand.u32 %v1210, 4294901760
    %v1871 = vsub.f32 %v1210, %v1870
    %v1872 = vand.u32 %v1871, 4294901760
    %v1873 = vsub.f32 %v1871, %v1872
    %v1874 = vand.u32 %v1873, 4294901760
    %1875 = vmatmul.mubr.f32.gmra.mrb[0].mxu0 %v1874
    %v1876 = vpop.f32.mrb[0].mxu0
    %v1877 = vadd.f32 0.0, %v1876
    %v1878 = vpop.f32.mrb[0].mxu0
    %1879 = vmatprep.mubr.f32.mxu0 0.0
    %v1880 = vand.u32 %v1213, 4294901760
    %v1881 = vsub.f32 %v1213, %v1880
    %v1882 = vand.u32 %v1881, 4294901760
    %v1883 = vsub.f32 %v1881, %v1882
    %v1884 = vand.u32 %v1883, 4294901760
    %1885 = vmatmul.mubr.f32.gmra.mrb[0].mxu0 %v1884
    %v1886 = vpop.f32.mrb[0].mxu0
    %v1887 = vadd.f32 0.0, %v1886
    %v1888 = vpop.f32.mrb[0].mxu0
    %1889 = vmatprep.mubr.f32.mxu0 0.0
    %v1890 = vand.u32 %v1216, 4294901760
    %v1891 = vsub.f32 %v1216, %v1890
    %v1892 = vand.u32 %v1891, 4294901760
    %v1893 = vsub.f32 %v1891, %v1892
    %v1894 = vand.u32 %v1893, 4294901760
    %1895 = vmatmul.mubr.f32.gmra.mrb[0].mxu0 %v1894
    %v1896 = vpop.f32.mrb[0].mxu0
    %v1897 = vadd.f32 0.0, %v1896
    %v1898 = vpop.f32.mrb[0].mxu0
    %1899 = vmatprep.mubr.f32.mxu0 0.0
    %v1900 = vand.u32 %v1219, 4294901760
    %v1901 = vsub.f32 %v1219, %v1900
    %v1902 = vand.u32 %v1901, 4294901760
    %v1903 = vsub.f32 %v1901, %v1902
    %v1904 = vand.u32 %v1903, 4294901760
    %1905 = vmatmul.mubr.f32.gmra.mrb[0].mxu0 %v1904
    %v1906 = vpop.f32.mrb[0].mxu0
    %v1907 = vadd.f32 0.0, %v1906
    %v1908 = vpop.f32.mrb[0].mxu0
    %1909 = vmatprep.mubr.f32.mxu0 0.0
    %v1910 = vand.u32 %v1222, 4294901760
    %v1911 = vsub.f32 %v1222, %v1910
    %v1912 = vand.u32 %v1911, 4294901760
    %v1913 = vsub.f32 %v1911, %v1912
    %v1914 = vand.u32 %v1913, 4294901760
    %1915 = vmatmul.mubr.f32.gmra.mrb[0].mxu0 %v1914
    %v1916 = vpop.f32.mrb[0].mxu0
    %v1917 = vadd.f32 0.0, %v1916
    %v1918 = vpop.f32.mrb[0].mxu0
    %1919 = vmatprep.mubr.f32.mxu0 0.0
    %v1920 = vand.u32 %v1225, 4294901760
    %v1921 = vsub.f32 %v1225, %v1920
    %v1922 = vand.u32 %v1921, 4294901760
    %v1923 = vsub.f32 %v1921, %v1922
    %v1924 = vand.u32 %v1923, 4294901760
    %1925 = vmatmul.mubr.f32.gmra.mrb[0].mxu0 %v1924
    %v1926 = vpop.f32.mrb[0].mxu0
    %v1927 = vadd.f32 0.0, %v1926
    %v1928 = vpop.f32.mrb[0].mxu0
    %1929 = vmatprep.mubr.f32.mxu0 0.0
    %v1930 = vand.u32 %v1228, 4294901760
    %v1931 = vsub.f32 %v1228, %v1930
    %v1932 = vand.u32 %v1931, 4294901760
    %v1933 = vsub.f32 %v1931, %v1932
    %v1934 = vand.u32 %v1933, 4294901760
    %1935 = vmatmul.mubr.f32.gmra.mrb[0].mxu0 %v1934
    %v1936 = vpop.f32.mrb[0].mxu0
    %v1937 = vadd.f32 0.0, %v1936
    %v1938 = vpop.f32.mrb[0].mxu0
    %1939 = vdwg.mxu0
    %1940 = vmatprep.subr.mxu0 0.0
    %v1941 = vand.u32 %v1232, 4294901760
    %v1942 = vsub.f32 %v1232, %v1941
    %v1943 = vand.u32 %v1942, 4294901760
    %v1944 = vsub.f32 %v1942, %v1943
    %v1945 = vand.u32 %v1944, 4294901760
    %1946 = vmatpush1.msra.mxu0 %v1945
    %1947 = vmatprep.subr.mxu0 0.0
    %1948 = vmatpush1.msra.mxu0 0.0
    %1949 = vmatprep.subr.mxu0 0.0
    %1950 = vmatpush1.msra.mxu0 0.0
    %1951 = vmatprep.subr.mxu0 0.0
    %1952 = vmatpush1.msra.mxu0 0.0
    %1953 = vmatprep.subr.mxu0 0.0
    %1954 = vmatpush1.msra.mxu0 0.0
    %1955 = vmatprep.subr.mxu0 0.0
    %1956 = vmatpush1.msra.mxu0 0.0
    %1957 = vmatprep.subr.mxu0 0.0
    %1958 = vmatpush1.msra.mxu0 0.0
    %1959 = vmatprep.subr.mxu0 0.0
    %1960 = vmatpush1.msra.mxu0 0.0
    %1961 = vmatprep.subr.mxu0 0.0
    %1962 = vmatpush1.msra.mxu0 0.0
    %1963 = vmatprep.subr.mxu0 0.0
    %1964 = vmatpush1.msra.mxu0 0.0
    %1965 = vmatprep.subr.mxu0 0.0
    %1966 = vmatpush1.msra.mxu0 0.0
    %1967 = vmatprep.subr.mxu0 0.0
    %1968 = vmatpush1.msra.mxu0 0.0
    %1969 = vmatprep.subr.mxu0 0.0
    %1970 = vmatpush1.msra.mxu0 0.0
    %1971 = vmatprep.subr.mxu0 0.0
    %1972 = vmatpush1.msra.mxu0 0.0
    %1973 = vmatprep.subr.mxu0 0.0
    %1974 = vmatpush1.msra.mxu0 0.0
    %1975 = vmatprep.subr.mxu0 0.0
    %1976 = vmatpush1.msra.mxu0 0.0
    %1977 = vmatprep.subr.mxu0 0.0
    %1978 = vmatpush1.msra.mxu0 0.0
    %1979 = vmatprep.subr.mxu0 0.0
    %1980 = vmatpush1.msra.mxu0 0.0
    %1981 = vmatprep.subr.mxu0 0.0
    %1982 = vmatpush1.msra.mxu0 0.0
    %1983 = vmatprep.subr.mxu0 0.0
    %1984 = vmatpush1.msra.mxu0 0.0
    %1985 = vmatprep.subr.mxu0 0.0
    %1986 = vmatpush1.msra.mxu0 0.0
    %1987 = vmatprep.subr.mxu0 0.0
    %1988 = vmatpush1.msra.mxu0 0.0
    %1989 = vmatprep.subr.mxu0 0.0
    %1990 = vmatpush1.msra.mxu0 0.0
    %1991 = vmatprep.subr.mxu0 0.0
    %1992 = vmatpush1.msra.mxu0 0.0
    %1993 = vmatprep.subr.mxu0 0.0
    %1994 = vmatpush1.msra.mxu0 0.0
    %1995 = vmatprep.subr.mxu0 0.0
    %1996 = vmatpush1.msra.mxu0 0.0
    %1997 = vmatprep.subr.mxu0 0.0
    %1998 = vmatpush1.msra.mxu0 0.0
    %1999 = vmatprep.subr.mxu0 0.0
    %2000 = vmatpush1.msra.mxu0 0.0
    %2001 = vmatprep.subr.mxu0 0.0
    %2002 = vmatpush1.msra.mxu0 0.0
    %2003 = vmatprep.subr.mxu0 0.0
    %2004 = vmatpush1.msra.mxu0 0.0
    %2005 = vmatprep.subr.mxu0 0.0
    %2006 = vmatpush1.msra.mxu0 0.0
    %2007 = vmatprep.subr.mxu0 0.0
    %2008 = vmatpush1.msra.mxu0 0.0
    %2009 = vmatprep.mubr.f32.mxu0 0.0
    %v2010 = vand.u32 %v1039, 4294901760
    %2011 = vmatmul.mubr.f32.gmra.mrb[0].mxu0 %v2010
    %v2012 = vpop.f32.mrb[0].mxu0
    %v2013 = vadd.f32 %v1307, %v2012
    %v2014 = vpop.f32.mrb[0].mxu0
    %2015 = vmatprep.mubr.f32.mxu0 0.0
    %v2016 = vand.u32 %v1042, 4294901760
    %2017 = vmatmul.mubr.f32.gmra.mrb[0].mxu0 %v2016
    %v2018 = vpop.f32.mrb[0].mxu0
    %v2019 = vadd.f32 %v1317, %v2018
    %v2020 = vpop.f32.mrb[0].mxu0
    %2021 = vmatprep.mubr.f32.mxu0 0.0
    %v2022 = vand.u32 %v1045, 4294901760
    %2023 = vmatmul.mubr.f32.gmra.mrb[0].mxu0 %v2022
    %v2024 = vpop.f32.mrb[0].mxu0
    %v2025 = vadd.f32 %v1327, %v2024
    %v2026 = vpop.f32.mrb[0].mxu0
    %2027 = vmatprep.mubr.f32.mxu0 0.0
    %v2028 = vand.u32 %v1048, 4294901760
    %2029 = vmatmul.mubr.f32.gmra.mrb[0].mxu0 %v2028
    %v2030 = vpop.f32.mrb[0].mxu0
    %v2031 = vadd.f32 %v1337, %v2030
    %v2032 = vpop.f32.mrb[0].mxu0
    %2033 = vmatprep.mubr.f32.mxu0 0.0
    %v2034 = vand.u32 %v1051, 4294901760
    %2035 = vmatmul.mubr.f32.gmra.mrb[0].mxu0 %v2034
    %v2036 = vpop.f32.mrb[0].mxu0
    %v2037 = vadd.f32 %v1347, %v2036
    %v2038 = vpop.f32.mrb[0].mxu0
    %2039 = vmatprep.mubr.f32.mxu0 0.0
    %v2040 = vand.u32 %v1054, 4294901760
    %2041 = vmatmul.mubr.f32.gmra.mrb[0].mxu0 %v2040
    %v2042 = vpop.f32.mrb[0].mxu0
    %v2043 = vadd.f32 %v1357, %v2042
    %v2044 = vpop.f32.mrb[0].mxu0
    %2045 = vmatprep.mubr.f32.mxu0 0.0
    %v2046 = vand.u32 %v1057, 4294901760
    %2047 = vmatmul.mubr.f32.gmra.mrb[0].mxu0 %v2046
    %v2048 = vpop.f32.mrb[0].mxu0
    %v2049 = vadd.f32 %v1367, %v2048
    %v2050 = vpop.f32.mrb[0].mxu0
    %2051 = vmatprep.mubr.f32.mxu0 0.0
    %v2052 = vand.u32 %v1060, 4294901760
    %2053 = vmatmul.mubr.f32.gmra.mrb[0].mxu0 %v2052
    %v2054 = vpop.f32.mrb[0].mxu0
    %v2055 = vadd.f32 %v1377, %v2054
    %v2056 = vpop.f32.mrb[0].mxu0
    %2057 = vmatprep.mubr.f32.mxu0 0.0
    %v2058 = vand.u32 %v1063, 4294901760
    %2059 = vmatmul.mubr.f32.gmra.mrb[0].mxu0 %v2058
    %v2060 = vpop.f32.mrb[0].mxu0
    %v2061 = vadd.f32 %v1387, %v2060
    %v2062 = vpop.f32.mrb[0].mxu0
    %2063 = vmatprep.mubr.f32.mxu0 0.0
    %v2064 = vand.u32 %v1066, 4294901760
    %2065 = vmatmul.mubr.f32.gmra.mrb[0].mxu0 %v2064
    %v2066 = vpop.f32.mrb[0].mxu0
    %v2067 = vadd.f32 %v1397, %v2066
    %v2068 = vpop.f32.mrb[0].mxu0
    %2069 = vmatprep.mubr.f32.mxu0 0.0
    %v2070 = vand.u32 %v1069, 4294901760
    %2071 = vmatmul.mubr.f32.gmra.mrb[0].mxu0 %v2070
    %v2072 = vpop.f32.mrb[0].mxu0
    %v2073 = vadd.f32 %v1407, %v2072
    %v2074 = vpop.f32.mrb[0].mxu0
    %2075 = vmatprep.mubr.f32.mxu0 0.0
    %v2076 = vand.u32 %v1072, 4294901760
    %2077 = vmatmul.mubr.f32.gmra.mrb[0].mxu0 %v2076
    %v2078 = vpop.f32.mrb[0].mxu0
    %v2079 = vadd.f32 %v1417, %v2078
    %v2080 = vpop.f32.mrb[0].mxu0
    %2081 = vmatprep.mubr.f32.mxu0 0.0
    %v2082 = vand.u32 %v1075, 4294901760
    %2083 = vmatmul.mubr.f32.gmra.mrb[0].mxu0 %v2082
    %v2084 = vpop.f32.mrb[0].mxu0
    %v2085 = vadd.f32 %v1427, %v2084
    %v2086 = vpop.f32.mrb[0].mxu0
    %2087 = vmatprep.mubr.f32.mxu0 0.0
    %v2088 = vand.u32 %v1078, 4294901760
    %2089 = vmatmul.mubr.f32.gmra.mrb[0].mxu0 %v2088
    %v2090 = vpop.f32.mrb[0].mxu0
    %v2091 = vadd.f32 %v1437, %v2090
    %v2092 = vpop.f32.mrb[0].mxu0
    %2093 = vmatprep.mubr.f32.mxu0 0.0
    %v2094 = vand.u32 %v1081, 4294901760
    %2095 = vmatmul.mubr.f32.gmra.mrb[0].mxu0 %v2094
    %v2096 = vpop.f32.mrb[0].mxu0
    %v2097 = vadd.f32 %v1447, %v2096
    %v2098 = vpop.f32.mrb[0].mxu0
    %2099 = vmatprep.mubr.f32.mxu0 0.0
    %v2100 = vand.u32 %v1084, 4294901760
    %2101 = vmatmul.mubr.f32.gmra.mrb[0].mxu0 %v2100
    %v2102 = vpop.f32.mrb[0].mxu0
    %v2103 = vadd.f32 %v1457, %v2102
    %v2104 = vpop.f32.mrb[0].mxu0
    %2105 = vmatprep.mubr.f32.mxu0 0.0
    %v2106 = vand.u32 %v1087, 4294901760
    %2107 = vmatmul.mubr.f32.gmra.mrb[0].mxu0 %v2106
    %v2108 = vpop.f32.mrb[0].mxu0
    %v2109 = vadd.f32 %v1467, %v2108
    %v2110 = vpop.f32.mrb[0].mxu0
    %2111 = vmatprep.mubr.f32.mxu0 0.0
    %v2112 = vand.u32 %v1090, 4294901760
    %2113 = vmatmul.mubr.f32.gmra.mrb[0].mxu0 %v2112
    %v2114 = vpop.f32.mrb[0].mxu0
    %v2115 = vadd.f32 %v1477, %v2114
    %v2116 = vpop.f32.mrb[0].mxu0
    %2117 = vmatprep.mubr.f32.mxu0 0.0
    %v2118 = vand.u32 %v1093, 4294901760
    %2119 = vmatmul.mubr.f32.gmra.mrb[0].mxu0 %v2118
    %v2120 = vpop.f32.mrb[0].mxu0
    %v2121 = vadd.f32 %v1487, %v2120
    %v2122 = vpop.f32.mrb[0].mxu0
    %2123 = vmatprep.mubr.f32.mxu0 0.0
    %v2124 = vand.u32 %v1096, 4294901760
    %2125 = vmatmul.mubr.f32.gmra.mrb[0].mxu0 %v2124
    %v2126 = vpop.f32.mrb[0].mxu0
    %v2127 = vadd.f32 %v1497, %v2126
    %v2128 = vpop.f32.mrb[0].mxu0
    %2129 = vmatprep.mubr.f32.mxu0 0.0
    %v2130 = vand.u32 %v1099, 4294901760
    %2131 = vmatmul.mubr.f32.gmra.mrb[0].mxu0 %v2130
    %v2132 = vpop.f32.mrb[0].mxu0
    %v2133 = vadd.f32 %v1507, %v2132
    %v2134 = vpop.f32.mrb[0].mxu0
    %2135 = vmatprep.mubr.f32.mxu0 0.0
    %v2136 = vand.u32 %v1102, 4294901760
    %2137 = vmatmul.mubr.f32.gmra.mrb[0].mxu0 %v2136
    %v2138 = vpop.f32.mrb[0].mxu0
    %v2139 = vadd.f32 %v1517, %v2138
    %v2140 = vpop.f32.mrb[0].mxu0
    %2141 = vmatprep.mubr.f32.mxu0 0.0
    %v2142 = vand.u32 %v1105, 4294901760
    %2143 = vmatmul.mubr.f32.gmra.mrb[0].mxu0 %v2142
    %v2144 = vpop.f32.mrb[0].mxu0
    %v2145 = vadd.f32 %v1527, %v2144
    %v2146 = vpop.f32.mrb[0].mxu0
    %2147 = vmatprep.mubr.f32.mxu0 0.0
    %v2148 = vand.u32 %v1108, 4294901760
    %2149 = vmatmul.mubr.f32.gmra.mrb[0].mxu0 %v2148
    %v2150 = vpop.f32.mrb[0].mxu0
    %v2151 = vadd.f32 %v1537, %v2150
    %v2152 = vpop.f32.mrb[0].mxu0
    %2153 = vmatprep.mubr.f32.mxu0 0.0
    %v2154 = vand.u32 %v1111, 4294901760
    %2155 = vmatmul.mubr.f32.gmra.mrb[0].mxu0 %v2154
    %v2156 = vpop.f32.mrb[0].mxu0
    %v2157 = vadd.f32 %v1547, %v2156
    %v2158 = vpop.f32.mrb[0].mxu0
    %2159 = vmatprep.mubr.f32.mxu0 0.0
    %v2160 = vand.u32 %v1114, 4294901760
    %2161 = vmatmul.mubr.f32.gmra.mrb[0].mxu0 %v2160
    %v2162 = vpop.f32.mrb[0].mxu0
    %v2163 = vadd.f32 %v1557, %v2162
    %v2164 = vpop.f32.mrb[0].mxu0
    %2165 = vmatprep.mubr.f32.mxu0 0.0
    %v2166 = vand.u32 %v1117, 4294901760
    %2167 = vmatmul.mubr.f32.gmra.mrb[0].mxu0 %v2166
    %v2168 = vpop.f32.mrb[0].mxu0
    %v2169 = vadd.f32 %v1567, %v2168
    %v2170 = vpop.f32.mrb[0].mxu0
    %2171 = vmatprep.mubr.f32.mxu0 0.0
    %v2172 = vand.u32 %v1120, 4294901760
    %2173 = vmatmul.mubr.f32.gmra.mrb[0].mxu0 %v2172
    %v2174 = vpop.f32.mrb[0].mxu0
    %v2175 = vadd.f32 %v1577, %v2174
    %v2176 = vpop.f32.mrb[0].mxu0
    %2177 = vmatprep.mubr.f32.mxu0 0.0
    %v2178 = vand.u32 %v1123, 4294901760
    %2179 = vmatmul.mubr.f32.gmra.mrb[0].mxu0 %v2178
    %v2180 = vpop.f32.mrb[0].mxu0
    %v2181 = vadd.f32 %v1587, %v2180
    %v2182 = vpop.f32.mrb[0].mxu0
    %2183 = vmatprep.mubr.f32.mxu0 0.0
    %v2184 = vand.u32 %v1126, 4294901760
    %2185 = vmatmul.mubr.f32.gmra.mrb[0].mxu0 %v2184
    %v2186 = vpop.f32.mrb[0].mxu0
    %v2187 = vadd.f32 %v1597, %v2186
    %v2188 = vpop.f32.mrb[0].mxu0
    %2189 = vmatprep.mubr.f32.mxu0 0.0
    %v2190 = vand.u32 %v1129, 4294901760
    %2191 = vmatmul.mubr.f32.gmra.mrb[0].mxu0 %v2190
    %v2192 = vpop.f32.mrb[0].mxu0
    %v2193 = vadd.f32 %v1607, %v2192
    %v2194 = vpop.f32.mrb[0].mxu0
    %2195 = vmatprep.mubr.f32.mxu0 0.0
    %v2196 = vand.u32 %v1132, 4294901760
    %2197 = vmatmul.mubr.f32.gmra.mrb[0].mxu0 %v2196
    %v2198 = vpop.f32.mrb[0].mxu0
    %v2199 = vadd.f32 %v1617, %v2198
    %v2200 = vpop.f32.mrb[0].mxu0
    %2201 = vmatprep.mubr.f32.mxu0 0.0
    %v2202 = vand.u32 %v1135, 4294901760
    %2203 = vmatmul.mubr.f32.gmra.mrb[0].mxu0 %v2202
    %v2204 = vpop.f32.mrb[0].mxu0
    %v2205 = vadd.f32 %v1627, %v2204
    %v2206 = vpop.f32.mrb[0].mxu0
    %2207 = vmatprep.mubr.f32.mxu0 0.0
    %v2208 = vand.u32 %v1138, 4294901760
    %2209 = vmatmul.mubr.f32.gmra.mrb[0].mxu0 %v2208
    %v2210 = vpop.f32.mrb[0].mxu0
    %v2211 = vadd.f32 %v1637, %v2210
    %v2212 = vpop.f32.mrb[0].mxu0
    %2213 = vmatprep.mubr.f32.mxu0 0.0
    %v2214 = vand.u32 %v1141, 4294901760
    %2215 = vmatmul.mubr.f32.gmra.mrb[0].mxu0 %v2214
    %v2216 = vpop.f32.mrb[0].mxu0
    %v2217 = vadd.f32 %v1647, %v2216
    %v2218 = vpop.f32.mrb[0].mxu0
    %2219 = vmatprep.mubr.f32.mxu0 0.0
    %v2220 = vand.u32 %v1144, 4294901760
    %2221 = vmatmul.mubr.f32.gmra.mrb[0].mxu0 %v2220
    %v2222 = vpop.f32.mrb[0].mxu0
    %v2223 = vadd.f32 %v1657, %v2222
    %v2224 = vpop.f32.mrb[0].mxu0
    %2225 = vmatprep.mubr.f32.mxu0 0.0
    %v2226 = vand.u32 %v1147, 4294901760
    %2227 = vmatmul.mubr.f32.gmra.mrb[0].mxu0 %v2226
    %v2228 = vpop.f32.mrb[0].mxu0
    %v2229 = vadd.f32 %v1667, %v2228
    %v2230 = vpop.f32.mrb[0].mxu0
    %2231 = vmatprep.mubr.f32.mxu0 0.0
    %v2232 = vand.u32 %v1150, 4294901760
    %2233 = vmatmul.mubr.f32.gmra.mrb[0].mxu0 %v2232
    %v2234 = vpop.f32.mrb[0].mxu0
    %v2235 = vadd.f32 %v1677, %v2234
    %v2236 = vpop.f32.mrb[0].mxu0
    %2237 = vmatprep.mubr.f32.mxu0 0.0
    %v2238 = vand.u32 %v1153, 4294901760
    %2239 = vmatmul.mubr.f32.gmra.mrb[0].mxu0 %v2238
    %v2240 = vpop.f32.mrb[0].mxu0
    %v2241 = vadd.f32 %v1687, %v2240
    %v2242 = vpop.f32.mrb[0].mxu0
    %2243 = vmatprep.mubr.f32.mxu0 0.0
    %v2244 = vand.u32 %v1156, 4294901760
    %2245 = vmatmul.mubr.f32.gmra.mrb[0].mxu0 %v2244
    %v2246 = vpop.f32.mrb[0].mxu0
    %v2247 = vadd.f32 %v1697, %v2246
    %v2248 = vpop.f32.mrb[0].mxu0
    %2249 = vmatprep.mubr.f32.mxu0 0.0
    %v2250 = vand.u32 %v1159, 4294901760
    %2251 = vmatmul.mubr.f32.gmra.mrb[0].mxu0 %v2250
    %v2252 = vpop.f32.mrb[0].mxu0
    %v2253 = vadd.f32 %v1707, %v2252
    %v2254 = vpop.f32.mrb[0].mxu0
    %2255 = vmatprep.mubr.f32.mxu0 0.0
    %v2256 = vand.u32 %v1162, 4294901760
    %2257 = vmatmul.mubr.f32.gmra.mrb[0].mxu0 %v2256
    %v2258 = vpop.f32.mrb[0].mxu0
    %v2259 = vadd.f32 %v1717, %v2258
    %v2260 = vpop.f32.mrb[0].mxu0
    %2261 = vmatprep.mubr.f32.mxu0 0.0
    %v2262 = vand.u32 %v1165, 4294901760
    %2263 = vmatmul.mubr.f32.gmra.mrb[0].mxu0 %v2262
    %v2264 = vpop.f32.mrb[0].mxu0
    %v2265 = vadd.f32 %v1727, %v2264
    %v2266 = vpop.f32.mrb[0].mxu0
    %2267 = vmatprep.mubr.f32.mxu0 0.0
    %v2268 = vand.u32 %v1168, 4294901760
    %2269 = vmatmul.mubr.f32.gmra.mrb[0].mxu0 %v2268
    %v2270 = vpop.f32.mrb[0].mxu0
    %v2271 = vadd.f32 %v1737, %v2270
    %v2272 = vpop.f32.mrb[0].mxu0
    %2273 = vmatprep.mubr.f32.mxu0 0.0
    %v2274 = vand.u32 %v1171, 4294901760
    %2275 = vmatmul.mubr.f32.gmra.mrb[0].mxu0 %v2274
    %v2276 = vpop.f32.mrb[0].mxu0
    %v2277 = vadd.f32 %v1747, %v2276
    %v2278 = vpop.f32.mrb[0].mxu0
    %2279 = vmatprep.mubr.f32.mxu0 0.0
    %v2280 = vand.u32 %v1174, 4294901760
    %2281 = vmatmul.mubr.f32.gmra.mrb[0].mxu0 %v2280
    %v2282 = vpop.f32.mrb[0].mxu0
    %v2283 = vadd.f32 %v1757, %v2282
    %v2284 = vpop.f32.mrb[0].mxu0
    %2285 = vmatprep.mubr.f32.mxu0 0.0
    %v2286 = vand.u32 %v1177, 4294901760
    %2287 = vmatmul.mubr.f32.gmra.mrb[0].mxu0 %v2286
    %v2288 = vpop.f32.mrb[0].mxu0
    %v2289 = vadd.f32 %v1767, %v2288
    %v2290 = vpop.f32.mrb[0].mxu0
    %2291 = vmatprep.mubr.f32.mxu0 0.0
    %v2292 = vand.u32 %v1180, 4294901760
    %2293 = vmatmul.mubr.f32.gmra.mrb[0].mxu0 %v2292
    %v2294 = vpop.f32.mrb[0].mxu0
    %v2295 = vadd.f32 %v1777, %v2294
    %v2296 = vpop.f32.mrb[0].mxu0
    %2297 = vmatprep.mubr.f32.mxu0 0.0
    %v2298 = vand.u32 %v1183, 4294901760
    %2299 = vmatmul.mubr.f32.gmra.mrb[0].mxu0 %v2298
    %v2300 = vpop.f32.mrb[0].mxu0
    %v2301 = vadd.f32 %v1787, %v2300
    %v2302 = vpop.f32.mrb[0].mxu0
    %2303 = vmatprep.mubr.f32.mxu0 0.0
    %v2304 = vand.u32 %v1186, 4294901760
    %2305 = vmatmul.mubr.f32.gmra.mrb[0].mxu0 %v2304
    %v2306 = vpop.f32.mrb[0].mxu0
    %v2307 = vadd.f32 %v1797, %v2306
    %v2308 = vpop.f32.mrb[0].mxu0
    %2309 = vmatprep.mubr.f32.mxu0 0.0
    %v2310 = vand.u32 %v1189, 4294901760
    %2311 = vmatmul.mubr.f32.gmra.mrb[0].mxu0 %v2310
    %v2312 = vpop.f32.mrb[0].mxu0
    %v2313 = vadd.f32 %v1807, %v2312
    %v2314 = vpop.f32.mrb[0].mxu0
    %2315 = vmatprep.mubr.f32.mxu0 0.0
    %v2316 = vand.u32 %v1192, 4294901760
    %2317 = vmatmul.mubr.f32.gmra.mrb[0].mxu0 %v2316
    %v2318 = vpop.f32.mrb[0].mxu0
    %v2319 = vadd.f32 %v1817, %v2318
    %v2320 = vpop.f32.mrb[0].mxu0
    %2321 = vmatprep.mubr.f32.mxu0 0.0
    %v2322 = vand.u32 %v1195, 4294901760
    %2323 = vmatmul.mubr.f32.gmra.mrb[0].mxu0 %v2322
    %v2324 = vpop.f32.mrb[0].mxu0
    %v2325 = vadd.f32 %v1827, %v2324
    %v2326 = vpop.f32.mrb[0].mxu0
    %2327 = vmatprep.mubr.f32.mxu0 0.0
    %v2328 = vand.u32 %v1198, 4294901760
    %2329 = vmatmul.mubr.f32.gmra.mrb[0].mxu0 %v2328
    %v2330 = vpop.f32.mrb[0].mxu0
    %v2331 = vadd.f32 %v1837, %v2330
    %v2332 = vpop.f32.mrb[0].mxu0
    %2333 = vmatprep.mubr.f32.mxu0 0.0
    %v2334 = vand.u32 %v1201, 4294901760
    %2335 = vmatmul.mubr.f32.gmra.mrb[0].mxu0 %v2334
    %v2336 = vpop.f32.mrb[0].mxu0
    %v2337 = vadd.f32 %v1847, %v2336
    %v2338 = vpop.f32.mrb[0].mxu0
    %2339 = vmatprep.mubr.f32.mxu0 0.0
    %v2340 = vand.u32 %v1204, 4294901760
    %2341 = vmatmul.mubr.f32.gmra.mrb[0].mxu0 %v2340
    %v2342 = vpop.f32.mrb[0].mxu0
    %v2343 = vadd.f32 %v1857, %v2342
    %v2344 = vpop.f32.mrb[0].mxu0
    %2345 = vmatprep.mubr.f32.mxu0 0.0
    %v2346 = vand.u32 %v1207, 4294901760
    %2347 = vmatmul.mubr.f32.gmra.mrb[0].mxu0 %v2346
    %v2348 = vpop.f32.mrb[0].mxu0
    %v2349 = vadd.f32 %v1867, %v2348
    %v2350 = vpop.f32.mrb[0].mxu0
    %2351 = vmatprep.mubr.f32.mxu0 0.0
    %v2352 = vand.u32 %v1210, 4294901760
    %2353 = vmatmul.mubr.f32.gmra.mrb[0].mxu0 %v2352
    %v2354 = vpop.f32.mrb[0].mxu0
    %v2355 = vadd.f32 %v1877, %v2354
    %v2356 = vpop.f32.mrb[0].mxu0
    %2357 = vmatprep.mubr.f32.mxu0 0.0
    %v2358 = vand.u32 %v1213, 4294901760
    %2359 = vmatmul.mubr.f32.gmra.mrb[0].mxu0 %v2358
    %v2360 = vpop.f32.mrb[0].mxu0
    %v2361 = vadd.f32 %v1887, %v2360
    %v2362 = vpop.f32.mrb[0].mxu0
    %2363 = vmatprep.mubr.f32.mxu0 0.0
    %v2364 = vand.u32 %v1216, 4294901760
    %2365 = vmatmul.mubr.f32.gmra.mrb[0].mxu0 %v2364
    %v2366 = vpop.f32.mrb[0].mxu0
    %v2367 = vadd.f32 %v1897, %v2366
    %v2368 = vpop.f32.mrb[0].mxu0
    %2369 = vmatprep.mubr.f32.mxu0 0.0
    %v2370 = vand.u32 %v1219, 4294901760
    %2371 = vmatmul.mubr.f32.gmra.mrb[0].mxu0 %v2370
    %v2372 = vpop.f32.mrb[0].mxu0
    %v2373 = vadd.f32 %v1907, %v2372
    %v2374 = vpop.f32.mrb[0].mxu0
    %2375 = vmatprep.mubr.f32.mxu0 0.0
    %v2376 = vand.u32 %v1222, 4294901760
    %2377 = vmatmul.mubr.f32.gmra.mrb[0].mxu0 %v2376
    %v2378 = vpop.f32.mrb[0].mxu0
    %v2379 = vadd.f32 %v1917, %v2378
    %v2380 = vpop.f32.mrb[0].mxu0
    %2381 = vmatprep.mubr.f32.mxu0 0.0
    %v2382 = vand.u32 %v1225, 4294901760
    %2383 = vmatmul.mubr.f32.gmra.mrb[0].mxu0 %v2382
    %v2384 = vpop.f32.mrb[0].mxu0
    %v2385 = vadd.f32 %v1927, %v2384
    %v2386 = vpop.f32.mrb[0].mxu0
    %2387 = vmatprep.mubr.f32.mxu0 0.0
    %v2388 = vand.u32 %v1228, 4294901760
    %2389 = vmatmul.mubr.f32.gmra.mrb[0].mxu0 %v2388
    %v2390 = vpop.f32.mrb[0].mxu0
    %v2391 = vadd.f32 %v1937, %v2390
    %v2392 = vpop.f32.mrb[0].mxu0
    %2393 = vdwg.mxu0
    %2394 = vmatprep.subr.mxu0 0.0
    %v2395 = vand.u32 %v1232, 4294901760
    %v2396 = vsub.f32 %v1232, %v2395
    %2397 = vmatpush1.msra.mxu0 %v2396
    %2398 = vmatprep.subr.mxu0 0.0
    %2399 = vmatpush1.msra.mxu0 0.0
    %2400 = vmatprep.subr.mxu0 0.0
    %2401 = vmatpush1.msra.mxu0 0.0
    %2402 = vmatprep.subr.mxu0 0.0
    %2403 = vmatpush1.msra.mxu0 0.0
    %2404 = vmatprep.subr.mxu0 0.0
    %2405 = vmatpush1.msra.mxu0 0.0
    %2406 = vmatprep.subr.mxu0 0.0
    %2407 = vmatpush1.msra.mxu0 0.0
    %2408 = vmatprep.subr.mxu0 0.0
    %2409 = vmatpush1.msra.mxu0 0.0
    %2410 = vmatprep.subr.mxu0 0.0
    %2411 = vmatpush1.msra.mxu0 0.0
    %2412 = vmatprep.subr.mxu0 0.0
    %2413 = vmatpush1.msra.mxu0 0.0
    %2414 = vmatprep.subr.mxu0 0.0
    %2415 = vmatpush1.msra.mxu0 0.0
    %2416 = vmatprep.subr.mxu0 0.0
    %2417 = vmatpush1.msra.mxu0 0.0
    %2418 = vmatprep.subr.mxu0 0.0
    %2419 = vmatpush1.msra.mxu0 0.0
    %2420 = vmatprep.subr.mxu0 0.0
    %2421 = vmatpush1.msra.mxu0 0.0
    %2422 = vmatprep.subr.mxu0 0.0
    %2423 = vmatpush1.msra.mxu0 0.0
    %2424 = vmatprep.subr.mxu0 0.0
    %2425 = vmatpush1.msra.mxu0 0.0
    %2426 = vmatprep.subr.mxu0 0.0
    %2427 = vmatpush1.msra.mxu0 0.0
    %2428 = vmatprep.subr.mxu0 0.0
    %2429 = vmatpush1.msra.mxu0 0.0
    %2430 = vmatprep.subr.mxu0 0.0
    %2431 = vmatpush1.msra.mxu0 0.0
    %2432 = vmatprep.subr.mxu0 0.0
    %2433 = vmatpush1.msra.mxu0 0.0
    %2434 = vmatprep.subr.mxu0 0.0
    %2435 = vmatpush1.msra.mxu0 0.0
    %2436 = vmatprep.subr.mxu0 0.0
    %2437 = vmatpush1.msra.mxu0 0.0
    %2438 = vmatprep.subr.mxu0 0.0
    %2439 = vmatpush1.msra.mxu0 0.0
    %2440 = vmatprep.subr.mxu0 0.0
    %2441 = vmatpush1.msra.mxu0 0.0
    %2442 = vmatprep.subr.mxu0 0.0
    %2443 = vmatpush1.msra.mxu0 0.0
    %2444 = vmatprep.subr.mxu0 0.0
    %2445 = vmatpush1.msra.mxu0 0.0
    %2446 = vmatprep.subr.mxu0 0.0
    %2447 = vmatpush1.msra.mxu0 0.0
    %2448 = vmatprep.subr.mxu0 0.0
    %2449 = vmatpush1.msra.mxu0 0.0
    %2450 = vmatprep.subr.mxu0 0.0
    %2451 = vmatpush1.msra.mxu0 0.0
    %2452 = vmatprep.subr.mxu0 0.0
    %2453 = vmatpush1.msra.mxu0 0.0
    %2454 = vmatprep.subr.mxu0 0.0
    %2455 = vmatpush1.msra.mxu0 0.0
    %2456 = vmatprep.subr.mxu0 0.0
    %2457 = vmatpush1.msra.mxu0 0.0
    %2458 = vmatprep.subr.mxu0 0.0
    %2459 = vmatpush1.msra.mxu0 0.0
    %2460 = vmatprep.mubr.f32.mxu0 0.0
    %v2461 = vand.u32 %v1039, 4294901760
    %v2462 = vsub.f32 %v1039, %v2461
    %2463 = vmatmul.mubr.f32.gmra.mrb[0].mxu0 %v2462
    %v2464 = vpop.f32.mrb[0].mxu0
    %v2465 = vadd.f32 %v2013, %v2464
    %v2466 = vpop.f32.mrb[0].mxu0
    %2467 = vmatprep.mubr.f32.mxu0 0.0
    %v2468 = vand.u32 %v1042, 4294901760
    %v2469 = vsub.f32 %v1042, %v2468
    %2470 = vmatmul.mubr.f32.gmra.mrb[0].mxu0 %v2469
    %v2471 = vpop.f32.mrb[0].mxu0
    %v2472 = vadd.f32 %v2019, %v2471
    %v2473 = vpop.f32.mrb[0].mxu0
    %2474 = vmatprep.mubr.f32.mxu0 0.0
    %v2475 = vand.u32 %v1045, 4294901760
    %v2476 = vsub.f32 %v1045, %v2475
    %2477 = vmatmul.mubr.f32.gmra.mrb[0].mxu0 %v2476
    %v2478 = vpop.f32.mrb[0].mxu0
    %v2479 = vadd.f32 %v2025, %v2478
    %v2480 = vpop.f32.mrb[0].mxu0
    %2481 = vmatprep.mubr.f32.mxu0 0.0
    %v2482 = vand.u32 %v1048, 4294901760
    %v2483 = vsub.f32 %v1048, %v2482
    %2484 = vmatmul.mubr.f32.gmra.mrb[0].mxu0 %v2483
    %v2485 = vpop.f32.mrb[0].mxu0
    %v2486 = vadd.f32 %v2031, %v2485
    %v2487 = vpop.f32.mrb[0].mxu0
    %2488 = vmatprep.mubr.f32.mxu0 0.0
    %v2489 = vand.u32 %v1051, 4294901760
    %v2490 = vsub.f32 %v1051, %v2489
    %2491 = vmatmul.mubr.f32.gmra.mrb[0].mxu0 %v2490
    %v2492 = vpop.f32.mrb[0].mxu0
    %v2493 = vadd.f32 %v2037, %v2492
    %v2494 = vpop.f32.mrb[0].mxu0
    %2495 = vmatprep.mubr.f32.mxu0 0.0
    %v2496 = vand.u32 %v1054, 4294901760
    %v2497 = vsub.f32 %v1054, %v2496
    %2498 = vmatmul.mubr.f32.gmra.mrb[0].mxu0 %v2497
    %v2499 = vpop.f32.mrb[0].mxu0
    %v2500 = vadd.f32 %v2043, %v2499
    %v2501 = vpop.f32.mrb[0].mxu0
    %2502 = vmatprep.mubr.f32.mxu0 0.0
    %v2503 = vand.u32 %v1057, 4294901760
    %v2504 = vsub.f32 %v1057, %v2503
    %2505 = vmatmul.mubr.f32.gmra.mrb[0].mxu0 %v2504
    %v2506 = vpop.f32.mrb[0].mxu0
    %v2507 = vadd.f32 %v2049, %v2506
    %v2508 = vpop.f32.mrb[0].mxu0
    %2509 = vmatprep.mubr.f32.mxu0 0.0
    %v2510 = vand.u32 %v1060, 4294901760
    %v2511 = vsub.f32 %v1060, %v2510
    %2512 = vmatmul.mubr.f32.gmra.mrb[0].mxu0 %v2511
    %v2513 = vpop.f32.mrb[0].mxu0
    %v2514 = vadd.f32 %v2055, %v2513
    %v2515 = vpop.f32.mrb[0].mxu0
    %2516 = vmatprep.mubr.f32.mxu0 0.0
    %v2517 = vand.u32 %v1063, 4294901760
    %v2518 = vsub.f32 %v1063, %v2517
    %2519 = vmatmul.mubr.f32.gmra.mrb[0].mxu0 %v2518
    %v2520 = vpop.f32.mrb[0].mxu0
    %v2521 = vadd.f32 %v2061, %v2520
    %v2522 = vpop.f32.mrb[0].mxu0
    %2523 = vmatprep.mubr.f32.mxu0 0.0
    %v2524 = vand.u32 %v1066, 4294901760
    %v2525 = vsub.f32 %v1066, %v2524
    %2526 = vmatmul.mubr.f32.gmra.mrb[0].mxu0 %v2525
    %v2527 = vpop.f32.mrb[0].mxu0
    %v2528 = vadd.f32 %v2067, %v2527
    %v2529 = vpop.f32.mrb[0].mxu0
    %2530 = vmatprep.mubr.f32.mxu0 0.0
    %v2531 = vand.u32 %v1069, 4294901760
    %v2532 = vsub.f32 %v1069, %v2531
    %2533 = vmatmul.mubr.f32.gmra.mrb[0].mxu0 %v2532
    %v2534 = vpop.f32.mrb[0].mxu0
    %v2535 = vadd.f32 %v2073, %v2534
    %v2536 = vpop.f32.mrb[0].mxu0
    %2537 = vmatprep.mubr.f32.mxu0 0.0
    %v2538 = vand.u32 %v1072, 4294901760
    %v2539 = vsub.f32 %v1072, %v2538
    %2540 = vmatmul.mubr.f32.gmra.mrb[0].mxu0 %v2539
    %v2541 = vpop.f32.mrb[0].mxu0
    %v2542 = vadd.f32 %v2079, %v2541
    %v2543 = vpop.f32.mrb[0].mxu0
    %2544 = vmatprep.mubr.f32.mxu0 0.0
    %v2545 = vand.u32 %v1075, 4294901760
    %v2546 = vsub.f32 %v1075, %v2545
    %2547 = vmatmul.mubr.f32.gmra.mrb[0].mxu0 %v2546
    %v2548 = vpop.f32.mrb[0].mxu0
    %v2549 = vadd.f32 %v2085, %v2548
    %v2550 = vpop.f32.mrb[0].mxu0
    %2551 = vmatprep.mubr.f32.mxu0 0.0
    %v2552 = vand.u32 %v1078, 4294901760
    %v2553 = vsub.f32 %v1078, %v2552
    %2554 = vmatmul.mubr.f32.gmra.mrb[0].mxu0 %v2553
    %v2555 = vpop.f32.mrb[0].mxu0
    %v2556 = vadd.f32 %v2091, %v2555
    %v2557 = vpop.f32.mrb[0].mxu0
    %2558 = vmatprep.mubr.f32.mxu0 0.0
    %v2559 = vand.u32 %v1081, 4294901760
    %v2560 = vsub.f32 %v1081, %v2559
    %2561 = vmatmul.mubr.f32.gmra.mrb[0].mxu0 %v2560
    %v2562 = vpop.f32.mrb[0].mxu0
    %v2563 = vadd.f32 %v2097, %v2562
    %v2564 = vpop.f32.mrb[0].mxu0
    %2565 = vmatprep.mubr.f32.mxu0 0.0
    %v2566 = vand.u32 %v1084, 4294901760
    %v2567 = vsub.f32 %v1084, %v2566
    %2568 = vmatmul.mubr.f32.gmra.mrb[0].mxu0 %v2567
    %v2569 = vpop.f32.mrb[0].mxu0
    %v2570 = vadd.f32 %v2103, %v2569
    %v2571 = vpop.f32.mrb[0].mxu0
    %2572 = vmatprep.mubr.f32.mxu0 0.0
    %v2573 = vand.u32 %v1087, 4294901760
    %v2574 = vsub.f32 %v1087, %v2573
    %2575 = vmatmul.mubr.f32.gmra.mrb[0].mxu0 %v2574
    %v2576 = vpop.f32.mrb[0].mxu0
    %v2577 = vadd.f32 %v2109, %v2576
    %v2578 = vpop.f32.mrb[0].mxu0
    %2579 = vmatprep.mubr.f32.mxu0 0.0
    %v2580 = vand.u32 %v1090, 4294901760
    %v2581 = vsub.f32 %v1090, %v2580
    %2582 = vmatmul.mubr.f32.gmra.mrb[0].mxu0 %v2581
    %v2583 = vpop.f32.mrb[0].mxu0
    %v2584 = vadd.f32 %v2115, %v2583
    %v2585 = vpop.f32.mrb[0].mxu0
    %2586 = vmatprep.mubr.f32.mxu0 0.0
    %v2587 = vand.u32 %v1093, 4294901760
    %v2588 = vsub.f32 %v1093, %v2587
    %2589 = vmatmul.mubr.f32.gmra.mrb[0].mxu0 %v2588
    %v2590 = vpop.f32.mrb[0].mxu0
    %v2591 = vadd.f32 %v2121, %v2590
    %v2592 = vpop.f32.mrb[0].mxu0
    %2593 = vmatprep.mubr.f32.mxu0 0.0
    %v2594 = vand.u32 %v1096, 4294901760
    %v2595 = vsub.f32 %v1096, %v2594
    %2596 = vmatmul.mubr.f32.gmra.mrb[0].mxu0 %v2595
    %v2597 = vpop.f32.mrb[0].mxu0
    %v2598 = vadd.f32 %v2127, %v2597
    %v2599 = vpop.f32.mrb[0].mxu0
    %2600 = vmatprep.mubr.f32.mxu0 0.0
    %v2601 = vand.u32 %v1099, 4294901760
    %v2602 = vsub.f32 %v1099, %v2601
    %2603 = vmatmul.mubr.f32.gmra.mrb[0].mxu0 %v2602
    %v2604 = vpop.f32.mrb[0].mxu0
    %v2605 = vadd.f32 %v2133, %v2604
    %v2606 = vpop.f32.mrb[0].mxu0
    %2607 = vmatprep.mubr.f32.mxu0 0.0
    %v2608 = vand.u32 %v1102, 4294901760
    %v2609 = vsub.f32 %v1102, %v2608
    %2610 = vmatmul.mubr.f32.gmra.mrb[0].mxu0 %v2609
    %v2611 = vpop.f32.mrb[0].mxu0
    %v2612 = vadd.f32 %v2139, %v2611
    %v2613 = vpop.f32.mrb[0].mxu0
    %2614 = vmatprep.mubr.f32.mxu0 0.0
    %v2615 = vand.u32 %v1105, 4294901760
    %v2616 = vsub.f32 %v1105, %v2615
    %2617 = vmatmul.mubr.f32.gmra.mrb[0].mxu0 %v2616
    %v2618 = vpop.f32.mrb[0].mxu0
    %v2619 = vadd.f32 %v2145, %v2618
    %v2620 = vpop.f32.mrb[0].mxu0
    %2621 = vmatprep.mubr.f32.mxu0 0.0
    %v2622 = vand.u32 %v1108, 4294901760
    %v2623 = vsub.f32 %v1108, %v2622
    %2624 = vmatmul.mubr.f32.gmra.mrb[0].mxu0 %v2623
    %v2625 = vpop.f32.mrb[0].mxu0
    %v2626 = vadd.f32 %v2151, %v2625
    %v2627 = vpop.f32.mrb[0].mxu0
    %2628 = vmatprep.mubr.f32.mxu0 0.0
    %v2629 = vand.u32 %v1111, 4294901760
    %v2630 = vsub.f32 %v1111, %v2629
    %2631 = vmatmul.mubr.f32.gmra.mrb[0].mxu0 %v2630
    %v2632 = vpop.f32.mrb[0].mxu0
    %v2633 = vadd.f32 %v2157, %v2632
    %v2634 = vpop.f32.mrb[0].mxu0
    %2635 = vmatprep.mubr.f32.mxu0 0.0
    %v2636 = vand.u32 %v1114, 4294901760
    %v2637 = vsub.f32 %v1114, %v2636
    %2638 = vmatmul.mubr.f32.gmra.mrb[0].mxu0 %v2637
    %v2639 = vpop.f32.mrb[0].mxu0
    %v2640 = vadd.f32 %v2163, %v2639
    %v2641 = vpop.f32.mrb[0].mxu0
    %2642 = vmatprep.mubr.f32.mxu0 0.0
    %v2643 = vand.u32 %v1117, 4294901760
    %v2644 = vsub.f32 %v1117, %v2643
    %2645 = vmatmul.mubr.f32.gmra.mrb[0].mxu0 %v2644
    %v2646 = vpop.f32.mrb[0].mxu0
    %v2647 = vadd.f32 %v2169, %v2646
    %v2648 = vpop.f32.mrb[0].mxu0
    %2649 = vmatprep.mubr.f32.mxu0 0.0
    %v2650 = vand.u32 %v1120, 4294901760
    %v2651 = vsub.f32 %v1120, %v2650
    %2652 = vmatmul.mubr.f32.gmra.mrb[0].mxu0 %v2651
    %v2653 = vpop.f32.mrb[0].mxu0
    %v2654 = vadd.f32 %v2175, %v2653
    %v2655 = vpop.f32.mrb[0].mxu0
    %2656 = vmatprep.mubr.f32.mxu0 0.0
    %v2657 = vand.u32 %v1123, 4294901760
    %v2658 = vsub.f32 %v1123, %v2657
    %2659 = vmatmul.mubr.f32.gmra.mrb[0].mxu0 %v2658
    %v2660 = vpop.f32.mrb[0].mxu0
    %v2661 = vadd.f32 %v2181, %v2660
    %v2662 = vpop.f32.mrb[0].mxu0
    %2663 = vmatprep.mubr.f32.mxu0 0.0
    %v2664 = vand.u32 %v1126, 4294901760
    %v2665 = vsub.f32 %v1126, %v2664
    %2666 = vmatmul.mubr.f32.gmra.mrb[0].mxu0 %v2665
    %v2667 = vpop.f32.mrb[0].mxu0
    %v2668 = vadd.f32 %v2187, %v2667
    %v2669 = vpop.f32.mrb[0].mxu0
    %2670 = vmatprep.mubr.f32.mxu0 0.0
    %v2671 = vand.u32 %v1129, 4294901760
    %v2672 = vsub.f32 %v1129, %v2671
    %2673 = vmatmul.mubr.f32.gmra.mrb[0].mxu0 %v2672
    %v2674 = vpop.f32.mrb[0].mxu0
    %v2675 = vadd.f32 %v2193, %v2674
    %v2676 = vpop.f32.mrb[0].mxu0
    %2677 = vmatprep.mubr.f32.mxu0 0.0
    %v2678 = vand.u32 %v1132, 4294901760
    %v2679 = vsub.f32 %v1132, %v2678
    %2680 = vmatmul.mubr.f32.gmra.mrb[0].mxu0 %v2679
    %v2681 = vpop.f32.mrb[0].mxu0
    %v2682 = vadd.f32 %v2199, %v2681
    %v2683 = vpop.f32.mrb[0].mxu0
    %2684 = vmatprep.mubr.f32.mxu0 0.0
    %v2685 = vand.u32 %v1135, 4294901760
    %v2686 = vsub.f32 %v1135, %v2685
    %2687 = vmatmul.mubr.f32.gmra.mrb[0].mxu0 %v2686
    %v2688 = vpop.f32.mrb[0].mxu0
    %v2689 = vadd.f32 %v2205, %v2688
    %v2690 = vpop.f32.mrb[0].mxu0
    %2691 = vmatprep.mubr.f32.mxu0 0.0
    %v2692 = vand.u32 %v1138, 4294901760
    %v2693 = vsub.f32 %v1138, %v2692
    %2694 = vmatmul.mubr.f32.gmra.mrb[0].mxu0 %v2693
    %v2695 = vpop.f32.mrb[0].mxu0
    %v2696 = vadd.f32 %v2211, %v2695
    %v2697 = vpop.f32.mrb[0].mxu0
    %2698 = vmatprep.mubr.f32.mxu0 0.0
    %v2699 = vand.u32 %v1141, 4294901760
    %v2700 = vsub.f32 %v1141, %v2699
    %2701 = vmatmul.mubr.f32.gmra.mrb[0].mxu0 %v2700
    %v2702 = vpop.f32.mrb[0].mxu0
    %v2703 = vadd.f32 %v2217, %v2702
    %v2704 = vpop.f32.mrb[0].mxu0
    %2705 = vmatprep.mubr.f32.mxu0 0.0
    %v2706 = vand.u32 %v1144, 4294901760
    %v2707 = vsub.f32 %v1144, %v2706
    %2708 = vmatmul.mubr.f32.gmra.mrb[0].mxu0 %v2707
    %v2709 = vpop.f32.mrb[0].mxu0
    %v2710 = vadd.f32 %v2223, %v2709
    %v2711 = vpop.f32.mrb[0].mxu0
    %2712 = vmatprep.mubr.f32.mxu0 0.0
    %v2713 = vand.u32 %v1147, 4294901760
    %v2714 = vsub.f32 %v1147, %v2713
    %2715 = vmatmul.mubr.f32.gmra.mrb[0].mxu0 %v2714
    %v2716 = vpop.f32.mrb[0].mxu0
    %v2717 = vadd.f32 %v2229, %v2716
    %v2718 = vpop.f32.mrb[0].mxu0
    %2719 = vmatprep.mubr.f32.mxu0 0.0
    %v2720 = vand.u32 %v1150, 4294901760
    %v2721 = vsub.f32 %v1150, %v2720
    %2722 = vmatmul.mubr.f32.gmra.mrb[0].mxu0 %v2721
    %v2723 = vpop.f32.mrb[0].mxu0
    %v2724 = vadd.f32 %v2235, %v2723
    %v2725 = vpop.f32.mrb[0].mxu0
    %2726 = vmatprep.mubr.f32.mxu0 0.0
    %v2727 = vand.u32 %v1153, 4294901760
    %v2728 = vsub.f32 %v1153, %v2727
    %2729 = vmatmul.mubr.f32.gmra.mrb[0].mxu0 %v2728
    %v2730 = vpop.f32.mrb[0].mxu0
    %v2731 = vadd.f32 %v2241, %v2730
    %v2732 = vpop.f32.mrb[0].mxu0
    %2733 = vmatprep.mubr.f32.mxu0 0.0
    %v2734 = vand.u32 %v1156, 4294901760
    %v2735 = vsub.f32 %v1156, %v2734
    %2736 = vmatmul.mubr.f32.gmra.mrb[0].mxu0 %v2735
    %v2737 = vpop.f32.mrb[0].mxu0
    %v2738 = vadd.f32 %v2247, %v2737
    %v2739 = vpop.f32.mrb[0].mxu0
    %2740 = vmatprep.mubr.f32.mxu0 0.0
    %v2741 = vand.u32 %v1159, 4294901760
    %v2742 = vsub.f32 %v1159, %v2741
    %2743 = vmatmul.mubr.f32.gmra.mrb[0].mxu0 %v2742
    %v2744 = vpop.f32.mrb[0].mxu0
    %v2745 = vadd.f32 %v2253, %v2744
    %v2746 = vpop.f32.mrb[0].mxu0
    %2747 = vmatprep.mubr.f32.mxu0 0.0
    %v2748 = vand.u32 %v1162, 4294901760
    %v2749 = vsub.f32 %v1162, %v2748
    %2750 = vmatmul.mubr.f32.gmra.mrb[0].mxu0 %v2749
    %v2751 = vpop.f32.mrb[0].mxu0
    %v2752 = vadd.f32 %v2259, %v2751
    %v2753 = vpop.f32.mrb[0].mxu0
    %2754 = vmatprep.mubr.f32.mxu0 0.0
    %v2755 = vand.u32 %v1165, 4294901760
    %v2756 = vsub.f32 %v1165, %v2755
    %2757 = vmatmul.mubr.f32.gmra.mrb[0].mxu0 %v2756
    %v2758 = vpop.f32.mrb[0].mxu0
    %v2759 = vadd.f32 %v2265, %v2758
    %v2760 = vpop.f32.mrb[0].mxu0
    %2761 = vmatprep.mubr.f32.mxu0 0.0
    %v2762 = vand.u32 %v1168, 4294901760
    %v2763 = vsub.f32 %v1168, %v2762
    %2764 = vmatmul.mubr.f32.gmra.mrb[0].mxu0 %v2763
    %v2765 = vpop.f32.mrb[0].mxu0
    %v2766 = vadd.f32 %v2271, %v2765
    %v2767 = vpop.f32.mrb[0].mxu0
    %2768 = vmatprep.mubr.f32.mxu0 0.0
    %v2769 = vand.u32 %v1171, 4294901760
    %v2770 = vsub.f32 %v1171, %v2769
    %2771 = vmatmul.mubr.f32.gmra.mrb[0].mxu0 %v2770
    %v2772 = vpop.f32.mrb[0].mxu0
    %v2773 = vadd.f32 %v2277, %v2772
    %v2774 = vpop.f32.mrb[0].mxu0
    %2775 = vmatprep.mubr.f32.mxu0 0.0
    %v2776 = vand.u32 %v1174, 4294901760
    %v2777 = vsub.f32 %v1174, %v2776
    %2778 = vmatmul.mubr.f32.gmra.mrb[0].mxu0 %v2777
    %v2779 = vpop.f32.mrb[0].mxu0
    %v2780 = vadd.f32 %v2283, %v2779
    %v2781 = vpop.f32.mrb[0].mxu0
    %2782 = vmatprep.mubr.f32.mxu0 0.0
    %v2783 = vand.u32 %v1177, 4294901760
    %v2784 = vsub.f32 %v1177, %v2783
    %2785 = vmatmul.mubr.f32.gmra.mrb[0].mxu0 %v2784
    %v2786 = vpop.f32.mrb[0].mxu0
    %v2787 = vadd.f32 %v2289, %v2786
    %v2788 = vpop.f32.mrb[0].mxu0
    %2789 = vmatprep.mubr.f32.mxu0 0.0
    %v2790 = vand.u32 %v1180, 4294901760
    %v2791 = vsub.f32 %v1180, %v2790
    %2792 = vmatmul.mubr.f32.gmra.mrb[0].mxu0 %v2791
    %v2793 = vpop.f32.mrb[0].mxu0
    %v2794 = vadd.f32 %v2295, %v2793
    %v2795 = vpop.f32.mrb[0].mxu0
    %2796 = vmatprep.mubr.f32.mxu0 0.0
    %v2797 = vand.u32 %v1183, 4294901760
    %v2798 = vsub.f32 %v1183, %v2797
    %2799 = vmatmul.mubr.f32.gmra.mrb[0].mxu0 %v2798
    %v2800 = vpop.f32.mrb[0].mxu0
    %v2801 = vadd.f32 %v2301, %v2800
    %v2802 = vpop.f32.mrb[0].mxu0
    %2803 = vmatprep.mubr.f32.mxu0 0.0
    %v2804 = vand.u32 %v1186, 4294901760
    %v2805 = vsub.f32 %v1186, %v2804
    %2806 = vmatmul.mubr.f32.gmra.mrb[0].mxu0 %v2805
    %v2807 = vpop.f32.mrb[0].mxu0
    %v2808 = vadd.f32 %v2307, %v2807
    %v2809 = vpop.f32.mrb[0].mxu0
    %2810 = vmatprep.mubr.f32.mxu0 0.0
    %v2811 = vand.u32 %v1189, 4294901760
    %v2812 = vsub.f32 %v1189, %v2811
    %2813 = vmatmul.mubr.f32.gmra.mrb[0].mxu0 %v2812
    %v2814 = vpop.f32.mrb[0].mxu0
    %v2815 = vadd.f32 %v2313, %v2814
    %v2816 = vpop.f32.mrb[0].mxu0
    %2817 = vmatprep.mubr.f32.mxu0 0.0
    %v2818 = vand.u32 %v1192, 4294901760
    %v2819 = vsub.f32 %v1192, %v2818
    %2820 = vmatmul.mubr.f32.gmra.mrb[0].mxu0 %v2819
    %v2821 = vpop.f32.mrb[0].mxu0
    %v2822 = vadd.f32 %v2319, %v2821
    %v2823 = vpop.f32.mrb[0].mxu0
    %2824 = vmatprep.mubr.f32.mxu0 0.0
    %v2825 = vand.u32 %v1195, 4294901760
    %v2826 = vsub.f32 %v1195, %v2825
    %2827 = vmatmul.mubr.f32.gmra.mrb[0].mxu0 %v2826
    %v2828 = vpop.f32.mrb[0].mxu0
    %v2829 = vadd.f32 %v2325, %v2828
    %v2830 = vpop.f32.mrb[0].mxu0
    %2831 = vmatprep.mubr.f32.mxu0 0.0
    %v2832 = vand.u32 %v1198, 4294901760
    %v2833 = vsub.f32 %v1198, %v2832
    %2834 = vmatmul.mubr.f32.gmra.mrb[0].mxu0 %v2833
    %v2835 = vpop.f32.mrb[0].mxu0
    %v2836 = vadd.f32 %v2331, %v2835
    %v2837 = vpop.f32.mrb[0].mxu0
    %2838 = vmatprep.mubr.f32.mxu0 0.0
    %v2839 = vand.u32 %v1201, 4294901760
    %v2840 = vsub.f32 %v1201, %v2839
    %2841 = vmatmul.mubr.f32.gmra.mrb[0].mxu0 %v2840
    %v2842 = vpop.f32.mrb[0].mxu0
    %v2843 = vadd.f32 %v2337, %v2842
    %v2844 = vpop.f32.mrb[0].mxu0
    %2845 = vmatprep.mubr.f32.mxu0 0.0
    %v2846 = vand.u32 %v1204, 4294901760
    %v2847 = vsub.f32 %v1204, %v2846
    %2848 = vmatmul.mubr.f32.gmra.mrb[0].mxu0 %v2847
    %v2849 = vpop.f32.mrb[0].mxu0
    %v2850 = vadd.f32 %v2343, %v2849
    %v2851 = vpop.f32.mrb[0].mxu0
    %2852 = vmatprep.mubr.f32.mxu0 0.0
    %v2853 = vand.u32 %v1207, 4294901760
    %v2854 = vsub.f32 %v1207, %v2853
    %2855 = vmatmul.mubr.f32.gmra.mrb[0].mxu0 %v2854
    %v2856 = vpop.f32.mrb[0].mxu0
    %v2857 = vadd.f32 %v2349, %v2856
    %v2858 = vpop.f32.mrb[0].mxu0
    %2859 = vmatprep.mubr.f32.mxu0 0.0
    %v2860 = vand.u32 %v1210, 4294901760
    %v2861 = vsub.f32 %v1210, %v2860
    %2862 = vmatmul.mubr.f32.gmra.mrb[0].mxu0 %v2861
    %v2863 = vpop.f32.mrb[0].mxu0
    %v2864 = vadd.f32 %v2355, %v2863
    %v2865 = vpop.f32.mrb[0].mxu0
    %2866 = vmatprep.mubr.f32.mxu0 0.0
    %v2867 = vand.u32 %v1213, 4294901760
    %v2868 = vsub.f32 %v1213, %v2867
    %2869 = vmatmul.mubr.f32.gmra.mrb[0].mxu0 %v2868
    %v2870 = vpop.f32.mrb[0].mxu0
    %v2871 = vadd.f32 %v2361, %v2870
    %v2872 = vpop.f32.mrb[0].mxu0
    %2873 = vmatprep.mubr.f32.mxu0 0.0
    %v2874 = vand.u32 %v1216, 4294901760
    %v2875 = vsub.f32 %v1216, %v2874
    %2876 = vmatmul.mubr.f32.gmra.mrb[0].mxu0 %v2875
    %v2877 = vpop.f32.mrb[0].mxu0
    %v2878 = vadd.f32 %v2367, %v2877
    %v2879 = vpop.f32.mrb[0].mxu0
    %2880 = vmatprep.mubr.f32.mxu0 0.0
    %v2881 = vand.u32 %v1219, 4294901760
    %v2882 = vsub.f32 %v1219, %v2881
    %2883 = vmatmul.mubr.f32.gmra.mrb[0].mxu0 %v2882
    %v2884 = vpop.f32.mrb[0].mxu0
    %v2885 = vadd.f32 %v2373, %v2884
    %v2886 = vpop.f32.mrb[0].mxu0
    %2887 = vmatprep.mubr.f32.mxu0 0.0
    %v2888 = vand.u32 %v1222, 4294901760
    %v2889 = vsub.f32 %v1222, %v2888
    %2890 = vmatmul.mubr.f32.gmra.mrb[0].mxu0 %v2889
    %v2891 = vpop.f32.mrb[0].mxu0
    %v2892 = vadd.f32 %v2379, %v2891
    %v2893 = vpop.f32.mrb[0].mxu0
    %2894 = vmatprep.mubr.f32.mxu0 0.0
    %v2895 = vand.u32 %v1225, 4294901760
    %v2896 = vsub.f32 %v1225, %v2895
    %2897 = vmatmul.mubr.f32.gmra.mrb[0].mxu0 %v2896
    %v2898 = vpop.f32.mrb[0].mxu0
    %v2899 = vadd.f32 %v2385, %v2898
    %v2900 = vpop.f32.mrb[0].mxu0
    %2901 = vmatprep.mubr.f32.mxu0 0.0
    %v2902 = vand.u32 %v1228, 4294901760
    %v2903 = vsub.f32 %v1228, %v2902
    %2904 = vmatmul.mubr.f32.gmra.mrb[0].mxu0 %v2903
    %v2905 = vpop.f32.mrb[0].mxu0
    %v2906 = vadd.f32 %v2391, %v2905
    %v2907 = vpop.f32.mrb[0].mxu0
    %2908 = vdwg.mxu0
    %2909 = vmatprep.subr.mxu0 0.0
    %v2910 = vand.u32 %v1232, 4294901760
    %2911 = vmatpush1.msra.mxu0 %v2910
    %2912 = vmatprep.subr.mxu0 0.0
    %2913 = vmatpush1.msra.mxu0 0.0
    %2914 = vmatprep.subr.mxu0 0.0
    %2915 = vmatpush1.msra.mxu0 0.0
    %2916 = vmatprep.subr.mxu0 0.0
    %2917 = vmatpush1.msra.mxu0 0.0
    %2918 = vmatprep.subr.mxu0 0.0
    %2919 = vmatpush1.msra.mxu0 0.0
    %2920 = vmatprep.subr.mxu0 0.0
    %2921 = vmatpush1.msra.mxu0 0.0
    %2922 = vmatprep.subr.mxu0 0.0
    %2923 = vmatpush1.msra.mxu0 0.0
    %2924 = vmatprep.subr.mxu0 0.0
    %2925 = vmatpush1.msra.mxu0 0.0
    %2926 = vmatprep.subr.mxu0 0.0
    %2927 = vmatpush1.msra.mxu0 0.0
    %2928 = vmatprep.subr.mxu0 0.0
    %2929 = vmatpush1.msra.mxu0 0.0
    %2930 = vmatprep.subr.mxu0 0.0
    %2931 = vmatpush1.msra.mxu0 0.0
    %2932 = vmatprep.subr.mxu0 0.0
    %2933 = vmatpush1.msra.mxu0 0.0
    %2934 = vmatprep.subr.mxu0 0.0
    %2935 = vmatpush1.msra.mxu0 0.0
    %2936 = vmatprep.subr.mxu0 0.0
    %2937 = vmatpush1.msra.mxu0 0.0
    %2938 = vmatprep.subr.mxu0 0.0
    %2939 = vmatpush1.msra.mxu0 0.0
    %2940 = vmatprep.subr.mxu0 0.0
    %2941 = vmatpush1.msra.mxu0 0.0
    %2942 = vmatprep.subr.mxu0 0.0
    %2943 = vmatpush1.msra.mxu0 0.0
    %2944 = vmatprep.subr.mxu0 0.0
    %2945 = vmatpush1.msra.mxu0 0.0
    %2946 = vmatprep.subr.mxu0 0.0
    %2947 = vmatpush1.msra.mxu0 0.0
    %2948 = vmatprep.subr.mxu0 0.0
    %2949 = vmatpush1.msra.mxu0 0.0
    %2950 = vmatprep.subr.mxu0 0.0
    %2951 = vmatpush1.msra.mxu0 0.0
    %2952 = vmatprep.subr.mxu0 0.0
    %2953 = vmatpush1.msra.mxu0 0.0
    %2954 = vmatprep.subr.mxu0 0.0
    %2955 = vmatpush1.msra.mxu0 0.0
    %2956 = vmatprep.subr.mxu0 0.0
    %2957 = vmatpush1.msra.mxu0 0.0
    %2958 = vmatprep.subr.mxu0 0.0
    %2959 = vmatpush1.msra.mxu0 0.0
    %2960 = vmatprep.subr.mxu0 0.0
    %2961 = vmatpush1.msra.mxu0 0.0
    %2962 = vmatprep.subr.mxu0 0.0
    %2963 = vmatpush1.msra.mxu0 0.0
    %2964 = vmatprep.subr.mxu0 0.0
    %2965 = vmatpush1.msra.mxu0 0.0
    %2966 = vmatprep.subr.mxu0 0.0
    %2967 = vmatpush1.msra.mxu0 0.0
    %2968 = vmatprep.subr.mxu0 0.0
    %2969 = vmatpush1.msra.mxu0 0.0
    %2970 = vmatprep.subr.mxu0 0.0
    %2971 = vmatpush1.msra.mxu0 0.0
    %2972 = vmatprep.subr.mxu0 0.0
    %2973 = vmatpush1.msra.mxu0 0.0
    %2974 = vmatprep.mubr.f32.mxu0 0.0
    %v2975 = vand.u32 %v1039, 4294901760
    %v2976 = vsub.f32 %v1039, %v2975
    %v2977 = vand.u32 %v2976, 4294901760
    %2978 = vmatmul.mubr.f32.gmra.mrb[0].mxu0 %v2977
    %v2979 = vpop.f32.mrb[0].mxu0
    %v2980 = vadd.f32 %v2465, %v2979
    %v2981 = vpop.f32.mrb[0].mxu0
    %2982 = vmatprep.mubr.f32.mxu0 0.0
    %v2983 = vand.u32 %v1042, 4294901760
    %v2984 = vsub.f32 %v1042, %v2983
    %v2985 = vand.u32 %v2984, 4294901760
    %2986 = vmatmul.mubr.f32.gmra.mrb[0].mxu0 %v2985
    %v2987 = vpop.f32.mrb[0].mxu0
    %v2988 = vadd.f32 %v2472, %v2987
    %v2989 = vpop.f32.mrb[0].mxu0
    %2990 = vmatprep.mubr.f32.mxu0 0.0
    %v2991 = vand.u32 %v1045, 4294901760
    %v2992 = vsub.f32 %v1045, %v2991
    %v2993 = vand.u32 %v2992, 4294901760
    %2994 = vmatmul.mubr.f32.gmra.mrb[0].mxu0 %v2993
    %v2995 = vpop.f32.mrb[0].mxu0
    %v2996 = vadd.f32 %v2479, %v2995
    %v2997 = vpop.f32.mrb[0].mxu0
    %2998 = vmatprep.mubr.f32.mxu0 0.0
    %v2999 = vand.u32 %v1048, 4294901760
    %v3000 = vsub.f32 %v1048, %v2999
    %v3001 = vand.u32 %v3000, 4294901760
    %3002 = vmatmul.mubr.f32.gmra.mrb[0].mxu0 %v3001
    %v3003 = vpop.f32.mrb[0].mxu0
    %v3004 = vadd.f32 %v2486, %v3003
    %v3005 = vpop.f32.mrb[0].mxu0
    %3006 = vmatprep.mubr.f32.mxu0 0.0
    %v3007 = vand.u32 %v1051, 4294901760
    %v3008 = vsub.f32 %v1051, %v3007
    %v3009 = vand.u32 %v3008, 4294901760
    %3010 = vmatmul.mubr.f32.gmra.mrb[0].mxu0 %v3009
    %v3011 = vpop.f32.mrb[0].mxu0
    %v3012 = vadd.f32 %v2493, %v3011
    %v3013 = vpop.f32.mrb[0].mxu0
    %3014 = vmatprep.mubr.f32.mxu0 0.0
    %v3015 = vand.u32 %v1054, 4294901760
    %v3016 = vsub.f32 %v1054, %v3015
    %v3017 = vand.u32 %v3016, 4294901760
    %3018 = vmatmul.mubr.f32.gmra.mrb[0].mxu0 %v3017
    %v3019 = vpop.f32.mrb[0].mxu0
    %v3020 = vadd.f32 %v2500, %v3019
    %v3021 = vpop.f32.mrb[0].mxu0
    %3022 = vmatprep.mubr.f32.mxu0 0.0
    %v3023 = vand.u32 %v1057, 4294901760
    %v3024 = vsub.f32 %v1057, %v3023
    %v3025 = vand.u32 %v3024, 4294901760
    %3026 = vmatmul.mubr.f32.gmra.mrb[0].mxu0 %v3025
    %v3027 = vpop.f32.mrb[0].mxu0
    %v3028 = vadd.f32 %v2507, %v3027
    %v3029 = vpop.f32.mrb[0].mxu0
    %3030 = vmatprep.mubr.f32.mxu0 0.0
    %v3031 = vand.u32 %v1060, 4294901760
    %v3032 = vsub.f32 %v1060, %v3031
    %v3033 = vand.u32 %v3032, 4294901760
    %3034 = vmatmul.mubr.f32.gmra.mrb[0].mxu0 %v3033
    %v3035 = vpop.f32.mrb[0].mxu0
    %v3036 = vadd.f32 %v2514, %v3035
    %v3037 = vpop.f32.mrb[0].mxu0
    %3038 = vmatprep.mubr.f32.mxu0 0.0
    %v3039 = vand.u32 %v1063, 4294901760
    %v3040 = vsub.f32 %v1063, %v3039
    %v3041 = vand.u32 %v3040, 4294901760
    %3042 = vmatmul.mubr.f32.gmra.mrb[0].mxu0 %v3041
    %v3043 = vpop.f32.mrb[0].mxu0
    %v3044 = vadd.f32 %v2521, %v3043
    %v3045 = vpop.f32.mrb[0].mxu0
    %3046 = vmatprep.mubr.f32.mxu0 0.0
    %v3047 = vand.u32 %v1066, 4294901760
    %v3048 = vsub.f32 %v1066, %v3047
    %v3049 = vand.u32 %v3048, 4294901760
    %3050 = vmatmul.mubr.f32.gmra.mrb[0].mxu0 %v3049
    %v3051 = vpop.f32.mrb[0].mxu0
    %v3052 = vadd.f32 %v2528, %v3051
    %v3053 = vpop.f32.mrb[0].mxu0
    %3054 = vmatprep.mubr.f32.mxu0 0.0
    %v3055 = vand.u32 %v1069, 4294901760
    %v3056 = vsub.f32 %v1069, %v3055
    %v3057 = vand.u32 %v3056, 4294901760
    %3058 = vmatmul.mubr.f32.gmra.mrb[0].mxu0 %v3057
    %v3059 = vpop.f32.mrb[0].mxu0
    %v3060 = vadd.f32 %v2535, %v3059
    %v3061 = vpop.f32.mrb[0].mxu0
    %3062 = vmatprep.mubr.f32.mxu0 0.0
    %v3063 = vand.u32 %v1072, 4294901760
    %v3064 = vsub.f32 %v1072, %v3063
    %v3065 = vand.u32 %v3064, 4294901760
    %3066 = vmatmul.mubr.f32.gmra.mrb[0].mxu0 %v3065
    %v3067 = vpop.f32.mrb[0].mxu0
    %v3068 = vadd.f32 %v2542, %v3067
    %v3069 = vpop.f32.mrb[0].mxu0
    %3070 = vmatprep.mubr.f32.mxu0 0.0
    %v3071 = vand.u32 %v1075, 4294901760
    %v3072 = vsub.f32 %v1075, %v3071
    %v3073 = vand.u32 %v3072, 4294901760
    %3074 = vmatmul.mubr.f32.gmra.mrb[0].mxu0 %v3073
    %v3075 = vpop.f32.mrb[0].mxu0
    %v3076 = vadd.f32 %v2549, %v3075
    %v3077 = vpop.f32.mrb[0].mxu0
    %3078 = vmatprep.mubr.f32.mxu0 0.0
    %v3079 = vand.u32 %v1078, 4294901760
    %v3080 = vsub.f32 %v1078, %v3079
    %v3081 = vand.u32 %v3080, 4294901760
    %3082 = vmatmul.mubr.f32.gmra.mrb[0].mxu0 %v3081
    %v3083 = vpop.f32.mrb[0].mxu0
    %v3084 = vadd.f32 %v2556, %v3083
    %v3085 = vpop.f32.mrb[0].mxu0
    %3086 = vmatprep.mubr.f32.mxu0 0.0
    %v3087 = vand.u32 %v1081, 4294901760
    %v3088 = vsub.f32 %v1081, %v3087
    %v3089 = vand.u32 %v3088, 4294901760
    %3090 = vmatmul.mubr.f32.gmra.mrb[0].mxu0 %v3089
    %v3091 = vpop.f32.mrb[0].mxu0
    %v3092 = vadd.f32 %v2563, %v3091
    %v3093 = vpop.f32.mrb[0].mxu0
    %3094 = vmatprep.mubr.f32.mxu0 0.0
    %v3095 = vand.u32 %v1084, 4294901760
    %v3096 = vsub.f32 %v1084, %v3095
    %v3097 = vand.u32 %v3096, 4294901760
    %3098 = vmatmul.mubr.f32.gmra.mrb[0].mxu0 %v3097
    %v3099 = vpop.f32.mrb[0].mxu0
    %v3100 = vadd.f32 %v2570, %v3099
    %v3101 = vpop.f32.mrb[0].mxu0
    %3102 = vmatprep.mubr.f32.mxu0 0.0
    %v3103 = vand.u32 %v1087, 4294901760
    %v3104 = vsub.f32 %v1087, %v3103
    %v3105 = vand.u32 %v3104, 4294901760
    %3106 = vmatmul.mubr.f32.gmra.mrb[0].mxu0 %v3105
    %v3107 = vpop.f32.mrb[0].mxu0
    %v3108 = vadd.f32 %v2577, %v3107
    %v3109 = vpop.f32.mrb[0].mxu0
    %3110 = vmatprep.mubr.f32.mxu0 0.0
    %v3111 = vand.u32 %v1090, 4294901760
    %v3112 = vsub.f32 %v1090, %v3111
    %v3113 = vand.u32 %v3112, 4294901760
    %3114 = vmatmul.mubr.f32.gmra.mrb[0].mxu0 %v3113
    %v3115 = vpop.f32.mrb[0].mxu0
    %v3116 = vadd.f32 %v2584, %v3115
    %v3117 = vpop.f32.mrb[0].mxu0
    %3118 = vmatprep.mubr.f32.mxu0 0.0
    %v3119 = vand.u32 %v1093, 4294901760
    %v3120 = vsub.f32 %v1093, %v3119
    %v3121 = vand.u32 %v3120, 4294901760
    %3122 = vmatmul.mubr.f32.gmra.mrb[0].mxu0 %v3121
    %v3123 = vpop.f32.mrb[0].mxu0
    %v3124 = vadd.f32 %v2591, %v3123
    %v3125 = vpop.f32.mrb[0].mxu0
    %3126 = vmatprep.mubr.f32.mxu0 0.0
    %v3127 = vand.u32 %v1096, 4294901760
    %v3128 = vsub.f32 %v1096, %v3127
    %v3129 = vand.u32 %v3128, 4294901760
    %3130 = vmatmul.mubr.f32.gmra.mrb[0].mxu0 %v3129
    %v3131 = vpop.f32.mrb[0].mxu0
    %v3132 = vadd.f32 %v2598, %v3131
    %v3133 = vpop.f32.mrb[0].mxu0
    %3134 = vmatprep.mubr.f32.mxu0 0.0
    %v3135 = vand.u32 %v1099, 4294901760
    %v3136 = vsub.f32 %v1099, %v3135
    %v3137 = vand.u32 %v3136, 4294901760
    %3138 = vmatmul.mubr.f32.gmra.mrb[0].mxu0 %v3137
    %v3139 = vpop.f32.mrb[0].mxu0
    %v3140 = vadd.f32 %v2605, %v3139
    %v3141 = vpop.f32.mrb[0].mxu0
    %3142 = vmatprep.mubr.f32.mxu0 0.0
    %v3143 = vand.u32 %v1102, 4294901760
    %v3144 = vsub.f32 %v1102, %v3143
    %v3145 = vand.u32 %v3144, 4294901760
    %3146 = vmatmul.mubr.f32.gmra.mrb[0].mxu0 %v3145
    %v3147 = vpop.f32.mrb[0].mxu0
    %v3148 = vadd.f32 %v2612, %v3147
    %v3149 = vpop.f32.mrb[0].mxu0
    %3150 = vmatprep.mubr.f32.mxu0 0.0
    %v3151 = vand.u32 %v1105, 4294901760
    %v3152 = vsub.f32 %v1105, %v3151
    %v3153 = vand.u32 %v3152, 4294901760
    %3154 = vmatmul.mubr.f32.gmra.mrb[0].mxu0 %v3153
    %v3155 = vpop.f32.mrb[0].mxu0
    %v3156 = vadd.f32 %v2619, %v3155
    %v3157 = vpop.f32.mrb[0].mxu0
    %3158 = vmatprep.mubr.f32.mxu0 0.0
    %v3159 = vand.u32 %v1108, 4294901760
    %v3160 = vsub.f32 %v1108, %v3159
    %v3161 = vand.u32 %v3160, 4294901760
    %3162 = vmatmul.mubr.f32.gmra.mrb[0].mxu0 %v3161
    %v3163 = vpop.f32.mrb[0].mxu0
    %v3164 = vadd.f32 %v2626, %v3163
    %v3165 = vpop.f32.mrb[0].mxu0
    %3166 = vmatprep.mubr.f32.mxu0 0.0
    %v3167 = vand.u32 %v1111, 4294901760
    %v3168 = vsub.f32 %v1111, %v3167
    %v3169 = vand.u32 %v3168, 4294901760
    %3170 = vmatmul.mubr.f32.gmra.mrb[0].mxu0 %v3169
    %v3171 = vpop.f32.mrb[0].mxu0
    %v3172 = vadd.f32 %v2633, %v3171
    %v3173 = vpop.f32.mrb[0].mxu0
    %3174 = vmatprep.mubr.f32.mxu0 0.0
    %v3175 = vand.u32 %v1114, 4294901760
    %v3176 = vsub.f32 %v1114, %v3175
    %v3177 = vand.u32 %v3176, 4294901760
    %3178 = vmatmul.mubr.f32.gmra.mrb[0].mxu0 %v3177
    %v3179 = vpop.f32.mrb[0].mxu0
    %v3180 = vadd.f32 %v2640, %v3179
    %v3181 = vpop.f32.mrb[0].mxu0
    %3182 = vmatprep.mubr.f32.mxu0 0.0
    %v3183 = vand.u32 %v1117, 4294901760
    %v3184 = vsub.f32 %v1117, %v3183
    %v3185 = vand.u32 %v3184, 4294901760
    %3186 = vmatmul.mubr.f32.gmra.mrb[0].mxu0 %v3185
    %v3187 = vpop.f32.mrb[0].mxu0
    %v3188 = vadd.f32 %v2647, %v3187
    %v3189 = vpop.f32.mrb[0].mxu0
    %3190 = vmatprep.mubr.f32.mxu0 0.0
    %v3191 = vand.u32 %v1120, 4294901760
    %v3192 = vsub.f32 %v1120, %v3191
    %v3193 = vand.u32 %v3192, 4294901760
    %3194 = vmatmul.mubr.f32.gmra.mrb[0].mxu0 %v3193
    %v3195 = vpop.f32.mrb[0].mxu0
    %v3196 = vadd.f32 %v2654, %v3195
    %v3197 = vpop.f32.mrb[0].mxu0
    %3198 = vmatprep.mubr.f32.mxu0 0.0
    %v3199 = vand.u32 %v1123, 4294901760
    %v3200 = vsub.f32 %v1123, %v3199
    %v3201 = vand.u32 %v3200, 4294901760
    %3202 = vmatmul.mubr.f32.gmra.mrb[0].mxu0 %v3201
    %v3203 = vpop.f32.mrb[0].mxu0
    %v3204 = vadd.f32 %v2661, %v3203
    %v3205 = vpop.f32.mrb[0].mxu0
    %3206 = vmatprep.mubr.f32.mxu0 0.0
    %v3207 = vand.u32 %v1126, 4294901760
    %v3208 = vsub.f32 %v1126, %v3207
    %v3209 = vand.u32 %v3208, 4294901760
    %3210 = vmatmul.mubr.f32.gmra.mrb[0].mxu0 %v3209
    %v3211 = vpop.f32.mrb[0].mxu0
    %v3212 = vadd.f32 %v2668, %v3211
    %v3213 = vpop.f32.mrb[0].mxu0
    %3214 = vmatprep.mubr.f32.mxu0 0.0
    %v3215 = vand.u32 %v1129, 4294901760
    %v3216 = vsub.f32 %v1129, %v3215
    %v3217 = vand.u32 %v3216, 4294901760
    %3218 = vmatmul.mubr.f32.gmra.mrb[0].mxu0 %v3217
    %v3219 = vpop.f32.mrb[0].mxu0
    %v3220 = vadd.f32 %v2675, %v3219
    %v3221 = vpop.f32.mrb[0].mxu0
    %3222 = vmatprep.mubr.f32.mxu0 0.0
    %v3223 = vand.u32 %v1132, 4294901760
    %v3224 = vsub.f32 %v1132, %v3223
    %v3225 = vand.u32 %v3224, 4294901760
    %3226 = vmatmul.mubr.f32.gmra.mrb[0].mxu0 %v3225
    %v3227 = vpop.f32.mrb[0].mxu0
    %v3228 = vadd.f32 %v2682, %v3227
    %v3229 = vpop.f32.mrb[0].mxu0
    %3230 = vmatprep.mubr.f32.mxu0 0.0
    %v3231 = vand.u32 %v1135, 4294901760
    %v3232 = vsub.f32 %v1135, %v3231
    %v3233 = vand.u32 %v3232, 4294901760
    %3234 = vmatmul.mubr.f32.gmra.mrb[0].mxu0 %v3233
    %v3235 = vpop.f32.mrb[0].mxu0
    %v3236 = vadd.f32 %v2689, %v3235
    %v3237 = vpop.f32.mrb[0].mxu0
    %3238 = vmatprep.mubr.f32.mxu0 0.0
    %v3239 = vand.u32 %v1138, 4294901760
    %v3240 = vsub.f32 %v1138, %v3239
    %v3241 = vand.u32 %v3240, 4294901760
    %3242 = vmatmul.mubr.f32.gmra.mrb[0].mxu0 %v3241
    %v3243 = vpop.f32.mrb[0].mxu0
    %v3244 = vadd.f32 %v2696, %v3243
    %v3245 = vpop.f32.mrb[0].mxu0
    %3246 = vmatprep.mubr.f32.mxu0 0.0
    %v3247 = vand.u32 %v1141, 4294901760
    %v3248 = vsub.f32 %v1141, %v3247
    %v3249 = vand.u32 %v3248, 4294901760
    %3250 = vmatmul.mubr.f32.gmra.mrb[0].mxu0 %v3249
    %v3251 = vpop.f32.mrb[0].mxu0
    %v3252 = vadd.f32 %v2703, %v3251
    %v3253 = vpop.f32.mrb[0].mxu0
    %3254 = vmatprep.mubr.f32.mxu0 0.0
    %v3255 = vand.u32 %v1144, 4294901760
    %v3256 = vsub.f32 %v1144, %v3255
    %v3257 = vand.u32 %v3256, 4294901760
    %3258 = vmatmul.mubr.f32.gmra.mrb[0].mxu0 %v3257
    %v3259 = vpop.f32.mrb[0].mxu0
    %v3260 = vadd.f32 %v2710, %v3259
    %v3261 = vpop.f32.mrb[0].mxu0
    %3262 = vmatprep.mubr.f32.mxu0 0.0
    %v3263 = vand.u32 %v1147, 4294901760
    %v3264 = vsub.f32 %v1147, %v3263
    %v3265 = vand.u32 %v3264, 4294901760
    %3266 = vmatmul.mubr.f32.gmra.mrb[0].mxu0 %v3265
    %v3267 = vpop.f32.mrb[0].mxu0
    %v3268 = vadd.f32 %v2717, %v3267
    %v3269 = vpop.f32.mrb[0].mxu0
    %3270 = vmatprep.mubr.f32.mxu0 0.0
    %v3271 = vand.u32 %v1150, 4294901760
    %v3272 = vsub.f32 %v1150, %v3271
    %v3273 = vand.u32 %v3272, 4294901760
    %3274 = vmatmul.mubr.f32.gmra.mrb[0].mxu0 %v3273
    %v3275 = vpop.f32.mrb[0].mxu0
    %v3276 = vadd.f32 %v2724, %v3275
    %v3277 = vpop.f32.mrb[0].mxu0
    %3278 = vmatprep.mubr.f32.mxu0 0.0
    %v3279 = vand.u32 %v1153, 4294901760
    %v3280 = vsub.f32 %v1153, %v3279
    %v3281 = vand.u32 %v3280, 4294901760
    %3282 = vmatmul.mubr.f32.gmra.mrb[0].mxu0 %v3281
    %v3283 = vpop.f32.mrb[0].mxu0
    %v3284 = vadd.f32 %v2731, %v3283
    %v3285 = vpop.f32.mrb[0].mxu0
    %3286 = vmatprep.mubr.f32.mxu0 0.0
    %v3287 = vand.u32 %v1156, 4294901760
    %v3288 = vsub.f32 %v1156, %v3287
    %v3289 = vand.u32 %v3288, 4294901760
    %3290 = vmatmul.mubr.f32.gmra.mrb[0].mxu0 %v3289
    %v3291 = vpop.f32.mrb[0].mxu0
    %v3292 = vadd.f32 %v2738, %v3291
    %v3293 = vpop.f32.mrb[0].mxu0
    %3294 = vmatprep.mubr.f32.mxu0 0.0
    %v3295 = vand.u32 %v1159, 4294901760
    %v3296 = vsub.f32 %v1159, %v3295
    %v3297 = vand.u32 %v3296, 4294901760
    %3298 = vmatmul.mubr.f32.gmra.mrb[0].mxu0 %v3297
    %v3299 = vpop.f32.mrb[0].mxu0
    %v3300 = vadd.f32 %v2745, %v3299
    %v3301 = vpop.f32.mrb[0].mxu0
    %3302 = vmatprep.mubr.f32.mxu0 0.0
    %v3303 = vand.u32 %v1162, 4294901760
    %v3304 = vsub.f32 %v1162, %v3303
    %v3305 = vand.u32 %v3304, 4294901760
    %3306 = vmatmul.mubr.f32.gmra.mrb[0].mxu0 %v3305
    %v3307 = vpop.f32.mrb[0].mxu0
    %v3308 = vadd.f32 %v2752, %v3307
    %v3309 = vpop.f32.mrb[0].mxu0
    %3310 = vmatprep.mubr.f32.mxu0 0.0
    %v3311 = vand.u32 %v1165, 4294901760
    %v3312 = vsub.f32 %v1165, %v3311
    %v3313 = vand.u32 %v3312, 4294901760
    %3314 = vmatmul.mubr.f32.gmra.mrb[0].mxu0 %v3313
    %v3315 = vpop.f32.mrb[0].mxu0
    %v3316 = vadd.f32 %v2759, %v3315
    %v3317 = vpop.f32.mrb[0].mxu0
    %3318 = vmatprep.mubr.f32.mxu0 0.0
    %v3319 = vand.u32 %v1168, 4294901760
    %v3320 = vsub.f32 %v1168, %v3319
    %v3321 = vand.u32 %v3320, 4294901760
    %3322 = vmatmul.mubr.f32.gmra.mrb[0].mxu0 %v3321
    %v3323 = vpop.f32.mrb[0].mxu0
    %v3324 = vadd.f32 %v2766, %v3323
    %v3325 = vpop.f32.mrb[0].mxu0
    %3326 = vmatprep.mubr.f32.mxu0 0.0
    %v3327 = vand.u32 %v1171, 4294901760
    %v3328 = vsub.f32 %v1171, %v3327
    %v3329 = vand.u32 %v3328, 4294901760
    %3330 = vmatmul.mubr.f32.gmra.mrb[0].mxu0 %v3329
    %v3331 = vpop.f32.mrb[0].mxu0
    %v3332 = vadd.f32 %v2773, %v3331
    %v3333 = vpop.f32.mrb[0].mxu0
    %3334 = vmatprep.mubr.f32.mxu0 0.0
    %v3335 = vand.u32 %v1174, 4294901760
    %v3336 = vsub.f32 %v1174, %v3335
    %v3337 = vand.u32 %v3336, 4294901760
    %3338 = vmatmul.mubr.f32.gmra.mrb[0].mxu0 %v3337
    %v3339 = vpop.f32.mrb[0].mxu0
    %v3340 = vadd.f32 %v2780, %v3339
    %v3341 = vpop.f32.mrb[0].mxu0
    %3342 = vmatprep.mubr.f32.mxu0 0.0
    %v3343 = vand.u32 %v1177, 4294901760
    %v3344 = vsub.f32 %v1177, %v3343
    %v3345 = vand.u32 %v3344, 4294901760
    %3346 = vmatmul.mubr.f32.gmra.mrb[0].mxu0 %v3345
    %v3347 = vpop.f32.mrb[0].mxu0
    %v3348 = vadd.f32 %v2787, %v3347
    %v3349 = vpop.f32.mrb[0].mxu0
    %3350 = vmatprep.mubr.f32.mxu0 0.0
    %v3351 = vand.u32 %v1180, 4294901760
    %v3352 = vsub.f32 %v1180, %v3351
    %v3353 = vand.u32 %v3352, 4294901760
    %3354 = vmatmul.mubr.f32.gmra.mrb[0].mxu0 %v3353
    %v3355 = vpop.f32.mrb[0].mxu0
    %v3356 = vadd.f32 %v2794, %v3355
    %v3357 = vpop.f32.mrb[0].mxu0
    %3358 = vmatprep.mubr.f32.mxu0 0.0
    %v3359 = vand.u32 %v1183, 4294901760
    %v3360 = vsub.f32 %v1183, %v3359
    %v3361 = vand.u32 %v3360, 4294901760
    %3362 = vmatmul.mubr.f32.gmra.mrb[0].mxu0 %v3361
    %v3363 = vpop.f32.mrb[0].mxu0
    %v3364 = vadd.f32 %v2801, %v3363
    %v3365 = vpop.f32.mrb[0].mxu0
    %3366 = vmatprep.mubr.f32.mxu0 0.0
    %v3367 = vand.u32 %v1186, 4294901760
    %v3368 = vsub.f32 %v1186, %v3367
    %v3369 = vand.u32 %v3368, 4294901760
    %3370 = vmatmul.mubr.f32.gmra.mrb[0].mxu0 %v3369
    %v3371 = vpop.f32.mrb[0].mxu0
    %v3372 = vadd.f32 %v2808, %v3371
    %v3373 = vpop.f32.mrb[0].mxu0
    %3374 = vmatprep.mubr.f32.mxu0 0.0
    %v3375 = vand.u32 %v1189, 4294901760
    %v3376 = vsub.f32 %v1189, %v3375
    %v3377 = vand.u32 %v3376, 4294901760
    %3378 = vmatmul.mubr.f32.gmra.mrb[0].mxu0 %v3377
    %v3379 = vpop.f32.mrb[0].mxu0
    %v3380 = vadd.f32 %v2815, %v3379
    %v3381 = vpop.f32.mrb[0].mxu0
    %3382 = vmatprep.mubr.f32.mxu0 0.0
    %v3383 = vand.u32 %v1192, 4294901760
    %v3384 = vsub.f32 %v1192, %v3383
    %v3385 = vand.u32 %v3384, 4294901760
    %3386 = vmatmul.mubr.f32.gmra.mrb[0].mxu0 %v3385
    %v3387 = vpop.f32.mrb[0].mxu0
    %v3388 = vadd.f32 %v2822, %v3387
    %v3389 = vpop.f32.mrb[0].mxu0
    %3390 = vmatprep.mubr.f32.mxu0 0.0
    %v3391 = vand.u32 %v1195, 4294901760
    %v3392 = vsub.f32 %v1195, %v3391
    %v3393 = vand.u32 %v3392, 4294901760
    %3394 = vmatmul.mubr.f32.gmra.mrb[0].mxu0 %v3393
    %v3395 = vpop.f32.mrb[0].mxu0
    %v3396 = vadd.f32 %v2829, %v3395
    %v3397 = vpop.f32.mrb[0].mxu0
    %3398 = vmatprep.mubr.f32.mxu0 0.0
    %v3399 = vand.u32 %v1198, 4294901760
    %v3400 = vsub.f32 %v1198, %v3399
    %v3401 = vand.u32 %v3400, 4294901760
    %3402 = vmatmul.mubr.f32.gmra.mrb[0].mxu0 %v3401
    %v3403 = vpop.f32.mrb[0].mxu0
    %v3404 = vadd.f32 %v2836, %v3403
    %v3405 = vpop.f32.mrb[0].mxu0
    %3406 = vmatprep.mubr.f32.mxu0 0.0
    %v3407 = vand.u32 %v1201, 4294901760
    %v3408 = vsub.f32 %v1201, %v3407
    %v3409 = vand.u32 %v3408, 4294901760
    %3410 = vmatmul.mubr.f32.gmra.mrb[0].mxu0 %v3409
    %v3411 = vpop.f32.mrb[0].mxu0
    %v3412 = vadd.f32 %v2843, %v3411
    %v3413 = vpop.f32.mrb[0].mxu0
    %3414 = vmatprep.mubr.f32.mxu0 0.0
    %v3415 = vand.u32 %v1204, 4294901760
    %v3416 = vsub.f32 %v1204, %v3415
    %v3417 = vand.u32 %v3416, 4294901760
    %3418 = vmatmul.mubr.f32.gmra.mrb[0].mxu0 %v3417
    %v3419 = vpop.f32.mrb[0].mxu0
    %v3420 = vadd.f32 %v2850, %v3419
    %v3421 = vpop.f32.mrb[0].mxu0
    %3422 = vmatprep.mubr.f32.mxu0 0.0
    %v3423 = vand.u32 %v1207, 4294901760
    %v3424 = vsub.f32 %v1207, %v3423
    %v3425 = vand.u32 %v3424, 4294901760
    %3426 = vmatmul.mubr.f32.gmra.mrb[0].mxu0 %v3425
    %v3427 = vpop.f32.mrb[0].mxu0
    %v3428 = vadd.f32 %v2857, %v3427
    %v3429 = vpop.f32.mrb[0].mxu0
    %3430 = vmatprep.mubr.f32.mxu0 0.0
    %v3431 = vand.u32 %v1210, 4294901760
    %v3432 = vsub.f32 %v1210, %v3431
    %v3433 = vand.u32 %v3432, 4294901760
    %3434 = vmatmul.mubr.f32.gmra.mrb[0].mxu0 %v3433
    %v3435 = vpop.f32.mrb[0].mxu0
    %v3436 = vadd.f32 %v2864, %v3435
    %v3437 = vpop.f32.mrb[0].mxu0
    %3438 = vmatprep.mubr.f32.mxu0 0.0
    %v3439 = vand.u32 %v1213, 4294901760
    %v3440 = vsub.f32 %v1213, %v3439
    %v3441 = vand.u32 %v3440, 4294901760
    %3442 = vmatmul.mubr.f32.gmra.mrb[0].mxu0 %v3441
    %v3443 = vpop.f32.mrb[0].mxu0
    %v3444 = vadd.f32 %v2871, %v3443
    %v3445 = vpop.f32.mrb[0].mxu0
    %3446 = vmatprep.mubr.f32.mxu0 0.0
    %v3447 = vand.u32 %v1216, 4294901760
    %v3448 = vsub.f32 %v1216, %v3447
    %v3449 = vand.u32 %v3448, 4294901760
    %3450 = vmatmul.mubr.f32.gmra.mrb[0].mxu0 %v3449
    %v3451 = vpop.f32.mrb[0].mxu0
    %v3452 = vadd.f32 %v2878, %v3451
    %v3453 = vpop.f32.mrb[0].mxu0
    %3454 = vmatprep.mubr.f32.mxu0 0.0
    %v3455 = vand.u32 %v1219, 4294901760
    %v3456 = vsub.f32 %v1219, %v3455
    %v3457 = vand.u32 %v3456, 4294901760
    %3458 = vmatmul.mubr.f32.gmra.mrb[0].mxu0 %v3457
    %v3459 = vpop.f32.mrb[0].mxu0
    %v3460 = vadd.f32 %v2885, %v3459
    %v3461 = vpop.f32.mrb[0].mxu0
    %3462 = vmatprep.mubr.f32.mxu0 0.0
    %v3463 = vand.u32 %v1222, 4294901760
    %v3464 = vsub.f32 %v1222, %v3463
    %v3465 = vand.u32 %v3464, 4294901760
    %3466 = vmatmul.mubr.f32.gmra.mrb[0].mxu0 %v3465
    %v3467 = vpop.f32.mrb[0].mxu0
    %v3468 = vadd.f32 %v2892, %v3467
    %v3469 = vpop.f32.mrb[0].mxu0
    %3470 = vmatprep.mubr.f32.mxu0 0.0
    %v3471 = vand.u32 %v1225, 4294901760
    %v3472 = vsub.f32 %v1225, %v3471
    %v3473 = vand.u32 %v3472, 4294901760
    %3474 = vmatmul.mubr.f32.gmra.mrb[0].mxu0 %v3473
    %v3475 = vpop.f32.mrb[0].mxu0
    %v3476 = vadd.f32 %v2899, %v3475
    %v3477 = vpop.f32.mrb[0].mxu0
    %3478 = vmatprep.mubr.f32.mxu0 0.0
    %v3479 = vand.u32 %v1228, 4294901760
    %v3480 = vsub.f32 %v1228, %v3479
    %v3481 = vand.u32 %v3480, 4294901760
    %3482 = vmatmul.mubr.f32.gmra.mrb[0].mxu0 %v3481
    %v3483 = vpop.f32.mrb[0].mxu0
    %v3484 = vadd.f32 %v2906, %v3483
    %v3485 = vpop.f32.mrb[0].mxu0
    %3486 = vdwg.mxu0
    %3487 = vmatprep.subr.mxu0 0.0
    %v3488 = vand.u32 %v1232, 4294901760
    %v3489 = vsub.f32 %v1232, %v3488
    %v3490 = vand.u32 %v3489, 4294901760
    %3491 = vmatpush1.msra.mxu0 %v3490
    %3492 = vmatprep.subr.mxu0 0.0
    %3493 = vmatpush1.msra.mxu0 0.0
    %3494 = vmatprep.subr.mxu0 0.0
    %3495 = vmatpush1.msra.mxu0 0.0
    %3496 = vmatprep.subr.mxu0 0.0
    %3497 = vmatpush1.msra.mxu0 0.0
    %3498 = vmatprep.subr.mxu0 0.0
    %3499 = vmatpush1.msra.mxu0 0.0
    %3500 = vmatprep.subr.mxu0 0.0
    %3501 = vmatpush1.msra.mxu0 0.0
    %3502 = vmatprep.subr.mxu0 0.0
    %3503 = vmatpush1.msra.mxu0 0.0
    %3504 = vmatprep.subr.mxu0 0.0
    %3505 = vmatpush1.msra.mxu0 0.0
    %3506 = vmatprep.subr.mxu0 0.0
    %3507 = vmatpush1.msra.mxu0 0.0
    %3508 = vmatprep.subr.mxu0 0.0
    %3509 = vmatpush1.msra.mxu0 0.0
    %3510 = vmatprep.subr.mxu0 0.0
    %3511 = vmatpush1.msra.mxu0 0.0
    %3512 = vmatprep.subr.mxu0 0.0
    %3513 = vmatpush1.msra.mxu0 0.0
    %3514 = vmatprep.subr.mxu0 0.0
    %3515 = vmatpush1.msra.mxu0 0.0
    %3516 = vmatprep.subr.mxu0 0.0
    %3517 = vmatpush1.msra.mxu0 0.0
    %3518 = vmatprep.subr.mxu0 0.0
    %3519 = vmatpush1.msra.mxu0 0.0
    %3520 = vmatprep.subr.mxu0 0.0
    %3521 = vmatpush1.msra.mxu0 0.0
    %3522 = vmatprep.subr.mxu0 0.0
    %3523 = vmatpush1.msra.mxu0 0.0
    %3524 = vmatprep.subr.mxu0 0.0
    %3525 = vmatpush1.msra.mxu0 0.0
    %3526 = vmatprep.subr.mxu0 0.0
    %3527 = vmatpush1.msra.mxu0 0.0
    %3528 = vmatprep.subr.mxu0 0.0
    %3529 = vmatpush1.msra.mxu0 0.0
    %3530 = vmatprep.subr.mxu0 0.0
    %3531 = vmatpush1.msra.mxu0 0.0
    %3532 = vmatprep.subr.mxu0 0.0
    %3533 = vmatpush1.msra.mxu0 0.0
    %3534 = vmatprep.subr.mxu0 0.0
    %3535 = vmatpush1.msra.mxu0 0.0
    %3536 = vmatprep.subr.mxu0 0.0
    %3537 = vmatpush1.msra.mxu0 0.0
    %3538 = vmatprep.subr.mxu0 0.0
    %3539 = vmatpush1.msra.mxu0 0.0
    %3540 = vmatprep.subr.mxu0 0.0
    %3541 = vmatpush1.msra.mxu0 0.0
    %3542 = vmatprep.subr.mxu0 0.0
    %3543 = vmatpush1.msra.mxu0 0.0
    %3544 = vmatprep.subr.mxu0 0.0
    %3545 = vmatpush1.msra.mxu0 0.0
    %3546 = vmatprep.subr.mxu0 0.0
    %3547 = vmatpush1.msra.mxu0 0.0
    %3548 = vmatprep.subr.mxu0 0.0
    %3549 = vmatpush1.msra.mxu0 0.0
    %3550 = vmatprep.subr.mxu0 0.0
    %3551 = vmatpush1.msra.mxu0 0.0
    %3552 = vmatprep.subr.mxu0 0.0
    %3553 = vmatpush1.msra.mxu0 0.0
    %3554 = vmatprep.mubr.f32.mxu0 0.0
    %v3555 = vand.u32 %v1039, 4294901760
    %3556 = vmatmul.mubr.f32.gmra.mrb[0].mxu0 %v3555
    %v3557 = vpop.f32.mrb[0].mxu0
    %v3558 = vadd.f32 %v2980, %v3557
    %v3559 = vpop.f32.mrb[0].mxu0
    %3560 = vmatprep.mubr.f32.mxu0 0.0
    %v3561 = vand.u32 %v1042, 4294901760
    %3562 = vmatmul.mubr.f32.gmra.mrb[0].mxu0 %v3561
    %v3563 = vpop.f32.mrb[0].mxu0
    %v3564 = vadd.f32 %v2988, %v3563
    %v3565 = vpop.f32.mrb[0].mxu0
    %3566 = vmatprep.mubr.f32.mxu0 0.0
    %v3567 = vand.u32 %v1045, 4294901760
    %3568 = vmatmul.mubr.f32.gmra.mrb[0].mxu0 %v3567
    %v3569 = vpop.f32.mrb[0].mxu0
    %v3570 = vadd.f32 %v2996, %v3569
    %v3571 = vpop.f32.mrb[0].mxu0
    %3572 = vmatprep.mubr.f32.mxu0 0.0
    %v3573 = vand.u32 %v1048, 4294901760
    %3574 = vmatmul.mubr.f32.gmra.mrb[0].mxu0 %v3573
    %v3575 = vpop.f32.mrb[0].mxu0
    %v3576 = vadd.f32 %v3004, %v3575
    %v3577 = vpop.f32.mrb[0].mxu0
    %3578 = vmatprep.mubr.f32.mxu0 0.0
    %v3579 = vand.u32 %v1051, 4294901760
    %3580 = vmatmul.mubr.f32.gmra.mrb[0].mxu0 %v3579
    %v3581 = vpop.f32.mrb[0].mxu0
    %v3582 = vadd.f32 %v3012, %v3581
    %v3583 = vpop.f32.mrb[0].mxu0
    %3584 = vmatprep.mubr.f32.mxu0 0.0
    %v3585 = vand.u32 %v1054, 4294901760
    %3586 = vmatmul.mubr.f32.gmra.mrb[0].mxu0 %v3585
    %v3587 = vpop.f32.mrb[0].mxu0
    %v3588 = vadd.f32 %v3020, %v3587
    %v3589 = vpop.f32.mrb[0].mxu0
    %3590 = vmatprep.mubr.f32.mxu0 0.0
    %v3591 = vand.u32 %v1057, 4294901760
    %3592 = vmatmul.mubr.f32.gmra.mrb[0].mxu0 %v3591
    %v3593 = vpop.f32.mrb[0].mxu0
    %v3594 = vadd.f32 %v3028, %v3593
    %v3595 = vpop.f32.mrb[0].mxu0
    %3596 = vmatprep.mubr.f32.mxu0 0.0
    %v3597 = vand.u32 %v1060, 4294901760
    %3598 = vmatmul.mubr.f32.gmra.mrb[0].mxu0 %v3597
    %v3599 = vpop.f32.mrb[0].mxu0
    %v3600 = vadd.f32 %v3036, %v3599
    %v3601 = vpop.f32.mrb[0].mxu0
    %3602 = vmatprep.mubr.f32.mxu0 0.0
    %v3603 = vand.u32 %v1063, 4294901760
    %3604 = vmatmul.mubr.f32.gmra.mrb[0].mxu0 %v3603
    %v3605 = vpop.f32.mrb[0].mxu0
    %v3606 = vadd.f32 %v3044, %v3605
    %v3607 = vpop.f32.mrb[0].mxu0
    %3608 = vmatprep.mubr.f32.mxu0 0.0
    %v3609 = vand.u32 %v1066, 4294901760
    %3610 = vmatmul.mubr.f32.gmra.mrb[0].mxu0 %v3609
    %v3611 = vpop.f32.mrb[0].mxu0
    %v3612 = vadd.f32 %v3052, %v3611
    %v3613 = vpop.f32.mrb[0].mxu0
    %3614 = vmatprep.mubr.f32.mxu0 0.0
    %v3615 = vand.u32 %v1069, 4294901760
    %3616 = vmatmul.mubr.f32.gmra.mrb[0].mxu0 %v3615
    %v3617 = vpop.f32.mrb[0].mxu0
    %v3618 = vadd.f32 %v3060, %v3617
    %v3619 = vpop.f32.mrb[0].mxu0
    %3620 = vmatprep.mubr.f32.mxu0 0.0
    %v3621 = vand.u32 %v1072, 4294901760
    %3622 = vmatmul.mubr.f32.gmra.mrb[0].mxu0 %v3621
    %v3623 = vpop.f32.mrb[0].mxu0
    %v3624 = vadd.f32 %v3068, %v3623
    %v3625 = vpop.f32.mrb[0].mxu0
    %3626 = vmatprep.mubr.f32.mxu0 0.0
    %v3627 = vand.u32 %v1075, 4294901760
    %3628 = vmatmul.mubr.f32.gmra.mrb[0].mxu0 %v3627
    %v3629 = vpop.f32.mrb[0].mxu0
    %v3630 = vadd.f32 %v3076, %v3629
    %v3631 = vpop.f32.mrb[0].mxu0
    %3632 = vmatprep.mubr.f32.mxu0 0.0
    %v3633 = vand.u32 %v1078, 4294901760
    %3634 = vmatmul.mubr.f32.gmra.mrb[0].mxu0 %v3633
    %v3635 = vpop.f32.mrb[0].mxu0
    %v3636 = vadd.f32 %v3084, %v3635
    %v3637 = vpop.f32.mrb[0].mxu0
    %3638 = vmatprep.mubr.f32.mxu0 0.0
    %v3639 = vand.u32 %v1081, 4294901760
    %3640 = vmatmul.mubr.f32.gmra.mrb[0].mxu0 %v3639
    %v3641 = vpop.f32.mrb[0].mxu0
    %v3642 = vadd.f32 %v3092, %v3641
    %v3643 = vpop.f32.mrb[0].mxu0
    %3644 = vmatprep.mubr.f32.mxu0 0.0
    %v3645 = vand.u32 %v1084, 4294901760
    %3646 = vmatmul.mubr.f32.gmra.mrb[0].mxu0 %v3645
    %v3647 = vpop.f32.mrb[0].mxu0
    %v3648 = vadd.f32 %v3100, %v3647
    %v3649 = vpop.f32.mrb[0].mxu0
    %3650 = vmatprep.mubr.f32.mxu0 0.0
    %v3651 = vand.u32 %v1087, 4294901760
    %3652 = vmatmul.mubr.f32.gmra.mrb[0].mxu0 %v3651
    %v3653 = vpop.f32.mrb[0].mxu0
    %v3654 = vadd.f32 %v3108, %v3653
    %v3655 = vpop.f32.mrb[0].mxu0
    %3656 = vmatprep.mubr.f32.mxu0 0.0
    %v3657 = vand.u32 %v1090, 4294901760
    %3658 = vmatmul.mubr.f32.gmra.mrb[0].mxu0 %v3657
    %v3659 = vpop.f32.mrb[0].mxu0
    %v3660 = vadd.f32 %v3116, %v3659
    %v3661 = vpop.f32.mrb[0].mxu0
    %3662 = vmatprep.mubr.f32.mxu0 0.0
    %v3663 = vand.u32 %v1093, 4294901760
    %3664 = vmatmul.mubr.f32.gmra.mrb[0].mxu0 %v3663
    %v3665 = vpop.f32.mrb[0].mxu0
    %v3666 = vadd.f32 %v3124, %v3665
    %v3667 = vpop.f32.mrb[0].mxu0
    %3668 = vmatprep.mubr.f32.mxu0 0.0
    %v3669 = vand.u32 %v1096, 4294901760
    %3670 = vmatmul.mubr.f32.gmra.mrb[0].mxu0 %v3669
    %v3671 = vpop.f32.mrb[0].mxu0
    %v3672 = vadd.f32 %v3132, %v3671
    %v3673 = vpop.f32.mrb[0].mxu0
    %3674 = vmatprep.mubr.f32.mxu0 0.0
    %v3675 = vand.u32 %v1099, 4294901760
    %3676 = vmatmul.mubr.f32.gmra.mrb[0].mxu0 %v3675
    %v3677 = vpop.f32.mrb[0].mxu0
    %v3678 = vadd.f32 %v3140, %v3677
    %v3679 = vpop.f32.mrb[0].mxu0
    %3680 = vmatprep.mubr.f32.mxu0 0.0
    %v3681 = vand.u32 %v1102, 4294901760
    %3682 = vmatmul.mubr.f32.gmra.mrb[0].mxu0 %v3681
    %v3683 = vpop.f32.mrb[0].mxu0
    %v3684 = vadd.f32 %v3148, %v3683
    %v3685 = vpop.f32.mrb[0].mxu0
    %3686 = vmatprep.mubr.f32.mxu0 0.0
    %v3687 = vand.u32 %v1105, 4294901760
    %3688 = vmatmul.mubr.f32.gmra.mrb[0].mxu0 %v3687
    %v3689 = vpop.f32.mrb[0].mxu0
    %v3690 = vadd.f32 %v3156, %v3689
    %v3691 = vpop.f32.mrb[0].mxu0
    %3692 = vmatprep.mubr.f32.mxu0 0.0
    %v3693 = vand.u32 %v1108, 4294901760
    %3694 = vmatmul.mubr.f32.gmra.mrb[0].mxu0 %v3693
    %v3695 = vpop.f32.mrb[0].mxu0
    %v3696 = vadd.f32 %v3164, %v3695
    %v3697 = vpop.f32.mrb[0].mxu0
    %3698 = vmatprep.mubr.f32.mxu0 0.0
    %v3699 = vand.u32 %v1111, 4294901760
    %3700 = vmatmul.mubr.f32.gmra.mrb[0].mxu0 %v3699
    %v3701 = vpop.f32.mrb[0].mxu0
    %v3702 = vadd.f32 %v3172, %v3701
    %v3703 = vpop.f32.mrb[0].mxu0
    %3704 = vmatprep.mubr.f32.mxu0 0.0
    %v3705 = vand.u32 %v1114, 4294901760
    %3706 = vmatmul.mubr.f32.gmra.mrb[0].mxu0 %v3705
    %v3707 = vpop.f32.mrb[0].mxu0
    %v3708 = vadd.f32 %v3180, %v3707
    %v3709 = vpop.f32.mrb[0].mxu0
    %3710 = vmatprep.mubr.f32.mxu0 0.0
    %v3711 = vand.u32 %v1117, 4294901760
    %3712 = vmatmul.mubr.f32.gmra.mrb[0].mxu0 %v3711
    %v3713 = vpop.f32.mrb[0].mxu0
    %v3714 = vadd.f32 %v3188, %v3713
    %v3715 = vpop.f32.mrb[0].mxu0
    %3716 = vmatprep.mubr.f32.mxu0 0.0
    %v3717 = vand.u32 %v1120, 4294901760
    %3718 = vmatmul.mubr.f32.gmra.mrb[0].mxu0 %v3717
    %v3719 = vpop.f32.mrb[0].mxu0
    %v3720 = vadd.f32 %v3196, %v3719
    %v3721 = vpop.f32.mrb[0].mxu0
    %3722 = vmatprep.mubr.f32.mxu0 0.0
    %v3723 = vand.u32 %v1123, 4294901760
    %3724 = vmatmul.mubr.f32.gmra.mrb[0].mxu0 %v3723
    %v3725 = vpop.f32.mrb[0].mxu0
    %v3726 = vadd.f32 %v3204, %v3725
    %v3727 = vpop.f32.mrb[0].mxu0
    %3728 = vmatprep.mubr.f32.mxu0 0.0
    %v3729 = vand.u32 %v1126, 4294901760
    %3730 = vmatmul.mubr.f32.gmra.mrb[0].mxu0 %v3729
    %v3731 = vpop.f32.mrb[0].mxu0
    %v3732 = vadd.f32 %v3212, %v3731
    %v3733 = vpop.f32.mrb[0].mxu0
    %3734 = vmatprep.mubr.f32.mxu0 0.0
    %v3735 = vand.u32 %v1129, 4294901760
    %3736 = vmatmul.mubr.f32.gmra.mrb[0].mxu0 %v3735
    %v3737 = vpop.f32.mrb[0].mxu0
    %v3738 = vadd.f32 %v3220, %v3737
    %v3739 = vpop.f32.mrb[0].mxu0
    %3740 = vmatprep.mubr.f32.mxu0 0.0
    %v3741 = vand.u32 %v1132, 4294901760
    %3742 = vmatmul.mubr.f32.gmra.mrb[0].mxu0 %v3741
    %v3743 = vpop.f32.mrb[0].mxu0
    %v3744 = vadd.f32 %v3228, %v3743
    %v3745 = vpop.f32.mrb[0].mxu0
    %3746 = vmatprep.mubr.f32.mxu0 0.0
    %v3747 = vand.u32 %v1135, 4294901760
    %3748 = vmatmul.mubr.f32.gmra.mrb[0].mxu0 %v3747
    %v3749 = vpop.f32.mrb[0].mxu0
    %v3750 = vadd.f32 %v3236, %v3749
    %v3751 = vpop.f32.mrb[0].mxu0
    %3752 = vmatprep.mubr.f32.mxu0 0.0
    %v3753 = vand.u32 %v1138, 4294901760
    %3754 = vmatmul.mubr.f32.gmra.mrb[0].mxu0 %v3753
    %v3755 = vpop.f32.mrb[0].mxu0
    %v3756 = vadd.f32 %v3244, %v3755
    %v3757 = vpop.f32.mrb[0].mxu0
    %3758 = vmatprep.mubr.f32.mxu0 0.0
    %v3759 = vand.u32 %v1141, 4294901760
    %3760 = vmatmul.mubr.f32.gmra.mrb[0].mxu0 %v3759
    %v3761 = vpop.f32.mrb[0].mxu0
    %v3762 = vadd.f32 %v3252, %v3761
    %v3763 = vpop.f32.mrb[0].mxu0
    %3764 = vmatprep.mubr.f32.mxu0 0.0
    %v3765 = vand.u32 %v1144, 4294901760
    %3766 = vmatmul.mubr.f32.gmra.mrb[0].mxu0 %v3765
    %v3767 = vpop.f32.mrb[0].mxu0
    %v3768 = vadd.f32 %v3260, %v3767
    %v3769 = vpop.f32.mrb[0].mxu0
    %3770 = vmatprep.mubr.f32.mxu0 0.0
    %v3771 = vand.u32 %v1147, 4294901760
    %3772 = vmatmul.mubr.f32.gmra.mrb[0].mxu0 %v3771
    %v3773 = vpop.f32.mrb[0].mxu0
    %v3774 = vadd.f32 %v3268, %v3773
    %v3775 = vpop.f32.mrb[0].mxu0
    %3776 = vmatprep.mubr.f32.mxu0 0.0
    %v3777 = vand.u32 %v1150, 4294901760
    %3778 = vmatmul.mubr.f32.gmra.mrb[0].mxu0 %v3777
    %v3779 = vpop.f32.mrb[0].mxu0
    %v3780 = vadd.f32 %v3276, %v3779
    %v3781 = vpop.f32.mrb[0].mxu0
    %3782 = vmatprep.mubr.f32.mxu0 0.0
    %v3783 = vand.u32 %v1153, 4294901760
    %3784 = vmatmul.mubr.f32.gmra.mrb[0].mxu0 %v3783
    %v3785 = vpop.f32.mrb[0].mxu0
    %v3786 = vadd.f32 %v3284, %v3785
    %v3787 = vpop.f32.mrb[0].mxu0
    %3788 = vmatprep.mubr.f32.mxu0 0.0
    %v3789 = vand.u32 %v1156, 4294901760
    %3790 = vmatmul.mubr.f32.gmra.mrb[0].mxu0 %v3789
    %v3791 = vpop.f32.mrb[0].mxu0
    %v3792 = vadd.f32 %v3292, %v3791
    %v3793 = vpop.f32.mrb[0].mxu0
    %3794 = vmatprep.mubr.f32.mxu0 0.0
    %v3795 = vand.u32 %v1159, 4294901760
    %3796 = vmatmul.mubr.f32.gmra.mrb[0].mxu0 %v3795
    %v3797 = vpop.f32.mrb[0].mxu0
    %v3798 = vadd.f32 %v3300, %v3797
    %v3799 = vpop.f32.mrb[0].mxu0
    %3800 = vmatprep.mubr.f32.mxu0 0.0
    %v3801 = vand.u32 %v1162, 4294901760
    %3802 = vmatmul.mubr.f32.gmra.mrb[0].mxu0 %v3801
    %v3803 = vpop.f32.mrb[0].mxu0
    %v3804 = vadd.f32 %v3308, %v3803
    %v3805 = vpop.f32.mrb[0].mxu0
    %3806 = vmatprep.mubr.f32.mxu0 0.0
    %v3807 = vand.u32 %v1165, 4294901760
    %3808 = vmatmul.mubr.f32.gmra.mrb[0].mxu0 %v3807
    %v3809 = vpop.f32.mrb[0].mxu0
    %v3810 = vadd.f32 %v3316, %v3809
    %v3811 = vpop.f32.mrb[0].mxu0
    %3812 = vmatprep.mubr.f32.mxu0 0.0
    %v3813 = vand.u32 %v1168, 4294901760
    %3814 = vmatmul.mubr.f32.gmra.mrb[0].mxu0 %v3813
    %v3815 = vpop.f32.mrb[0].mxu0
    %v3816 = vadd.f32 %v3324, %v3815
    %v3817 = vpop.f32.mrb[0].mxu0
    %3818 = vmatprep.mubr.f32.mxu0 0.0
    %v3819 = vand.u32 %v1171, 4294901760
    %3820 = vmatmul.mubr.f32.gmra.mrb[0].mxu0 %v3819
    %v3821 = vpop.f32.mrb[0].mxu0
    %v3822 = vadd.f32 %v3332, %v3821
    %v3823 = vpop.f32.mrb[0].mxu0
    %3824 = vmatprep.mubr.f32.mxu0 0.0
    %v3825 = vand.u32 %v1174, 4294901760
    %3826 = vmatmul.mubr.f32.gmra.mrb[0].mxu0 %v3825
    %v3827 = vpop.f32.mrb[0].mxu0
    %v3828 = vadd.f32 %v3340, %v3827
    %v3829 = vpop.f32.mrb[0].mxu0
    %3830 = vmatprep.mubr.f32.mxu0 0.0
    %v3831 = vand.u32 %v1177, 4294901760
    %3832 = vmatmul.mubr.f32.gmra.mrb[0].mxu0 %v3831
    %v3833 = vpop.f32.mrb[0].mxu0
    %v3834 = vadd.f32 %v3348, %v3833
    %v3835 = vpop.f32.mrb[0].mxu0
    %3836 = vmatprep.mubr.f32.mxu0 0.0
    %v3837 = vand.u32 %v1180, 4294901760
    %3838 = vmatmul.mubr.f32.gmra.mrb[0].mxu0 %v3837
    %v3839 = vpop.f32.mrb[0].mxu0
    %v3840 = vadd.f32 %v3356, %v3839
    %v3841 = vpop.f32.mrb[0].mxu0
    %3842 = vmatprep.mubr.f32.mxu0 0.0
    %v3843 = vand.u32 %v1183, 4294901760
    %3844 = vmatmul.mubr.f32.gmra.mrb[0].mxu0 %v3843
    %v3845 = vpop.f32.mrb[0].mxu0
    %v3846 = vadd.f32 %v3364, %v3845
    %v3847 = vpop.f32.mrb[0].mxu0
    %3848 = vmatprep.mubr.f32.mxu0 0.0
    %v3849 = vand.u32 %v1186, 4294901760
    %3850 = vmatmul.mubr.f32.gmra.mrb[0].mxu0 %v3849
    %v3851 = vpop.f32.mrb[0].mxu0
    %v3852 = vadd.f32 %v3372, %v3851
    %v3853 = vpop.f32.mrb[0].mxu0
    %3854 = vmatprep.mubr.f32.mxu0 0.0
    %v3855 = vand.u32 %v1189, 4294901760
    %3856 = vmatmul.mubr.f32.gmra.mrb[0].mxu0 %v3855
    %v3857 = vpop.f32.mrb[0].mxu0
    %v3858 = vadd.f32 %v3380, %v3857
    %v3859 = vpop.f32.mrb[0].mxu0
    %3860 = vmatprep.mubr.f32.mxu0 0.0
    %v3861 = vand.u32 %v1192, 4294901760
    %3862 = vmatmul.mubr.f32.gmra.mrb[0].mxu0 %v3861
    %v3863 = vpop.f32.mrb[0].mxu0
    %v3864 = vadd.f32 %v3388, %v3863
    %v3865 = vpop.f32.mrb[0].mxu0
    %3866 = vmatprep.mubr.f32.mxu0 0.0
    %v3867 = vand.u32 %v1195, 4294901760
    %3868 = vmatmul.mubr.f32.gmra.mrb[0].mxu0 %v3867
    %v3869 = vpop.f32.mrb[0].mxu0
    %v3870 = vadd.f32 %v3396, %v3869
    %v3871 = vpop.f32.mrb[0].mxu0
    %3872 = vmatprep.mubr.f32.mxu0 0.0
    %v3873 = vand.u32 %v1198, 4294901760
    %3874 = vmatmul.mubr.f32.gmra.mrb[0].mxu0 %v3873
    %v3875 = vpop.f32.mrb[0].mxu0
    %v3876 = vadd.f32 %v3404, %v3875
    %v3877 = vpop.f32.mrb[0].mxu0
    %3878 = vmatprep.mubr.f32.mxu0 0.0
    %v3879 = vand.u32 %v1201, 4294901760
    %3880 = vmatmul.mubr.f32.gmra.mrb[0].mxu0 %v3879
    %v3881 = vpop.f32.mrb[0].mxu0
    %v3882 = vadd.f32 %v3412, %v3881
    %v3883 = vpop.f32.mrb[0].mxu0
    %3884 = vmatprep.mubr.f32.mxu0 0.0
    %v3885 = vand.u32 %v1204, 4294901760
    %3886 = vmatmul.mubr.f32.gmra.mrb[0].mxu0 %v3885
    %v3887 = vpop.f32.mrb[0].mxu0
    %v3888 = vadd.f32 %v3420, %v3887
    %v3889 = vpop.f32.mrb[0].mxu0
    %3890 = vmatprep.mubr.f32.mxu0 0.0
    %v3891 = vand.u32 %v1207, 4294901760
    %3892 = vmatmul.mubr.f32.gmra.mrb[0].mxu0 %v3891
    %v3893 = vpop.f32.mrb[0].mxu0
    %v3894 = vadd.f32 %v3428, %v3893
    %v3895 = vpop.f32.mrb[0].mxu0
    %3896 = vmatprep.mubr.f32.mxu0 0.0
    %v3897 = vand.u32 %v1210, 4294901760
    %3898 = vmatmul.mubr.f32.gmra.mrb[0].mxu0 %v3897
    %v3899 = vpop.f32.mrb[0].mxu0
    %v3900 = vadd.f32 %v3436, %v3899
    %v3901 = vpop.f32.mrb[0].mxu0
    %3902 = vmatprep.mubr.f32.mxu0 0.0
    %v3903 = vand.u32 %v1213, 4294901760
    %3904 = vmatmul.mubr.f32.gmra.mrb[0].mxu0 %v3903
    %v3905 = vpop.f32.mrb[0].mxu0
    %v3906 = vadd.f32 %v3444, %v3905
    %v3907 = vpop.f32.mrb[0].mxu0
    %3908 = vmatprep.mubr.f32.mxu0 0.0
    %v3909 = vand.u32 %v1216, 4294901760
    %3910 = vmatmul.mubr.f32.gmra.mrb[0].mxu0 %v3909
    %v3911 = vpop.f32.mrb[0].mxu0
    %v3912 = vadd.f32 %v3452, %v3911
    %v3913 = vpop.f32.mrb[0].mxu0
    %3914 = vmatprep.mubr.f32.mxu0 0.0
    %v3915 = vand.u32 %v1219, 4294901760
    %3916 = vmatmul.mubr.f32.gmra.mrb[0].mxu0 %v3915
    %v3917 = vpop.f32.mrb[0].mxu0
    %v3918 = vadd.f32 %v3460, %v3917
    %v3919 = vpop.f32.mrb[0].mxu0
    %3920 = vmatprep.mubr.f32.mxu0 0.0
    %v3921 = vand.u32 %v1222, 4294901760
    %3922 = vmatmul.mubr.f32.gmra.mrb[0].mxu0 %v3921
    %v3923 = vpop.f32.mrb[0].mxu0
    %v3924 = vadd.f32 %v3468, %v3923
    %v3925 = vpop.f32.mrb[0].mxu0
    %3926 = vmatprep.mubr.f32.mxu0 0.0
    %v3927 = vand.u32 %v1225, 4294901760
    %3928 = vmatmul.mubr.f32.gmra.mrb[0].mxu0 %v3927
    %v3929 = vpop.f32.mrb[0].mxu0
    %v3930 = vadd.f32 %v3476, %v3929
    %v3931 = vpop.f32.mrb[0].mxu0
    %3932 = vmatprep.mubr.f32.mxu0 0.0
    %v3933 = vand.u32 %v1228, 4294901760
    %3934 = vmatmul.mubr.f32.gmra.mrb[0].mxu0 %v3933
    %v3935 = vpop.f32.mrb[0].mxu0
    %v3936 = vadd.f32 %v3484, %v3935
    %v3937 = vpop.f32.mrb[0].mxu0
    %3938 = vdwg.mxu0
    %3939 = vmatprep.subr.mxu0 0.0
    %v3940 = vand.u32 %v1232, 4294901760
    %3941 = vmatpush1.msra.mxu0 %v3940
    %3942 = vmatprep.subr.mxu0 0.0
    %3943 = vmatpush1.msra.mxu0 0.0
    %3944 = vmatprep.subr.mxu0 0.0
    %3945 = vmatpush1.msra.mxu0 0.0
    %3946 = vmatprep.subr.mxu0 0.0
    %3947 = vmatpush1.msra.mxu0 0.0
    %3948 = vmatprep.subr.mxu0 0.0
    %3949 = vmatpush1.msra.mxu0 0.0
    %3950 = vmatprep.subr.mxu0 0.0
    %3951 = vmatpush1.msra.mxu0 0.0
    %3952 = vmatprep.subr.mxu0 0.0
    %3953 = vmatpush1.msra.mxu0 0.0
    %3954 = vmatprep.subr.mxu0 0.0
    %3955 = vmatpush1.msra.mxu0 0.0
    %3956 = vmatprep.subr.mxu0 0.0
    %3957 = vmatpush1.msra.mxu0 0.0
    %3958 = vmatprep.subr.mxu0 0.0
    %3959 = vmatpush1.msra.mxu0 0.0
    %3960 = vmatprep.subr.mxu0 0.0
    %3961 = vmatpush1.msra.mxu0 0.0
    %3962 = vmatprep.subr.mxu0 0.0
    %3963 = vmatpush1.msra.mxu0 0.0
    %3964 = vmatprep.subr.mxu0 0.0
    %3965 = vmatpush1.msra.mxu0 0.0
    %3966 = vmatprep.subr.mxu0 0.0
    %3967 = vmatpush1.msra.mxu0 0.0
    %3968 = vmatprep.subr.mxu0 0.0
    %3969 = vmatpush1.msra.mxu0 0.0
    %3970 = vmatprep.subr.mxu0 0.0
    %3971 = vmatpush1.msra.mxu0 0.0
    %3972 = vmatprep.subr.mxu0 0.0
    %3973 = vmatpush1.msra.mxu0 0.0
    %3974 = vmatprep.subr.mxu0 0.0
    %3975 = vmatpush1.msra.mxu0 0.0
    %3976 = vmatprep.subr.mxu0 0.0
    %3977 = vmatpush1.msra.mxu0 0.0
    %3978 = vmatprep.subr.mxu0 0.0
    %3979 = vmatpush1.msra.mxu0 0.0
    %3980 = vmatprep.subr.mxu0 0.0
    %3981 = vmatpush1.msra.mxu0 0.0
    %3982 = vmatprep.subr.mxu0 0.0
    %3983 = vmatpush1.msra.mxu0 0.0
    %3984 = vmatprep.subr.mxu0 0.0
    %3985 = vmatpush1.msra.mxu0 0.0
    %3986 = vmatprep.subr.mxu0 0.0
    %3987 = vmatpush1.msra.mxu0 0.0
    %3988 = vmatprep.subr.mxu0 0.0
    %3989 = vmatpush1.msra.mxu0 0.0
    %3990 = vmatprep.subr.mxu0 0.0
    %3991 = vmatpush1.msra.mxu0 0.0
    %3992 = vmatprep.subr.mxu0 0.0
    %3993 = vmatpush1.msra.mxu0 0.0
    %3994 = vmatprep.subr.mxu0 0.0
    %3995 = vmatpush1.msra.mxu0 0.0
    %3996 = vmatprep.subr.mxu0 0.0
    %3997 = vmatpush1.msra.mxu0 0.0
    %3998 = vmatprep.subr.mxu0 0.0
    %3999 = vmatpush1.msra.mxu0 0.0
    %4000 = vmatprep.subr.mxu0 0.0
    %4001 = vmatpush1.msra.mxu0 0.0
    %4002 = vmatprep.subr.mxu0 0.0
    %4003 = vmatpush1.msra.mxu0 0.0
    %4004 = vmatprep.mubr.f32.mxu0 0.0
    %v4005 = vand.u32 %v1039, 4294901760
    %4006 = vmatmul.mubr.f32.gmra.mrb[0].mxu0 %v4005
    %v4007 = vpop.f32.mrb[0].mxu0
    %v4008 = vadd.f32 %v3558, %v4007
    %v4009 = vpop.f32.mrb[0].mxu0
    %4010 = vmatprep.mubr.f32.mxu0 0.0
    %v4011 = vand.u32 %v1042, 4294901760
    %4012 = vmatmul.mubr.f32.gmra.mrb[0].mxu0 %v4011
    %v4013 = vpop.f32.mrb[0].mxu0
    %v4014 = vadd.f32 %v3564, %v4013
    %v4015 = vpop.f32.mrb[0].mxu0
    %4016 = vmatprep.mubr.f32.mxu0 0.0
    %v4017 = vand.u32 %v1045, 4294901760
    %4018 = vmatmul.mubr.f32.gmra.mrb[0].mxu0 %v4017
    %v4019 = vpop.f32.mrb[0].mxu0
    %v4020 = vadd.f32 %v3570, %v4019
    %v4021 = vpop.f32.mrb[0].mxu0
    %4022 = vmatprep.mubr.f32.mxu0 0.0
    %v4023 = vand.u32 %v1048, 4294901760
    %4024 = vmatmul.mubr.f32.gmra.mrb[0].mxu0 %v4023
    %v4025 = vpop.f32.mrb[0].mxu0
    %v4026 = vadd.f32 %v3576, %v4025
    %v4027 = vpop.f32.mrb[0].mxu0
    %4028 = vmatprep.mubr.f32.mxu0 0.0
    %v4029 = vand.u32 %v1051, 4294901760
    %4030 = vmatmul.mubr.f32.gmra.mrb[0].mxu0 %v4029
    %v4031 = vpop.f32.mrb[0].mxu0
    %v4032 = vadd.f32 %v3582, %v4031
    %v4033 = vpop.f32.mrb[0].mxu0
    %4034 = vmatprep.mubr.f32.mxu0 0.0
    %v4035 = vand.u32 %v1054, 4294901760
    %4036 = vmatmul.mubr.f32.gmra.mrb[0].mxu0 %v4035
    %v4037 = vpop.f32.mrb[0].mxu0
    %v4038 = vadd.f32 %v3588, %v4037
    %v4039 = vpop.f32.mrb[0].mxu0
    %4040 = vmatprep.mubr.f32.mxu0 0.0
    %v4041 = vand.u32 %v1057, 4294901760
    %4042 = vmatmul.mubr.f32.gmra.mrb[0].mxu0 %v4041
    %v4043 = vpop.f32.mrb[0].mxu0
    %v4044 = vadd.f32 %v3594, %v4043
    %v4045 = vpop.f32.mrb[0].mxu0
    %4046 = vmatprep.mubr.f32.mxu0 0.0
    %v4047 = vand.u32 %v1060, 4294901760
    %4048 = vmatmul.mubr.f32.gmra.mrb[0].mxu0 %v4047
    %v4049 = vpop.f32.mrb[0].mxu0
    %v4050 = vadd.f32 %v3600, %v4049
    %v4051 = vpop.f32.mrb[0].mxu0
    %4052 = vmatprep.mubr.f32.mxu0 0.0
    %v4053 = vand.u32 %v1063, 4294901760
    %4054 = vmatmul.mubr.f32.gmra.mrb[0].mxu0 %v4053
    %v4055 = vpop.f32.mrb[0].mxu0
    %v4056 = vadd.f32 %v3606, %v4055
    %v4057 = vpop.f32.mrb[0].mxu0
    %4058 = vmatprep.mubr.f32.mxu0 0.0
    %v4059 = vand.u32 %v1066, 4294901760
    %4060 = vmatmul.mubr.f32.gmra.mrb[0].mxu0 %v4059
    %v4061 = vpop.f32.mrb[0].mxu0
    %v4062 = vadd.f32 %v3612, %v4061
    %v4063 = vpop.f32.mrb[0].mxu0
    %4064 = vmatprep.mubr.f32.mxu0 0.0
    %v4065 = vand.u32 %v1069, 4294901760
    %4066 = vmatmul.mubr.f32.gmra.mrb[0].mxu0 %v4065
    %v4067 = vpop.f32.mrb[0].mxu0
    %v4068 = vadd.f32 %v3618, %v4067
    %v4069 = vpop.f32.mrb[0].mxu0
    %4070 = vmatprep.mubr.f32.mxu0 0.0
    %v4071 = vand.u32 %v1072, 4294901760
    %4072 = vmatmul.mubr.f32.gmra.mrb[0].mxu0 %v4071
    %v4073 = vpop.f32.mrb[0].mxu0
    %v4074 = vadd.f32 %v3624, %v4073
    %v4075 = vpop.f32.mrb[0].mxu0
    %4076 = vmatprep.mubr.f32.mxu0 0.0
    %v4077 = vand.u32 %v1075, 4294901760
    %4078 = vmatmul.mubr.f32.gmra.mrb[0].mxu0 %v4077
    %v4079 = vpop.f32.mrb[0].mxu0
    %v4080 = vadd.f32 %v3630, %v4079
    %v4081 = vpop.f32.mrb[0].mxu0
    %4082 = vmatprep.mubr.f32.mxu0 0.0
    %v4083 = vand.u32 %v1078, 4294901760
    %4084 = vmatmul.mubr.f32.gmra.mrb[0].mxu0 %v4083
    %v4085 = vpop.f32.mrb[0].mxu0
    %v4086 = vadd.f32 %v3636, %v4085
    %v4087 = vpop.f32.mrb[0].mxu0
    %4088 = vmatprep.mubr.f32.mxu0 0.0
    %v4089 = vand.u32 %v1081, 4294901760
    %4090 = vmatmul.mubr.f32.gmra.mrb[0].mxu0 %v4089
    %v4091 = vpop.f32.mrb[0].mxu0
    %v4092 = vadd.f32 %v3642, %v4091
    %v4093 = vpop.f32.mrb[0].mxu0
    %4094 = vmatprep.mubr.f32.mxu0 0.0
    %v4095 = vand.u32 %v1084, 4294901760
    %4096 = vmatmul.mubr.f32.gmra.mrb[0].mxu0 %v4095
    %v4097 = vpop.f32.mrb[0].mxu0
    %v4098 = vadd.f32 %v3648, %v4097
    %v4099 = vpop.f32.mrb[0].mxu0
    %4100 = vmatprep.mubr.f32.mxu0 0.0
    %v4101 = vand.u32 %v1087, 4294901760
    %4102 = vmatmul.mubr.f32.gmra.mrb[0].mxu0 %v4101
    %v4103 = vpop.f32.mrb[0].mxu0
    %v4104 = vadd.f32 %v3654, %v4103
    %v4105 = vpop.f32.mrb[0].mxu0
    %4106 = vmatprep.mubr.f32.mxu0 0.0
    %v4107 = vand.u32 %v1090, 4294901760
    %4108 = vmatmul.mubr.f32.gmra.mrb[0].mxu0 %v4107
    %v4109 = vpop.f32.mrb[0].mxu0
    %v4110 = vadd.f32 %v3660, %v4109
    %v4111 = vpop.f32.mrb[0].mxu0
    %4112 = vmatprep.mubr.f32.mxu0 0.0
    %v4113 = vand.u32 %v1093, 4294901760
    %4114 = vmatmul.mubr.f32.gmra.mrb[0].mxu0 %v4113
    %v4115 = vpop.f32.mrb[0].mxu0
    %v4116 = vadd.f32 %v3666, %v4115
    %v4117 = vpop.f32.mrb[0].mxu0
    %4118 = vmatprep.mubr.f32.mxu0 0.0
    %v4119 = vand.u32 %v1096, 4294901760
    %4120 = vmatmul.mubr.f32.gmra.mrb[0].mxu0 %v4119
    %v4121 = vpop.f32.mrb[0].mxu0
    %v4122 = vadd.f32 %v3672, %v4121
    %v4123 = vpop.f32.mrb[0].mxu0
    %4124 = vmatprep.mubr.f32.mxu0 0.0
    %v4125 = vand.u32 %v1099, 4294901760
    %4126 = vmatmul.mubr.f32.gmra.mrb[0].mxu0 %v4125
    %v4127 = vpop.f32.mrb[0].mxu0
    %v4128 = vadd.f32 %v3678, %v4127
    %v4129 = vpop.f32.mrb[0].mxu0
    %4130 = vmatprep.mubr.f32.mxu0 0.0
    %v4131 = vand.u32 %v1102, 4294901760
    %4132 = vmatmul.mubr.f32.gmra.mrb[0].mxu0 %v4131
    %v4133 = vpop.f32.mrb[0].mxu0
    %v4134 = vadd.f32 %v3684, %v4133
    %v4135 = vpop.f32.mrb[0].mxu0
    %4136 = vmatprep.mubr.f32.mxu0 0.0
    %v4137 = vand.u32 %v1105, 4294901760
    %4138 = vmatmul.mubr.f32.gmra.mrb[0].mxu0 %v4137
    %v4139 = vpop.f32.mrb[0].mxu0
    %v4140 = vadd.f32 %v3690, %v4139
    %v4141 = vpop.f32.mrb[0].mxu0
    %4142 = vmatprep.mubr.f32.mxu0 0.0
    %v4143 = vand.u32 %v1108, 4294901760
    %4144 = vmatmul.mubr.f32.gmra.mrb[0].mxu0 %v4143
    %v4145 = vpop.f32.mrb[0].mxu0
    %v4146 = vadd.f32 %v3696, %v4145
    %v4147 = vpop.f32.mrb[0].mxu0
    %4148 = vmatprep.mubr.f32.mxu0 0.0
    %v4149 = vand.u32 %v1111, 4294901760
    %4150 = vmatmul.mubr.f32.gmra.mrb[0].mxu0 %v4149
    %v4151 = vpop.f32.mrb[0].mxu0
    %v4152 = vadd.f32 %v3702, %v4151
    %v4153 = vpop.f32.mrb[0].mxu0
    %4154 = vmatprep.mubr.f32.mxu0 0.0
    %v4155 = vand.u32 %v1114, 4294901760
    %4156 = vmatmul.mubr.f32.gmra.mrb[0].mxu0 %v4155
    %v4157 = vpop.f32.mrb[0].mxu0
    %v4158 = vadd.f32 %v3708, %v4157
    %v4159 = vpop.f32.mrb[0].mxu0
    %4160 = vmatprep.mubr.f32.mxu0 0.0
    %v4161 = vand.u32 %v1117, 4294901760
    %4162 = vmatmul.mubr.f32.gmra.mrb[0].mxu0 %v4161
    %v4163 = vpop.f32.mrb[0].mxu0
    %v4164 = vadd.f32 %v3714, %v4163
    %v4165 = vpop.f32.mrb[0].mxu0
    %4166 = vmatprep.mubr.f32.mxu0 0.0
    %v4167 = vand.u32 %v1120, 4294901760
    %4168 = vmatmul.mubr.f32.gmra.mrb[0].mxu0 %v4167
    %v4169 = vpop.f32.mrb[0].mxu0
    %v4170 = vadd.f32 %v3720, %v4169
    %v4171 = vpop.f32.mrb[0].mxu0
    %4172 = vmatprep.mubr.f32.mxu0 0.0
    %v4173 = vand.u32 %v1123, 4294901760
    %4174 = vmatmul.mubr.f32.gmra.mrb[0].mxu0 %v4173
    %v4175 = vpop.f32.mrb[0].mxu0
    %v4176 = vadd.f32 %v3726, %v4175
    %v4177 = vpop.f32.mrb[0].mxu0
    %4178 = vmatprep.mubr.f32.mxu0 0.0
    %v4179 = vand.u32 %v1126, 4294901760
    %4180 = vmatmul.mubr.f32.gmra.mrb[0].mxu0 %v4179
    %v4181 = vpop.f32.mrb[0].mxu0
    %v4182 = vadd.f32 %v3732, %v4181
    %v4183 = vpop.f32.mrb[0].mxu0
    %4184 = vmatprep.mubr.f32.mxu0 0.0
    %v4185 = vand.u32 %v1129, 4294901760
    %4186 = vmatmul.mubr.f32.gmra.mrb[0].mxu0 %v4185
    %v4187 = vpop.f32.mrb[0].mxu0
    %v4188 = vadd.f32 %v3738, %v4187
    %v4189 = vpop.f32.mrb[0].mxu0
    %4190 = vmatprep.mubr.f32.mxu0 0.0
    %v4191 = vand.u32 %v1132, 4294901760
    %4192 = vmatmul.mubr.f32.gmra.mrb[0].mxu0 %v4191
    %v4193 = vpop.f32.mrb[0].mxu0
    %v4194 = vadd.f32 %v3744, %v4193
    %v4195 = vpop.f32.mrb[0].mxu0
    %4196 = vmatprep.mubr.f32.mxu0 0.0
    %v4197 = vand.u32 %v1135, 4294901760
    %4198 = vmatmul.mubr.f32.gmra.mrb[0].mxu0 %v4197
    %v4199 = vpop.f32.mrb[0].mxu0
    %v4200 = vadd.f32 %v3750, %v4199
    %v4201 = vpop.f32.mrb[0].mxu0
    %4202 = vmatprep.mubr.f32.mxu0 0.0
    %v4203 = vand.u32 %v1138, 4294901760
    %4204 = vmatmul.mubr.f32.gmra.mrb[0].mxu0 %v4203
    %v4205 = vpop.f32.mrb[0].mxu0
    %v4206 = vadd.f32 %v3756, %v4205
    %v4207 = vpop.f32.mrb[0].mxu0
    %4208 = vmatprep.mubr.f32.mxu0 0.0
    %v4209 = vand.u32 %v1141, 4294901760
    %4210 = vmatmul.mubr.f32.gmra.mrb[0].mxu0 %v4209
    %v4211 = vpop.f32.mrb[0].mxu0
    %v4212 = vadd.f32 %v3762, %v4211
    %v4213 = vpop.f32.mrb[0].mxu0
    %4214 = vmatprep.mubr.f32.mxu0 0.0
    %v4215 = vand.u32 %v1144, 4294901760
    %4216 = vmatmul.mubr.f32.gmra.mrb[0].mxu0 %v4215
    %v4217 = vpop.f32.mrb[0].mxu0
    %v4218 = vadd.f32 %v3768, %v4217
    %v4219 = vpop.f32.mrb[0].mxu0
    %4220 = vmatprep.mubr.f32.mxu0 0.0
    %v4221 = vand.u32 %v1147, 4294901760
    %4222 = vmatmul.mubr.f32.gmra.mrb[0].mxu0 %v4221
    %v4223 = vpop.f32.mrb[0].mxu0
    %v4224 = vadd.f32 %v3774, %v4223
    %v4225 = vpop.f32.mrb[0].mxu0
    %4226 = vmatprep.mubr.f32.mxu0 0.0
    %v4227 = vand.u32 %v1150, 4294901760
    %4228 = vmatmul.mubr.f32.gmra.mrb[0].mxu0 %v4227
    %v4229 = vpop.f32.mrb[0].mxu0
    %v4230 = vadd.f32 %v3780, %v4229
    %v4231 = vpop.f32.mrb[0].mxu0
    %4232 = vmatprep.mubr.f32.mxu0 0.0
    %v4233 = vand.u32 %v1153, 4294901760
    %4234 = vmatmul.mubr.f32.gmra.mrb[0].mxu0 %v4233
    %v4235 = vpop.f32.mrb[0].mxu0
    %v4236 = vadd.f32 %v3786, %v4235
    %v4237 = vpop.f32.mrb[0].mxu0
    %4238 = vmatprep.mubr.f32.mxu0 0.0
    %v4239 = vand.u32 %v1156, 4294901760
    %4240 = vmatmul.mubr.f32.gmra.mrb[0].mxu0 %v4239
    %v4241 = vpop.f32.mrb[0].mxu0
    %v4242 = vadd.f32 %v3792, %v4241
    %v4243 = vpop.f32.mrb[0].mxu0
    %4244 = vmatprep.mubr.f32.mxu0 0.0
    %v4245 = vand.u32 %v1159, 4294901760
    %4246 = vmatmul.mubr.f32.gmra.mrb[0].mxu0 %v4245
    %v4247 = vpop.f32.mrb[0].mxu0
    %v4248 = vadd.f32 %v3798, %v4247
    %v4249 = vpop.f32.mrb[0].mxu0
    %4250 = vmatprep.mubr.f32.mxu0 0.0
    %v4251 = vand.u32 %v1162, 4294901760
    %4252 = vmatmul.mubr.f32.gmra.mrb[0].mxu0 %v4251
    %v4253 = vpop.f32.mrb[0].mxu0
    %v4254 = vadd.f32 %v3804, %v4253
    %v4255 = vpop.f32.mrb[0].mxu0
    %4256 = vmatprep.mubr.f32.mxu0 0.0
    %v4257 = vand.u32 %v1165, 4294901760
    %4258 = vmatmul.mubr.f32.gmra.mrb[0].mxu0 %v4257
    %v4259 = vpop.f32.mrb[0].mxu0
    %v4260 = vadd.f32 %v3810, %v4259
    %v4261 = vpop.f32.mrb[0].mxu0
    %4262 = vmatprep.mubr.f32.mxu0 0.0
    %v4263 = vand.u32 %v1168, 4294901760
    %4264 = vmatmul.mubr.f32.gmra.mrb[0].mxu0 %v4263
    %v4265 = vpop.f32.mrb[0].mxu0
    %v4266 = vadd.f32 %v3816, %v4265
    %v4267 = vpop.f32.mrb[0].mxu0
    %4268 = vmatprep.mubr.f32.mxu0 0.0
    %v4269 = vand.u32 %v1171, 4294901760
    %4270 = vmatmul.mubr.f32.gmra.mrb[0].mxu0 %v4269
    %v4271 = vpop.f32.mrb[0].mxu0
    %v4272 = vadd.f32 %v3822, %v4271
    %v4273 = vpop.f32.mrb[0].mxu0
    %4274 = vmatprep.mubr.f32.mxu0 0.0
    %v4275 = vand.u32 %v1174, 4294901760
    %4276 = vmatmul.mubr.f32.gmra.mrb[0].mxu0 %v4275
    %v4277 = vpop.f32.mrb[0].mxu0
    %v4278 = vadd.f32 %v3828, %v4277
    %v4279 = vpop.f32.mrb[0].mxu0
    %4280 = vmatprep.mubr.f32.mxu0 0.0
    %v4281 = vand.u32 %v1177, 4294901760
    %4282 = vmatmul.mubr.f32.gmra.mrb[0].mxu0 %v4281
    %v4283 = vpop.f32.mrb[0].mxu0
    %v4284 = vadd.f32 %v3834, %v4283
    %v4285 = vpop.f32.mrb[0].mxu0
    %4286 = vmatprep.mubr.f32.mxu0 0.0
    %v4287 = vand.u32 %v1180, 4294901760
    %4288 = vmatmul.mubr.f32.gmra.mrb[0].mxu0 %v4287
    %v4289 = vpop.f32.mrb[0].mxu0
    %v4290 = vadd.f32 %v3840, %v4289
    %v4291 = vpop.f32.mrb[0].mxu0
    %4292 = vmatprep.mubr.f32.mxu0 0.0
    %v4293 = vand.u32 %v1183, 4294901760
    %4294 = vmatmul.mubr.f32.gmra.mrb[0].mxu0 %v4293
    %v4295 = vpop.f32.mrb[0].mxu0
    %v4296 = vadd.f32 %v3846, %v4295
    %v4297 = vpop.f32.mrb[0].mxu0
    %4298 = vmatprep.mubr.f32.mxu0 0.0
    %v4299 = vand.u32 %v1186, 4294901760
    %4300 = vmatmul.mubr.f32.gmra.mrb[0].mxu0 %v4299
    %v4301 = vpop.f32.mrb[0].mxu0
    %v4302 = vadd.f32 %v3852, %v4301
    %v4303 = vpop.f32.mrb[0].mxu0
    %4304 = vmatprep.mubr.f32.mxu0 0.0
    %v4305 = vand.u32 %v1189, 4294901760
    %4306 = vmatmul.mubr.f32.gmra.mrb[0].mxu0 %v4305
    %v4307 = vpop.f32.mrb[0].mxu0
    %v4308 = vadd.f32 %v3858, %v4307
    %v4309 = vpop.f32.mrb[0].mxu0
    %4310 = vmatprep.mubr.f32.mxu0 0.0
    %v4311 = vand.u32 %v1192, 4294901760
    %4312 = vmatmul.mubr.f32.gmra.mrb[0].mxu0 %v4311
    %v4313 = vpop.f32.mrb[0].mxu0
    %v4314 = vadd.f32 %v3864, %v4313
    %v4315 = vpop.f32.mrb[0].mxu0
    %4316 = vmatprep.mubr.f32.mxu0 0.0
    %v4317 = vand.u32 %v1195, 4294901760
    %4318 = vmatmul.mubr.f32.gmra.mrb[0].mxu0 %v4317
    %v4319 = vpop.f32.mrb[0].mxu0
    %v4320 = vadd.f32 %v3870, %v4319
    %v4321 = vpop.f32.mrb[0].mxu0
    %4322 = vmatprep.mubr.f32.mxu0 0.0
    %v4323 = vand.u32 %v1198, 4294901760
    %4324 = vmatmul.mubr.f32.gmra.mrb[0].mxu0 %v4323
    %v4325 = vpop.f32.mrb[0].mxu0
    %v4326 = vadd.f32 %v3876, %v4325
    %v4327 = vpop.f32.mrb[0].mxu0
    %4328 = vmatprep.mubr.f32.mxu0 0.0
    %v4329 = vand.u32 %v1201, 4294901760
    %4330 = vmatmul.mubr.f32.gmra.mrb[0].mxu0 %v4329
    %v4331 = vpop.f32.mrb[0].mxu0
    %v4332 = vadd.f32 %v3882, %v4331
    %v4333 = vpop.f32.mrb[0].mxu0
    %4334 = vmatprep.mubr.f32.mxu0 0.0
    %v4335 = vand.u32 %v1204, 4294901760
    %4336 = vmatmul.mubr.f32.gmra.mrb[0].mxu0 %v4335
    %v4337 = vpop.f32.mrb[0].mxu0
    %v4338 = vadd.f32 %v3888, %v4337
    %v4339 = vpop.f32.mrb[0].mxu0
    %4340 = vmatprep.mubr.f32.mxu0 0.0
    %v4341 = vand.u32 %v1207, 4294901760
    %4342 = vmatmul.mubr.f32.gmra.mrb[0].mxu0 %v4341
    %v4343 = vpop.f32.mrb[0].mxu0
    %v4344 = vadd.f32 %v3894, %v4343
    %v4345 = vpop.f32.mrb[0].mxu0
    %4346 = vmatprep.mubr.f32.mxu0 0.0
    %v4347 = vand.u32 %v1210, 4294901760
    %4348 = vmatmul.mubr.f32.gmra.mrb[0].mxu0 %v4347
    %v4349 = vpop.f32.mrb[0].mxu0
    %v4350 = vadd.f32 %v3900, %v4349
    %v4351 = vpop.f32.mrb[0].mxu0
    %4352 = vmatprep.mubr.f32.mxu0 0.0
    %v4353 = vand.u32 %v1213, 4294901760
    %4354 = vmatmul.mubr.f32.gmra.mrb[0].mxu0 %v4353
    %v4355 = vpop.f32.mrb[0].mxu0
    %v4356 = vadd.f32 %v3906, %v4355
    %v4357 = vpop.f32.mrb[0].mxu0
    %4358 = vmatprep.mubr.f32.mxu0 0.0
    %v4359 = vand.u32 %v1216, 4294901760
    %4360 = vmatmul.mubr.f32.gmra.mrb[0].mxu0 %v4359
    %v4361 = vpop.f32.mrb[0].mxu0
    %v4362 = vadd.f32 %v3912, %v4361
    %v4363 = vpop.f32.mrb[0].mxu0
    %4364 = vmatprep.mubr.f32.mxu0 0.0
    %v4365 = vand.u32 %v1219, 4294901760
    %4366 = vmatmul.mubr.f32.gmra.mrb[0].mxu0 %v4365
    %v4367 = vpop.f32.mrb[0].mxu0
    %v4368 = vadd.f32 %v3918, %v4367
    %v4369 = vpop.f32.mrb[0].mxu0
    %4370 = vmatprep.mubr.f32.mxu0 0.0
    %v4371 = vand.u32 %v1222, 4294901760
    %4372 = vmatmul.mubr.f32.gmra.mrb[0].mxu0 %v4371
    %v4373 = vpop.f32.mrb[0].mxu0
    %v4374 = vadd.f32 %v3924, %v4373
    %v4375 = vpop.f32.mrb[0].mxu0
    %4376 = vmatprep.mubr.f32.mxu0 0.0
    %v4377 = vand.u32 %v1225, 4294901760
    %4378 = vmatmul.mubr.f32.gmra.mrb[0].mxu0 %v4377
    %v4379 = vpop.f32.mrb[0].mxu0
    %v4380 = vadd.f32 %v3930, %v4379
    %v4381 = vpop.f32.mrb[0].mxu0
    %4382 = vmatprep.mubr.f32.mxu0 0.0
    %v4383 = vand.u32 %v1228, 4294901760
    %4384 = vmatmul.mubr.f32.gmra.mrb[0].mxu0 %v4383
    %v4385 = vpop.f32.mrb[0].mxu0
    %v4386 = vadd.f32 %v3936, %v4385
    %v4387 = vpop.f32.mrb[0].mxu0
    %4388 = vdwg.mxu0
    %4389 = vst [vmem:[#allocation2] sm:$0xff] %v4008
    %4390 = vst [vmem:[#allocation2 + $0x8] sm:$0xff] %v4014
    %4391 = vst [vmem:[#allocation2 + $0x10] sm:$0xff] %v4020
    %4392 = vst [vmem:[#allocation2 + $0x18] sm:$0xff] %v4026
    %4393 = vst [vmem:[#allocation2 + $0x20] sm:$0xff] %v4032
    %4394 = vst [vmem:[#allocation2 + $0x28] sm:$0xff] %v4038
    %4395 = vst [vmem:[#allocation2 + $0x30] sm:$0xff] %v4044
    %4396 = vst [vmem:[#allocation2 + $0x38] sm:$0xff] %v4050
    %4397 = vst [vmem:[#allocation2 + $0x40] sm:$0xff] %v4056
    %4398 = vst [vmem:[#allocation2 + $0x48] sm:$0xff] %v4062
    %4399 = vst [vmem:[#allocation2 + $0x50] sm:$0xff] %v4068
    %4400 = vst [vmem:[#allocation2 + $0x58] sm:$0xff] %v4074
    %4401 = vst [vmem:[#allocation2 + $0x60] sm:$0xff] %v4080
    %4402 = vst [vmem:[#allocation2 + $0x68] sm:$0xff] %v4086
    %4403 = vst [vmem:[#allocation2 + $0x70] sm:$0xff] %v4092
    %4404 = vst [vmem:[#allocation2 + $0x78] sm:$0xff] %v4098
    %4405 = vst [vmem:[#allocation2 + $0x80] sm:$0xff] %v4104
    %4406 = vst [vmem:[#allocation2 + $0x88] sm:$0xff] %v4110
    %4407 = vst [vmem:[#allocation2 + $0x90] sm:$0xff] %v4116
    %4408 = vst [vmem:[#allocation2 + $0x98] sm:$0xff] %v4122
    %4409 = vst [vmem:[#allocation2 + $0xa0] sm:$0xff] %v4128
    %4410 = vst [vmem:[#allocation2 + $0xa8] sm:$0xff] %v4134
    %4411 = vst [vmem:[#allocation2 + $0xb0] sm:$0xff] %v4140
    %4412 = vst [vmem:[#allocation2 + $0xb8] sm:$0xff] %v4146
    %4413 = vst [vmem:[#allocation2 + $0xc0] sm:$0xff] %v4152
    %4414 = vst [vmem:[#allocation2 + $0xc8] sm:$0xff] %v4158
    %4415 = vst [vmem:[#allocation2 + $0xd0] sm:$0xff] %v4164
    %4416 = vst [vmem:[#allocation2 + $0xd8] sm:$0xff] %v4170
    %4417 = vst [vmem:[#allocation2 + $0xe0] sm:$0xff] %v4176
    %4418 = vst [vmem:[#allocation2 + $0xe8] sm:$0xff] %v4182
    %4419 = vst [vmem:[#allocation2 + $0xf0] sm:$0xff] %v4188
    %4420 = vst [vmem:[#allocation2 + $0xf8] sm:$0xff] %v4194
    %4421 = vst [vmem:[#allocation2 + $0x100] sm:$0xff] %v4200
    %4422 = vst [vmem:[#allocation2 + $0x108] sm:$0xff] %v4206
    %4423 = vst [vmem:[#allocation2 + $0x110] sm:$0xff] %v4212
    %4424 = vst [vmem:[#allocation2 + $0x118] sm:$0xff] %v4218
    %4425 = vst [vmem:[#allocation2 + $0x120] sm:$0xff] %v4224
    %4426 = vst [vmem:[#allocation2 + $0x128] sm:$0xff] %v4230
    %4427 = vst [vmem:[#allocation2 + $0x130] sm:$0xff] %v4236
    %4428 = vst [vmem:[#allocation2 + $0x138] sm:$0xff] %v4242
    %4429 = vst [vmem:[#allocation2 + $0x140] sm:$0xff] %v4248
    %4430 = vst [vmem:[#allocation2 + $0x148] sm:$0xff] %v4254
    %4431 = vst [vmem:[#allocation2 + $0x150] sm:$0xff] %v4260
    %4432 = vst [vmem:[#allocation2 + $0x158] sm:$0xff] %v4266
    %4433 = vst [vmem:[#allocation2 + $0x160] sm:$0xff] %v4272
    %4434 = vst [vmem:[#allocation2 + $0x168] sm:$0xff] %v4278
    %4435 = vst [vmem:[#allocation2 + $0x170] sm:$0xff] %v4284
    %4436 = vst [vmem:[#allocation2 + $0x178] sm:$0xff] %v4290
    %4437 = vst [vmem:[#allocation2 + $0x180] sm:$0xff] %v4296
    %4438 = vst [vmem:[#allocation2 + $0x188] sm:$0xff] %v4302
    %4439 = vst [vmem:[#allocation2 + $0x190] sm:$0xff] %v4308
    %4440 = vst [vmem:[#allocation2 + $0x198] sm:$0xff] %v4314
    %4441 = vst [vmem:[#allocation2 + $0x1a0] sm:$0xff] %v4320
    %4442 = vst [vmem:[#allocation2 + $0x1a8] sm:$0xff] %v4326
    %4443 = vst [vmem:[#allocation2 + $0x1b0] sm:$0xff] %v4332
    %4444 = vst [vmem:[#allocation2 + $0x1b8] sm:$0xff] %v4338
    %4445 = vst [vmem:[#allocation2 + $0x1c0] sm:$0xff] %v4344
    %4446 = vst [vmem:[#allocation2 + $0x1c8] sm:$0xff] %v4350
    %4447 = vst [vmem:[#allocation2 + $0x1d0] sm:$0xff] %v4356
    %4448 = vst [vmem:[#allocation2 + $0x1d8] sm:$0xff] %v4362
    %4449 = vst [vmem:[#allocation2 + $0x1e0] sm:$0xff] %v4368
    %4450 = vst [vmem:[#allocation2 + $0x1e8] sm:$0xff] %v4374
    %4451 = vst [vmem:[#allocation2 + $0x1f0] sm:$0xff] %v4380
    %4452 = vst [vmem:[#allocation2 + $0x1f8] sm:$0xff] %v4386
    // Predicated region
    $region10: #{edge_mapping.1} parent=1 // pred_check
      _
    $region11: #{edge_mapping.1} parent=1 // pred_check_branch
      %4454 = sbr.rel (0) target = $region13
    $region12: #{edge_mapping.1} parent=1 // pred_region
      %s4456 = ssub.s32 8192, 8192
      %4457 = vsyncadd [#allocation3], %s4456
      %s4458 = sshll.u32 [#allocation2], 4
      %s4459 = int_to_ptr.vmem [resolvable:$true] %s4458
      %4464 = dma.vmem_to_hbm [thread:$0]  %s4459, 8192, %s2, [#allocation3], 128, 128, 8
    $region13: #{edge_mapping.1} parent=1 // pred_fallthru
      _
    // Predicated region
    $region14: #{edge_mapping.1} parent=1 // pred_check
      _
    $region15: #{edge_mapping.1} parent=1 // pred_check_branch
      %4466 = sbr.rel (0) target = $region17
    $region16: #{edge_mapping.1} parent=1 // pred_region
      %4467 = dma.done [#allocation3], 8192
    $region17: #{edge_mapping.1} parent=1 // pred_fallthru
      _
    %4468 = vsyncpa [#allocation3], 1

</llo_original>
